<compile_context>
chip_gen: v5e
topology: v5e:2x2
jax: 0.10.0
libtpu: 0.0.40
codegen_flags: <defaults>
</compile_context>

<pallas_src>
import functools

import jax
import jax.numpy as jnp
from jax import lax
from jax.experimental import pallas as pl
from jax.experimental.pallas import tpu as pltpu


# ---------------------------------------------------------------------------
# Kernel
# ---------------------------------------------------------------------------
def lstm_fused_kernel(x_ref, wih1_ref, whh1_ref, b1_ref,
                      wih2_ref, whh2_ref, b2_ref,
                      wfc_ref, bfc_ref,
                      out_ref,
                      proj1_ref, h1seq_ref, proj2_ref, h2seq_ref,
                      *, seq_len, batch):
    B = batch
    Hp = whh1_ref.shape[0]          # padded hidden size (multiple of 128)

    def gates_to_hc(gates, c):
        # Gate blocks are lane-aligned (each exactly Hp = 128 lanes wide).
        i = jax.nn.sigmoid(gates[:, 0 * Hp:1 * Hp])
        f = jax.nn.sigmoid(gates[:, 1 * Hp:2 * Hp])
        g = jnp.tanh(gates[:, 2 * Hp:3 * Hp])
        o = jax.nn.sigmoid(gates[:, 3 * Hp:4 * Hp])
        c = f * c + i * g
        h = o * jnp.tanh(c)
        return h, c

    zeros = jnp.zeros((B, Hp), jnp.float32)

    # ---- Pass 1: LSTM cell 1 ------------------------------------------------
    # Hoisted input projection for ALL timesteps (one MXU call, bias folded in):
    # (T*B, D) @ (D, 4Hp) + b1   (b1 = b_ih1 + b_hh1, gate-padded)
    proj1_ref[...] = (
        jnp.dot(x_ref[...], wih1_ref[...], preferred_element_type=jnp.float32)
        + b1_ref[...])

    def step1(t, carry):
        h1, c1 = carry
        row = pl.multiple_of(t * B, B)           # sublane-aligned start
        gates = proj1_ref[pl.ds(row, B), :] + jnp.dot(
            h1, whh1_ref[...], preferred_element_type=jnp.float32)
        h1, c1 = gates_to_hc(gates, c1)
        h1seq_ref[pl.ds(row, B), :] = h1         # collect h1[t]
        return h1, c1

    lax.fori_loop(0, seq_len, step1, (zeros, zeros), unroll=True)

    # ---- Pass 2: LSTM cell 2 ------------------------------------------------
    # Hoisted input projection over the whole h1 sequence (one MXU call):
    # (T*B, Hp) @ (Hp, 4Hp) + b2
    proj2_ref[...] = (
        jnp.dot(h1seq_ref[...], wih2_ref[...],
                preferred_element_type=jnp.float32)
        + b2_ref[...])

    def step2(t, carry):
        h2, c2 = carry
        row = pl.multiple_of(t * B, B)
        gates = proj2_ref[pl.ds(row, B), :] + jnp.dot(
            h2, whh2_ref[...], preferred_element_type=jnp.float32)
        h2, c2 = gates_to_hc(gates, c2)
        h2seq_ref[pl.ds(row, B), :] = h2         # collect h2[t]
        return h2, c2

    lax.fori_loop(0, seq_len, step2, (zeros, zeros), unroll=True)

    # ---- Batched fc + softmax over all T*B rows ------------------------------
    # Padded vocab lanes carry bias -1e30 -> exp underflows to 0, so the
    # softmax over the real V lanes is exact; output store is lane-dense.
    logits = (jnp.dot(h2seq_ref[...], wfc_ref[...],
                      preferred_element_type=jnp.float32) + bfc_ref[...])
    m = jnp.max(logits, axis=-1, keepdims=True)
    e = jnp.exp(logits - m)
    out_ref[...] = e * pl.reciprocal(jnp.sum(e, axis=-1, keepdims=True),
                                     approx=True)


# ---------------------------------------------------------------------------
# Wrapper
# ---------------------------------------------------------------------------
def _round_up(n, m):
    return ((n + m - 1) // m) * m


def _pad_gate_cols(w_t, H, Hp):
    """(K, 4H) -> (K, 4Hp); gate k lands at columns [k*Hp, k*Hp+H), rest zero."""
    K = w_t.shape[0]
    out = jnp.zeros((K, 4 * Hp), w_t.dtype)
    for k in range(4):
        out = out.at[:, k * Hp:k * Hp + H].set(w_t[:, k * H:(k + 1) * H])
    return out


def _pad_rows(w, rows_p):
    return jnp.zeros((rows_p,) + w.shape[1:], w.dtype).at[:w.shape[0]].set(w)


def lstm_model_forward(x_ids, params):
    emb = params["embedding"]                    # (V, D)
    V, D = emb.shape
    H = params["whh1"].shape[1]
    B, T = x_ids.shape

    Hp = _round_up(H, 128)                       # lane-align hidden
    Vp = _round_up(V, 128)                       # lane-align vocab

    # ----- build padded / transposed kernel operands -----
    wih1_t = _pad_gate_cols(params["wih1"].T, H, Hp)                  # (D,  4Hp)
    whh1_t = _pad_rows(_pad_gate_cols(params["whh1"].T, H, Hp), Hp)   # (Hp, 4Hp)
    b1 = _pad_gate_cols(params["b1"][None, :], H, Hp)                 # (1,  4Hp)
    wih2_t = _pad_rows(_pad_gate_cols(params["wih2"].T, H, Hp), Hp)   # (Hp, 4Hp)
    whh2_t = _pad_rows(_pad_gate_cols(params["whh2"].T, H, Hp), Hp)   # (Hp, 4Hp)
    b2 = _pad_gate_cols(params["b2"][None, :], H, Hp)                 # (1,  4Hp)
    wfc_t = jnp.zeros((Hp, Vp), jnp.float32).at[:H, :V].set(params["wfc"].T)
    bfc = jnp.full((1, Vp), -1e30, jnp.float32).at[0, :V].set(params["bfc"])

    # TODO(synk): embedding lookup stays in XLA (jnp.take); a Pallas DMA-gather
    # is not worth it at these shapes. The kernel gets dense time-major acts.
    x = jnp.take(emb, x_ids, axis=0)                         # (B, T, D)
    x = jnp.transpose(x, (1, 0, 2)).astype(jnp.float32)      # (T, B, D)
    x_flat = x.reshape(T * B, D)                             # row t*B + b

    kernel = functools.partial(lstm_fused_kernel, seq_len=T, batch=B)
    vmem = lambda: pl.BlockSpec(memory_space=pltpu.MemorySpace.VMEM)

    out_flat = pl.pallas_call(
        kernel,
        out_shape=jax.ShapeDtypeStruct((T * B, Vp), jnp.float32),
        in_specs=[vmem() for _ in range(9)],
        out_specs=vmem(),
        scratch_shapes=[
            pltpu.VMEM((T * B, 4 * Hp), jnp.float32),   # cell-1 input projection
            pltpu.VMEM((T * B, Hp), jnp.float32),       # h1 sequence
            pltpu.VMEM((T * B, 4 * Hp), jnp.float32),   # cell-2 input projection
            pltpu.VMEM((T * B, Hp), jnp.float32),       # h2 sequence for batched fc
        ],
    )(x_flat, wih1_t, whh1_t, b1, wih2_t, whh2_t, b2, wfc_t, bfc)

    out = out_flat.reshape(T, B, Vp)[:, :, :V]               # drop vocab padding
    return jnp.transpose(out, (1, 0, 2))                     # (B, T, V)


# ---------------------------------------------------------------------------
# Params (PyTorch LSTMCell convention, biases b_ih+b_hh combined) + reference
# ---------------------------------------------------------------------------
def init_params(key, vocab_size, input_dim, hidden_dim):
    ks = jax.random.split(key, 9)
    s = 0.1
    H4 = 4 * hidden_dim
    return {
        "embedding": s * jax.random.normal(ks[0], (vocab_size, input_dim), jnp.float32),
        "wih1": s * jax.random.normal(ks[1], (H4, input_dim), jnp.float32),
        "whh1": s * jax.random.normal(ks[2], (H4, hidden_dim), jnp.float32),
        "b1":   s * jax.random.normal(ks[3], (H4,), jnp.float32),   # b_ih1 + b_hh1
        "wih2": s * jax.random.normal(ks[4], (H4, hidden_dim), jnp.float32),
        "whh2": s * jax.random.normal(ks[5], (H4, hidden_dim), jnp.float32),
        "b2":   s * jax.random.normal(ks[6], (H4,), jnp.float32),   # b_ih2 + b_hh2
        "wfc":  s * jax.random.normal(ks[7], (vocab_size, hidden_dim), jnp.float32),
        "bfc":  s * jax.random.normal(ks[8], (vocab_size,), jnp.float32),
    }


def reference_forward(x_ids, params):
    x = jnp.take(params["embedding"], x_ids, axis=0)   # (B, T, D)
    B, T, _ = x.shape
    H = params["whh1"].shape[1]

    def cell(xt, h, c, wih, whh, b):
        gates = xt @ wih.T + h @ whh.T + b
        i, f, g, o = jnp.split(gates, 4, axis=-1)
        c = jax.nn.sigmoid(f) * c + jax.nn.sigmoid(i) * jnp.tanh(g)
        h = jax.nn.sigmoid(o) * jnp.tanh(c)
        return h, c

    # layer 1 over all timesteps, then layer 2 + fc + softmax (as in PyTorch)
    h1 = c1 = jnp.zeros((B, H), jnp.float32)
    h1s = []
    for t in range(T):
        h1, c1 = cell(x[:, t], h1, c1, params["wih1"], params["whh1"], params["b1"])
        h1s.append(h1)

    h2 = c2 = jnp.zeros((B, H), jnp.float32)
    outs = []
    for t in range(T):
        h2, c2 = cell(h1s[t], h2, c2, params["wih2"], params["whh2"], params["b2"])
        logits = h2 @ params["wfc"].T + params["bfc"]
        outs.append(jax.nn.softmax(logits, axis=-1))
    return jnp.stack(outs, axis=1)                     # (B, T, V)


if __name__ == "__main__":
    B, T = 8, 8          # batch, sequence length
    VOCAB = 16           # tokenizer.get_vocab_size()
    D = 128              # input_dim (embedding dim)
    H = 32               # hidden_dim

    key = jax.random.PRNGKey(0)
    pkey, xkey = jax.random.split(key)
    params = init_params(pkey, VOCAB, D, H)
    x_ids = jax.random.randint(xkey, (B, T), 0, VOCAB, dtype=jnp.int32)

    out = jax.jit(lstm_model_forward)(x_ids, params)
    out = jax.block_until_ready(out)

    assert out.shape == (B, T, VOCAB), out.shape

    ref = reference_forward(x_ids, params)
    max_err = float(jnp.max(jnp.abs(out - ref)))
    assert jnp.allclose(out, ref, atol=5e-3, rtol=5e-3), max_err
    # rows of the softmax output sum to ~1 (approx reciprocal -> loose atol)
    assert jnp.allclose(jnp.sum(out, axis=-1), 1.0, atol=2e-2)

    print("KERNEL_OK")
</pallas_src>

<mosaic_0001>
module attributes {stable_mosaic.version = 11 : i64} {
  func.func @lstm_fused_kernel(%arg0: memref<64x128xf32, #tpu.memory_space<vmem>>, %arg1: memref<128x512xf32, #tpu.memory_space<vmem>>, %arg2: memref<128x512xf32, #tpu.memory_space<vmem>>, %arg3: memref<1x512xf32, #tpu.memory_space<vmem>>, %arg4: memref<128x512xf32, #tpu.memory_space<vmem>>, %arg5: memref<128x512xf32, #tpu.memory_space<vmem>>, %arg6: memref<1x512xf32, #tpu.memory_space<vmem>>, %arg7: memref<128x128xf32, #tpu.memory_space<vmem>>, %arg8: memref<1x128xf32, #tpu.memory_space<vmem>>, %arg9: memref<64x128xf32, #tpu.memory_space<vmem>>, %arg10: memref<64x512xf32, #tpu.memory_space<vmem>>, %arg11: memref<64x128xf32, #tpu.memory_space<vmem>>, %arg12: memref<64x512xf32, #tpu.memory_space<vmem>>, %arg13: memref<64x128xf32, #tpu.memory_space<vmem>>) attributes {dimension_semantics = [], scalar_prefetch = 0 : i64, scratch_operands = 4 : i64, tpu.core_type = #tpu.core_type<tc>} {
    %cst = arith.constant 0.000000e+00 : f32
    %0 = vector.broadcast %cst : f32 to vector<8x128xf32>
    %c0 = arith.constant 0 : index
    %c0_0 = arith.constant 0 : index
    %1 = vector.load %arg0[%c0, %c0_0] : memref<64x128xf32, #tpu.memory_space<vmem>>, vector<64x128xf32>
    %c0_1 = arith.constant 0 : index
    %c0_2 = arith.constant 0 : index
    %2 = vector.load %arg1[%c0_1, %c0_2] : memref<128x512xf32, #tpu.memory_space<vmem>>, vector<128x512xf32>
    %cst_3 = arith.constant dense<0.000000e+00> : vector<64x512xf32>
    %3 = tpu.matmul %1, %2, %cst_3 {dimension_numbers = #tpu.dot_dimension_numbers<[1], [0], [0], [1], [0, 0, 1, 1], [], []>} : vector<64x128xf32>, vector<128x512xf32>, vector<64x512xf32> -> vector<64x512xf32>
    %c0_4 = arith.constant 0 : index
    %c0_5 = arith.constant 0 : index
    %4 = vector.load %arg3[%c0_4, %c0_5] : memref<1x512xf32, #tpu.memory_space<vmem>>, vector<1x512xf32>
    %5 = vector.broadcast %4 : vector<1x512xf32> to vector<64x512xf32>
    %6 = arith.addf %3, %5 : vector<64x512xf32>
    %c0_6 = arith.constant 0 : index
    %c0_7 = arith.constant 0 : index
    %7 = vector.load %arg10[%c0_6, %c0_7] : memref<64x512xf32, #tpu.memory_space<vmem>>, vector<64x512xf32>
    tpu.vector_store %arg10[%c0_6, %c0_7], %6 {strides = array<i32>} : memref<64x512xf32, #tpu.memory_space<vmem>>, vector<64x512xf32>,
    %c0_i32 = arith.constant 0 : i32
    %c8_i32 = arith.constant 8 : i32
    %8 = arith.muli %c0_i32, %c8_i32 : i32
    %9 = tpu.assume_multiple %8, 8 : i32
    %10 = arith.index_cast %9 : i32 to index
    %c0_8 = arith.constant 0 : index
    %11 = vector.load %arg10[%10, %c0_8] : memref<64x512xf32, #tpu.memory_space<vmem>>, vector<8x512xf32>
    %c0_9 = arith.constant 0 : index
    %c0_10 = arith.constant 0 : index
    %12 = vector.load %arg2[%c0_9, %c0_10] : memref<128x512xf32, #tpu.memory_space<vmem>>, vector<128x512xf32>
    %cst_11 = arith.constant dense<0.000000e+00> : vector<8x512xf32>
    %13 = tpu.matmul %0, %12, %cst_11 {dimension_numbers = #tpu.dot_dimension_numbers<[1], [0], [0], [1], [0, 0, 1, 1], [], []>} : vector<8x128xf32>, vector<128x512xf32>, vector<8x512xf32> -> vector<8x512xf32>
    %14 = arith.addf %11, %13 : vector<8x512xf32>
    %15 = vector.extract_strided_slice %14 {offsets = [0, 0], sizes = [8, 128], strides = [1, 1]} : vector<8x512xf32> to vector<8x128xf32>
    %16 = arith.negf %15 : vector<8x128xf32>
    %17 = math.exp %16 : vector<8x128xf32>
    %cst_12 = arith.constant 1.000000e+00 : f32
    %18 = vector.broadcast %cst_12 : f32 to vector<8x128xf32>
    %19 = arith.addf %18, %17 : vector<8x128xf32>
    %20 = arith.divf %18, %19 : vector<8x128xf32>
    %21 = vector.extract_strided_slice %14 {offsets = [0, 128], sizes = [8, 128], strides = [1, 1]} : vector<8x512xf32> to vector<8x128xf32>
    %22 = arith.negf %21 : vector<8x128xf32>
    %23 = math.exp %22 : vector<8x128xf32>
    %cst_13 = arith.constant 1.000000e+00 : f32
    %24 = vector.broadcast %cst_13 : f32 to vector<8x128xf32>
    %25 = arith.addf %24, %23 : vector<8x128xf32>
    %26 = arith.divf %24, %25 : vector<8x128xf32>
    %27 = vector.extract_strided_slice %14 {offsets = [0, 256], sizes = [8, 128], strides = [1, 1]} : vector<8x512xf32> to vector<8x128xf32>
    %28 = math.tanh %27 : vector<8x128xf32>
    %29 = vector.extract_strided_slice %14 {offsets = [0, 384], sizes = [8, 128], strides = [1, 1]} : vector<8x512xf32> to vector<8x128xf32>
    %30 = arith.negf %29 : vector<8x128xf32>
    %31 = math.exp %30 : vector<8x128xf32>
    %cst_14 = arith.constant 1.000000e+00 : f32
    %32 = vector.broadcast %cst_14 : f32 to vector<8x128xf32>
    %33 = arith.addf %32, %31 : vector<8x128xf32>
    %34 = arith.divf %32, %33 : vector<8x128xf32>
    %35 = arith.mulf %26, %0 : vector<8x128xf32>
    %36 = arith.mulf %20, %28 : vector<8x128xf32>
    %37 = arith.addf %35, %36 : vector<8x128xf32>
    %38 = math.tanh %37 : vector<8x128xf32>
    %39 = arith.mulf %34, %38 : vector<8x128xf32>
    %40 = arith.index_cast %9 : i32 to index
    %c0_15 = arith.constant 0 : index
    %41 = vector.load %arg11[%40, %c0_15] : memref<64x128xf32, #tpu.memory_space<vmem>>, vector<8x128xf32>
    tpu.vector_store %arg11[%40, %c0_15], %39 {strides = array<i32>} : memref<64x128xf32, #tpu.memory_space<vmem>>, vector<8x128xf32>,
    %c1_i32 = arith.constant 1 : i32
    %c8_i32_16 = arith.constant 8 : i32
    %42 = arith.muli %c1_i32, %c8_i32_16 : i32
    %43 = tpu.assume_multiple %42, 8 : i32
    %44 = arith.index_cast %43 : i32 to index
    %c0_17 = arith.constant 0 : index
    %45 = vector.load %arg10[%44, %c0_17] : memref<64x512xf32, #tpu.memory_space<vmem>>, vector<8x512xf32>
    %c0_18 = arith.constant 0 : index
    %c0_19 = arith.constant 0 : index
    %46 = vector.load %arg2[%c0_18, %c0_19] : memref<128x512xf32, #tpu.memory_space<vmem>>, vector<128x512xf32>
    %cst_20 = arith.constant dense<0.000000e+00> : vector<8x512xf32>
    %47 = tpu.matmul %39, %46, %cst_20 {dimension_numbers = #tpu.dot_dimension_numbers<[1], [0], [0], [1], [0, 0, 1, 1], [], []>} : vector<8x128xf32>, vector<128x512xf32>, vector<8x512xf32> -> vector<8x512xf32>
    %48 = arith.addf %45, %47 : vector<8x512xf32>
    %49 = vector.extract_strided_slice %48 {offsets = [0, 0], sizes = [8, 128], strides = [1, 1]} : vector<8x512xf32> to vector<8x128xf32>
    %50 = arith.negf %49 : vector<8x128xf32>
    %51 = math.exp %50 : vector<8x128xf32>
    %cst_21 = arith.constant 1.000000e+00 : f32
    %52 = vector.broadcast %cst_21 : f32 to vector<8x128xf32>
    %53 = arith.addf %52, %51 : vector<8x128xf32>
    %54 = arith.divf %52, %53 : vector<8x128xf32>
    %55 = vector.extract_strided_slice %48 {offsets = [0, 128], sizes = [8, 128], strides = [1, 1]} : vector<8x512xf32> to vector<8x128xf32>
    %56 = arith.negf %55 : vector<8x128xf32>
    %57 = math.exp %56 : vector<8x128xf32>
    %cst_22 = arith.constant 1.000000e+00 : f32
    %58 = vector.broadcast %cst_22 : f32 to vector<8x128xf32>
    %59 = arith.addf %58, %57 : vector<8x128xf32>
    %60 = arith.divf %58, %59 : vector<8x128xf32>
    %61 = vector.extract_strided_slice %48 {offsets = [0, 256], sizes = [8, 128], strides = [1, 1]} : vector<8x512xf32> to vector<8x128xf32>
    %62 = math.tanh %61 : vector<8x128xf32>
    %63 = vector.extract_strided_slice %48 {offsets = [0, 384], sizes = [8, 128], strides = [1, 1]} : vector<8x512xf32> to vector<8x128xf32>
    %64 = arith.negf %63 : vector<8x128xf32>
    %65 = math.exp %64 : vector<8x128xf32>
    %cst_23 = arith.constant 1.000000e+00 : f32
    %66 = vector.broadcast %cst_23 : f32 to vector<8x128xf32>
    %67 = arith.addf %66, %65 : vector<8x128xf32>
    %68 = arith.divf %66, %67 : vector<8x128xf32>
    %69 = arith.mulf %60, %37 : vector<8x128xf32>
    %70 = arith.mulf %54, %62 : vector<8x128xf32>
    %71 = arith.addf %69, %70 : vector<8x128xf32>
    %72 = math.tanh %71 : vector<8x128xf32>
    %73 = arith.mulf %68, %72 : vector<8x128xf32>
    %74 = arith.index_cast %43 : i32 to index
    %c0_24 = arith.constant 0 : index
    %75 = vector.load %arg11[%74, %c0_24] : memref<64x128xf32, #tpu.memory_space<vmem>>, vector<8x128xf32>
    tpu.vector_store %arg11[%74, %c0_24], %73 {strides = array<i32>} : memref<64x128xf32, #tpu.memory_space<vmem>>, vector<8x128xf32>,
    %c2_i32 = arith.constant 2 : i32
    %c8_i32_25 = arith.constant 8 : i32
    %76 = arith.muli %c2_i32, %c8_i32_25 : i32
    %77 = tpu.assume_multiple %76, 8 : i32
    %78 = arith.index_cast %77 : i32 to index
    %c0_26 = arith.constant 0 : index
    %79 = vector.load %arg10[%78, %c0_26] : memref<64x512xf32, #tpu.memory_space<vmem>>, vector<8x512xf32>
    %c0_27 = arith.constant 0 : index
    %c0_28 = arith.constant 0 : index
    %80 = vector.load %arg2[%c0_27, %c0_28] : memref<128x512xf32, #tpu.memory_space<vmem>>, vector<128x512xf32>
    %cst_29 = arith.constant dense<0.000000e+00> : vector<8x512xf32>
    %81 = tpu.matmul %73, %80, %cst_29 {dimension_numbers = #tpu.dot_dimension_numbers<[1], [0], [0], [1], [0, 0, 1, 1], [], []>} : vector<8x128xf32>, vector<128x512xf32>, vector<8x512xf32> -> vector<8x512xf32>
    %82 = arith.addf %79, %81 : vector<8x512xf32>
    %83 = vector.extract_strided_slice %82 {offsets = [0, 0], sizes = [8, 128], strides = [1, 1]} : vector<8x512xf32> to vector<8x128xf32>
    %84 = arith.negf %83 : vector<8x128xf32>
    %85 = math.exp %84 : vector<8x128xf32>
    %cst_30 = arith.constant 1.000000e+00 : f32
    %86 = vector.broadcast %cst_30 : f32 to vector<8x128xf32>
    %87 = arith.addf %86, %85 : vector<8x128xf32>
    %88 = arith.divf %86, %87 : vector<8x128xf32>
    %89 = vector.extract_strided_slice %82 {offsets = [0, 128], sizes = [8, 128], strides = [1, 1]} : vector<8x512xf32> to vector<8x128xf32>
    %90 = arith.negf %89 : vector<8x128xf32>
    %91 = math.exp %90 : vector<8x128xf32>
    %cst_31 = arith.constant 1.000000e+00 : f32
    %92 = vector.broadcast %cst_31 : f32 to vector<8x128xf32>
    %93 = arith.addf %92, %91 : vector<8x128xf32>
    %94 = arith.divf %92, %93 : vector<8x128xf32>
    %95 = vector.extract_strided_slice %82 {offsets = [0, 256], sizes = [8, 128], strides = [1, 1]} : vector<8x512xf32> to vector<8x128xf32>
    %96 = math.tanh %95 : vector<8x128xf32>
    %97 = vector.extract_strided_slice %82 {offsets = [0, 384], sizes = [8, 128], strides = [1, 1]} : vector<8x512xf32> to vector<8x128xf32>
    %98 = arith.negf %97 : vector<8x128xf32>
    %99 = math.exp %98 : vector<8x128xf32>
    %cst_32 = arith.constant 1.000000e+00 : f32
    %100 = vector.broadcast %cst_32 : f32 to vector<8x128xf32>
    %101 = arith.addf %100, %99 : vector<8x128xf32>
    %102 = arith.divf %100, %101 : vector<8x128xf32>
    %103 = arith.mulf %94, %71 : vector<8x128xf32>
    %104 = arith.mulf %88, %96 : vector<8x128xf32>
    %105 = arith.addf %103, %104 : vector<8x128xf32>
    %106 = math.tanh %105 : vector<8x128xf32>
    %107 = arith.mulf %102, %106 : vector<8x128xf32>
    %108 = arith.index_cast %77 : i32 to index
    %c0_33 = arith.constant 0 : index
    %109 = vector.load %arg11[%108, %c0_33] : memref<64x128xf32, #tpu.memory_space<vmem>>, vector<8x128xf32>
    tpu.vector_store %arg11[%108, %c0_33], %107 {strides = array<i32>} : memref<64x128xf32, #tpu.memory_space<vmem>>, vector<8x128xf32>,
    %c3_i32 = arith.constant 3 : i32
    %c8_i32_34 = arith.constant 8 : i32
    %110 = arith.muli %c3_i32, %c8_i32_34 : i32
    %111 = tpu.assume_multiple %110, 8 : i32
    %112 = arith.index_cast %111 : i32 to index
    %c0_35 = arith.constant 0 : index
    %113 = vector.load %arg10[%112, %c0_35] : memref<64x512xf32, #tpu.memory_space<vmem>>, vector<8x512xf32>
    %c0_36 = arith.constant 0 : index
    %c0_37 = arith.constant 0 : index
    %114 = vector.load %arg2[%c0_36, %c0_37] : memref<128x512xf32, #tpu.memory_space<vmem>>, vector<128x512xf32>
    %cst_38 = arith.constant dense<0.000000e+00> : vector<8x512xf32>
    %115 = tpu.matmul %107, %114, %cst_38 {dimension_numbers = #tpu.dot_dimension_numbers<[1], [0], [0], [1], [0, 0, 1, 1], [], []>} : vector<8x128xf32>, vector<128x512xf32>, vector<8x512xf32> -> vector<8x512xf32>
    %116 = arith.addf %113, %115 : vector<8x512xf32>
    %117 = vector.extract_strided_slice %116 {offsets = [0, 0], sizes = [8, 128], strides = [1, 1]} : vector<8x512xf32> to vector<8x128xf32>
    %118 = arith.negf %117 : vector<8x128xf32>
    %119 = math.exp %118 : vector<8x128xf32>
    %cst_39 = arith.constant 1.000000e+00 : f32
    %120 = vector.broadcast %cst_39 : f32 to vector<8x128xf32>
    %121 = arith.addf %120, %119 : vector<8x128xf32>
    %122 = arith.divf %120, %121 : vector<8x128xf32>
    %123 = vector.extract_strided_slice %116 {offsets = [0, 128], sizes = [8, 128], strides = [1, 1]} : vector<8x512xf32> to vector<8x128xf32>
    %124 = arith.negf %123 : vector<8x128xf32>
    %125 = math.exp %124 : vector<8x128xf32>
    %cst_40 = arith.constant 1.000000e+00 : f32
    %126 = vector.broadcast %cst_40 : f32 to vector<8x128xf32>
    %127 = arith.addf %126, %125 : vector<8x128xf32>
    %128 = arith.divf %126, %127 : vector<8x128xf32>
    %129 = vector.extract_strided_slice %116 {offsets = [0, 256], sizes = [8, 128], strides = [1, 1]} : vector<8x512xf32> to vector<8x128xf32>
    %130 = math.tanh %129 : vector<8x128xf32>
    %131 = vector.extract_strided_slice %116 {offsets = [0, 384], sizes = [8, 128], strides = [1, 1]} : vector<8x512xf32> to vector<8x128xf32>
    %132 = arith.negf %131 : vector<8x128xf32>
    %133 = math.exp %132 : vector<8x128xf32>
    %cst_41 = arith.constant 1.000000e+00 : f32
    %134 = vector.broadcast %cst_41 : f32 to vector<8x128xf32>
    %135 = arith.addf %134, %133 : vector<8x128xf32>
    %136 = arith.divf %134, %135 : vector<8x128xf32>
    %137 = arith.mulf %128, %105 : vector<8x128xf32>
    %138 = arith.mulf %122, %130 : vector<8x128xf32>
    %139 = arith.addf %137, %138 : vector<8x128xf32>
    %140 = math.tanh %139 : vector<8x128xf32>
    %141 = arith.mulf %136, %140 : vector<8x128xf32>
    %142 = arith.index_cast %111 : i32 to index
    %c0_42 = arith.constant 0 : index
    %143 = vector.load %arg11[%142, %c0_42] : memref<64x128xf32, #tpu.memory_space<vmem>>, vector<8x128xf32>
    tpu.vector_store %arg11[%142, %c0_42], %141 {strides = array<i32>} : memref<64x128xf32, #tpu.memory_space<vmem>>, vector<8x128xf32>,
    %c4_i32 = arith.constant 4 : i32
    %c8_i32_43 = arith.constant 8 : i32
    %144 = arith.muli %c4_i32, %c8_i32_43 : i32
    %145 = tpu.assume_multiple %144, 8 : i32
    %146 = arith.index_cast %145 : i32 to index
    %c0_44 = arith.constant 0 : index
    %147 = vector.load %arg10[%146, %c0_44] : memref<64x512xf32, #tpu.memory_space<vmem>>, vector<8x512xf32>
    %c0_45 = arith.constant 0 : index
    %c0_46 = arith.constant 0 : index
    %148 = vector.load %arg2[%c0_45, %c0_46] : memref<128x512xf32, #tpu.memory_space<vmem>>, vector<128x512xf32>
    %cst_47 = arith.constant dense<0.000000e+00> : vector<8x512xf32>
    %149 = tpu.matmul %141, %148, %cst_47 {dimension_numbers = #tpu.dot_dimension_numbers<[1], [0], [0], [1], [0, 0, 1, 1], [], []>} : vector<8x128xf32>, vector<128x512xf32>, vector<8x512xf32> -> vector<8x512xf32>
    %150 = arith.addf %147, %149 : vector<8x512xf32>
    %151 = vector.extract_strided_slice %150 {offsets = [0, 0], sizes = [8, 128], strides = [1, 1]} : vector<8x512xf32> to vector<8x128xf32>
    %152 = arith.negf %151 : vector<8x128xf32>
    %153 = math.exp %152 : vector<8x128xf32>
    %cst_48 = arith.constant 1.000000e+00 : f32
    %154 = vector.broadcast %cst_48 : f32 to vector<8x128xf32>
    %155 = arith.addf %154, %153 : vector<8x128xf32>
    %156 = arith.divf %154, %155 : vector<8x128xf32>
    %157 = vector.extract_strided_slice %150 {offsets = [0, 128], sizes = [8, 128], strides = [1, 1]} : vector<8x512xf32> to vector<8x128xf32>
    %158 = arith.negf %157 : vector<8x128xf32>
    %159 = math.exp %158 : vector<8x128xf32>
    %cst_49 = arith.constant 1.000000e+00 : f32
    %160 = vector.broadcast %cst_49 : f32 to vector<8x128xf32>
    %161 = arith.addf %160, %159 : vector<8x128xf32>
    %162 = arith.divf %160, %161 : vector<8x128xf32>
    %163 = vector.extract_strided_slice %150 {offsets = [0, 256], sizes = [8, 128], strides = [1, 1]} : vector<8x512xf32> to vector<8x128xf32>
    %164 = math.tanh %163 : vector<8x128xf32>
    %165 = vector.extract_strided_slice %150 {offsets = [0, 384], sizes = [8, 128], strides = [1, 1]} : vector<8x512xf32> to vector<8x128xf32>
    %166 = arith.negf %165 : vector<8x128xf32>
    %167 = math.exp %166 : vector<8x128xf32>
    %cst_50 = arith.constant 1.000000e+00 : f32
    %168 = vector.broadcast %cst_50 : f32 to vector<8x128xf32>
    %169 = arith.addf %168, %167 : vector<8x128xf32>
    %170 = arith.divf %168, %169 : vector<8x128xf32>
    %171 = arith.mulf %162, %139 : vector<8x128xf32>
    %172 = arith.mulf %156, %164 : vector<8x128xf32>
    %173 = arith.addf %171, %172 : vector<8x128xf32>
    %174 = math.tanh %173 : vector<8x128xf32>
    %175 = arith.mulf %170, %174 : vector<8x128xf32>
    %176 = arith.index_cast %145 : i32 to index
    %c0_51 = arith.constant 0 : index
    %177 = vector.load %arg11[%176, %c0_51] : memref<64x128xf32, #tpu.memory_space<vmem>>, vector<8x128xf32>
    tpu.vector_store %arg11[%176, %c0_51], %175 {strides = array<i32>} : memref<64x128xf32, #tpu.memory_space<vmem>>, vector<8x128xf32>,
    %c5_i32 = arith.constant 5 : i32
    %c8_i32_52 = arith.constant 8 : i32
    %178 = arith.muli %c5_i32, %c8_i32_52 : i32
    %179 = tpu.assume_multiple %178, 8 : i32
    %180 = arith.index_cast %179 : i32 to index
    %c0_53 = arith.constant 0 : index
    %181 = vector.load %arg10[%180, %c0_53] : memref<64x512xf32, #tpu.memory_space<vmem>>, vector<8x512xf32>
    %c0_54 = arith.constant 0 : index
    %c0_55 = arith.constant 0 : index
    %182 = vector.load %arg2[%c0_54, %c0_55] : memref<128x512xf32, #tpu.memory_space<vmem>>, vector<128x512xf32>
    %cst_56 = arith.constant dense<0.000000e+00> : vector<8x512xf32>
    %183 = tpu.matmul %175, %182, %cst_56 {dimension_numbers = #tpu.dot_dimension_numbers<[1], [0], [0], [1], [0, 0, 1, 1], [], []>} : vector<8x128xf32>, vector<128x512xf32>, vector<8x512xf32> -> vector<8x512xf32>
    %184 = arith.addf %181, %183 : vector<8x512xf32>
    %185 = vector.extract_strided_slice %184 {offsets = [0, 0], sizes = [8, 128], strides = [1, 1]} : vector<8x512xf32> to vector<8x128xf32>
    %186 = arith.negf %185 : vector<8x128xf32>
    %187 = math.exp %186 : vector<8x128xf32>
    %cst_57 = arith.constant 1.000000e+00 : f32
    %188 = vector.broadcast %cst_57 : f32 to vector<8x128xf32>
    %189 = arith.addf %188, %187 : vector<8x128xf32>
    %190 = arith.divf %188, %189 : vector<8x128xf32>
    %191 = vector.extract_strided_slice %184 {offsets = [0, 128], sizes = [8, 128], strides = [1, 1]} : vector<8x512xf32> to vector<8x128xf32>
    %192 = arith.negf %191 : vector<8x128xf32>
    %193 = math.exp %192 : vector<8x128xf32>
    %cst_58 = arith.constant 1.000000e+00 : f32
    %194 = vector.broadcast %cst_58 : f32 to vector<8x128xf32>
    %195 = arith.addf %194, %193 : vector<8x128xf32>
    %196 = arith.divf %194, %195 : vector<8x128xf32>
    %197 = vector.extract_strided_slice %184 {offsets = [0, 256], sizes = [8, 128], strides = [1, 1]} : vector<8x512xf32> to vector<8x128xf32>
    %198 = math.tanh %197 : vector<8x128xf32>
    %199 = vector.extract_strided_slice %184 {offsets = [0, 384], sizes = [8, 128], strides = [1, 1]} : vector<8x512xf32> to vector<8x128xf32>
    %200 = arith.negf %199 : vector<8x128xf32>
    %201 = math.exp %200 : vector<8x128xf32>
    %cst_59 = arith.constant 1.000000e+00 : f32
    %202 = vector.broadcast %cst_59 : f32 to vector<8x128xf32>
    %203 = arith.addf %202, %201 : vector<8x128xf32>
    %204 = arith.divf %202, %203 : vector<8x128xf32>
    %205 = arith.mulf %196, %173 : vector<8x128xf32>
    %206 = arith.mulf %190, %198 : vector<8x128xf32>
    %207 = arith.addf %205, %206 : vector<8x128xf32>
    %208 = math.tanh %207 : vector<8x128xf32>
    %209 = arith.mulf %204, %208 : vector<8x128xf32>
    %210 = arith.index_cast %179 : i32 to index
    %c0_60 = arith.constant 0 : index
    %211 = vector.load %arg11[%210, %c0_60] : memref<64x128xf32, #tpu.memory_space<vmem>>, vector<8x128xf32>
    tpu.vector_store %arg11[%210, %c0_60], %209 {strides = array<i32>} : memref<64x128xf32, #tpu.memory_space<vmem>>, vector<8x128xf32>,
    %c6_i32 = arith.constant 6 : i32
    %c8_i32_61 = arith.constant 8 : i32
    %212 = arith.muli %c6_i32, %c8_i32_61 : i32
    %213 = tpu.assume_multiple %212, 8 : i32
    %214 = arith.index_cast %213 : i32 to index
    %c0_62 = arith.constant 0 : index
    %215 = vector.load %arg10[%214, %c0_62] : memref<64x512xf32, #tpu.memory_space<vmem>>, vector<8x512xf32>
    %c0_63 = arith.constant 0 : index
    %c0_64 = arith.constant 0 : index
    %216 = vector.load %arg2[%c0_63, %c0_64] : memref<128x512xf32, #tpu.memory_space<vmem>>, vector<128x512xf32>
    %cst_65 = arith.constant dense<0.000000e+00> : vector<8x512xf32>
    %217 = tpu.matmul %209, %216, %cst_65 {dimension_numbers = #tpu.dot_dimension_numbers<[1], [0], [0], [1], [0, 0, 1, 1], [], []>} : vector<8x128xf32>, vector<128x512xf32>, vector<8x512xf32> -> vector<8x512xf32>
    %218 = arith.addf %215, %217 : vector<8x512xf32>
    %219 = vector.extract_strided_slice %218 {offsets = [0, 0], sizes = [8, 128], strides = [1, 1]} : vector<8x512xf32> to vector<8x128xf32>
    %220 = arith.negf %219 : vector<8x128xf32>
    %221 = math.exp %220 : vector<8x128xf32>
    %cst_66 = arith.constant 1.000000e+00 : f32
    %222 = vector.broadcast %cst_66 : f32 to vector<8x128xf32>
    %223 = arith.addf %222, %221 : vector<8x128xf32>
    %224 = arith.divf %222, %223 : vector<8x128xf32>
    %225 = vector.extract_strided_slice %218 {offsets = [0, 128], sizes = [8, 128], strides = [1, 1]} : vector<8x512xf32> to vector<8x128xf32>
    %226 = arith.negf %225 : vector<8x128xf32>
    %227 = math.exp %226 : vector<8x128xf32>
    %cst_67 = arith.constant 1.000000e+00 : f32
    %228 = vector.broadcast %cst_67 : f32 to vector<8x128xf32>
    %229 = arith.addf %228, %227 : vector<8x128xf32>
    %230 = arith.divf %228, %229 : vector<8x128xf32>
    %231 = vector.extract_strided_slice %218 {offsets = [0, 256], sizes = [8, 128], strides = [1, 1]} : vector<8x512xf32> to vector<8x128xf32>
    %232 = math.tanh %231 : vector<8x128xf32>
    %233 = vector.extract_strided_slice %218 {offsets = [0, 384], sizes = [8, 128], strides = [1, 1]} : vector<8x512xf32> to vector<8x128xf32>
    %234 = arith.negf %233 : vector<8x128xf32>
    %235 = math.exp %234 : vector<8x128xf32>
    %cst_68 = arith.constant 1.000000e+00 : f32
    %236 = vector.broadcast %cst_68 : f32 to vector<8x128xf32>
    %237 = arith.addf %236, %235 : vector<8x128xf32>
    %238 = arith.divf %236, %237 : vector<8x128xf32>
    %239 = arith.mulf %230, %207 : vector<8x128xf32>
    %240 = arith.mulf %224, %232 : vector<8x128xf32>
    %241 = arith.addf %239, %240 : vector<8x128xf32>
    %242 = math.tanh %241 : vector<8x128xf32>
    %243 = arith.mulf %238, %242 : vector<8x128xf32>
    %244 = arith.index_cast %213 : i32 to index
    %c0_69 = arith.constant 0 : index
    %245 = vector.load %arg11[%244, %c0_69] : memref<64x128xf32, #tpu.memory_space<vmem>>, vector<8x128xf32>
    tpu.vector_store %arg11[%244, %c0_69], %243 {strides = array<i32>} : memref<64x128xf32, #tpu.memory_space<vmem>>, vector<8x128xf32>,
    %c7_i32 = arith.constant 7 : i32
    %c8_i32_70 = arith.constant 8 : i32
    %246 = arith.muli %c7_i32, %c8_i32_70 : i32
    %247 = tpu.assume_multiple %246, 8 : i32
    %248 = arith.index_cast %247 : i32 to index
    %c0_71 = arith.constant 0 : index
    %249 = vector.load %arg10[%248, %c0_71] : memref<64x512xf32, #tpu.memory_space<vmem>>, vector<8x512xf32>
    %c0_72 = arith.constant 0 : index
    %c0_73 = arith.constant 0 : index
    %250 = vector.load %arg2[%c0_72, %c0_73] : memref<128x512xf32, #tpu.memory_space<vmem>>, vector<128x512xf32>
    %cst_74 = arith.constant dense<0.000000e+00> : vector<8x512xf32>
    %251 = tpu.matmul %243, %250, %cst_74 {dimension_numbers = #tpu.dot_dimension_numbers<[1], [0], [0], [1], [0, 0, 1, 1], [], []>} : vector<8x128xf32>, vector<128x512xf32>, vector<8x512xf32> -> vector<8x512xf32>
    %252 = arith.addf %249, %251 : vector<8x512xf32>
    %253 = vector.extract_strided_slice %252 {offsets = [0, 0], sizes = [8, 128], strides = [1, 1]} : vector<8x512xf32> to vector<8x128xf32>
    %254 = arith.negf %253 : vector<8x128xf32>
    %255 = math.exp %254 : vector<8x128xf32>
    %cst_75 = arith.constant 1.000000e+00 : f32
    %256 = vector.broadcast %cst_75 : f32 to vector<8x128xf32>
    %257 = arith.addf %256, %255 : vector<8x128xf32>
    %258 = arith.divf %256, %257 : vector<8x128xf32>
    %259 = vector.extract_strided_slice %252 {offsets = [0, 128], sizes = [8, 128], strides = [1, 1]} : vector<8x512xf32> to vector<8x128xf32>
    %260 = arith.negf %259 : vector<8x128xf32>
    %261 = math.exp %260 : vector<8x128xf32>
    %cst_76 = arith.constant 1.000000e+00 : f32
    %262 = vector.broadcast %cst_76 : f32 to vector<8x128xf32>
    %263 = arith.addf %262, %261 : vector<8x128xf32>
    %264 = arith.divf %262, %263 : vector<8x128xf32>
    %265 = vector.extract_strided_slice %252 {offsets = [0, 256], sizes = [8, 128], strides = [1, 1]} : vector<8x512xf32> to vector<8x128xf32>
    %266 = math.tanh %265 : vector<8x128xf32>
    %267 = vector.extract_strided_slice %252 {offsets = [0, 384], sizes = [8, 128], strides = [1, 1]} : vector<8x512xf32> to vector<8x128xf32>
    %268 = arith.negf %267 : vector<8x128xf32>
    %269 = math.exp %268 : vector<8x128xf32>
    %cst_77 = arith.constant 1.000000e+00 : f32
    %270 = vector.broadcast %cst_77 : f32 to vector<8x128xf32>
    %271 = arith.addf %270, %269 : vector<8x128xf32>
    %272 = arith.divf %270, %271 : vector<8x128xf32>
    %273 = arith.mulf %264, %241 : vector<8x128xf32>
    %274 = arith.mulf %258, %266 : vector<8x128xf32>
    %275 = arith.addf %273, %274 : vector<8x128xf32>
    %276 = math.tanh %275 : vector<8x128xf32>
    %277 = arith.mulf %272, %276 : vector<8x128xf32>
    %278 = arith.index_cast %247 : i32 to index
    %c0_78 = arith.constant 0 : index
    %279 = vector.load %arg11[%278, %c0_78] : memref<64x128xf32, #tpu.memory_space<vmem>>, vector<8x128xf32>
    tpu.vector_store %arg11[%278, %c0_78], %277 {strides = array<i32>} : memref<64x128xf32, #tpu.memory_space<vmem>>, vector<8x128xf32>,
    %c8_i32_79 = arith.constant 8 : i32
    %c0_80 = arith.constant 0 : index
    %c0_81 = arith.constant 0 : index
    %280 = vector.load %arg11[%c0_80, %c0_81] : memref<64x128xf32, #tpu.memory_space<vmem>>, vector<64x128xf32>
    %c0_82 = arith.constant 0 : index
    %c0_83 = arith.constant 0 : index
    %281 = vector.load %arg4[%c0_82, %c0_83] : memref<128x512xf32, #tpu.memory_space<vmem>>, vector<128x512xf32>
    %cst_84 = arith.constant dense<0.000000e+00> : vector<64x512xf32>
    %282 = tpu.matmul %280, %281, %cst_84 {dimension_numbers = #tpu.dot_dimension_numbers<[1], [0], [0], [1], [0, 0, 1, 1], [], []>} : vector<64x128xf32>, vector<128x512xf32>, vector<64x512xf32> -> vector<64x512xf32>
    %c0_85 = arith.constant 0 : index
    %c0_86 = arith.constant 0 : index
    %283 = vector.load %arg6[%c0_85, %c0_86] : memref<1x512xf32, #tpu.memory_space<vmem>>, vector<1x512xf32>
    %284 = vector.broadcast %283 : vector<1x512xf32> to vector<64x512xf32>
    %285 = arith.addf %282, %284 : vector<64x512xf32>
    %c0_87 = arith.constant 0 : index
    %c0_88 = arith.constant 0 : index
    %286 = vector.load %arg12[%c0_87, %c0_88] : memref<64x512xf32, #tpu.memory_space<vmem>>, vector<64x512xf32>
    tpu.vector_store %arg12[%c0_87, %c0_88], %285 {strides = array<i32>} : memref<64x512xf32, #tpu.memory_space<vmem>>, vector<64x512xf32>,
    %c0_i32_89 = arith.constant 0 : i32
    %c8_i32_90 = arith.constant 8 : i32
    %287 = arith.muli %c0_i32_89, %c8_i32_90 : i32
    %288 = tpu.assume_multiple %287, 8 : i32
    %289 = arith.index_cast %288 : i32 to index
    %c0_91 = arith.constant 0 : index
    %290 = vector.load %arg12[%289, %c0_91] : memref<64x512xf32, #tpu.memory_space<vmem>>, vector<8x512xf32>
    %c0_92 = arith.constant 0 : index
    %c0_93 = arith.constant 0 : index
    %291 = vector.load %arg5[%c0_92, %c0_93] : memref<128x512xf32, #tpu.memory_space<vmem>>, vector<128x512xf32>
    %cst_94 = arith.constant dense<0.000000e+00> : vector<8x512xf32>
    %292 = tpu.matmul %0, %291, %cst_94 {dimension_numbers = #tpu.dot_dimension_numbers<[1], [0], [0], [1], [0, 0, 1, 1], [], []>} : vector<8x128xf32>, vector<128x512xf32>, vector<8x512xf32> -> vector<8x512xf32>
    %293 = arith.addf %290, %292 : vector<8x512xf32>
    %294 = vector.extract_strided_slice %293 {offsets = [0, 0], sizes = [8, 128], strides = [1, 1]} : vector<8x512xf32> to vector<8x128xf32>
    %295 = arith.negf %294 : vector<8x128xf32>
    %296 = math.exp %295 : vector<8x128xf32>
    %cst_95 = arith.constant 1.000000e+00 : f32
    %297 = vector.broadcast %cst_95 : f32 to vector<8x128xf32>
    %298 = arith.addf %297, %296 : vector<8x128xf32>
    %299 = arith.divf %297, %298 : vector<8x128xf32>
    %300 = vector.extract_strided_slice %293 {offsets = [0, 128], sizes = [8, 128], strides = [1, 1]} : vector<8x512xf32> to vector<8x128xf32>
    %301 = arith.negf %300 : vector<8x128xf32>
    %302 = math.exp %301 : vector<8x128xf32>
    %cst_96 = arith.constant 1.000000e+00 : f32
    %303 = vector.broadcast %cst_96 : f32 to vector<8x128xf32>
    %304 = arith.addf %303, %302 : vector<8x128xf32>
    %305 = arith.divf %303, %304 : vector<8x128xf32>
    %306 = vector.extract_strided_slice %293 {offsets = [0, 256], sizes = [8, 128], strides = [1, 1]} : vector<8x512xf32> to vector<8x128xf32>
    %307 = math.tanh %306 : vector<8x128xf32>
    %308 = vector.extract_strided_slice %293 {offsets = [0, 384], sizes = [8, 128], strides = [1, 1]} : vector<8x512xf32> to vector<8x128xf32>
    %309 = arith.negf %308 : vector<8x128xf32>
    %310 = math.exp %309 : vector<8x128xf32>
    %cst_97 = arith.constant 1.000000e+00 : f32
    %311 = vector.broadcast %cst_97 : f32 to vector<8x128xf32>
    %312 = arith.addf %311, %310 : vector<8x128xf32>
    %313 = arith.divf %311, %312 : vector<8x128xf32>
    %314 = arith.mulf %305, %0 : vector<8x128xf32>
    %315 = arith.mulf %299, %307 : vector<8x128xf32>
    %316 = arith.addf %314, %315 : vector<8x128xf32>
    %317 = math.tanh %316 : vector<8x128xf32>
    %318 = arith.mulf %313, %317 : vector<8x128xf32>
    %319 = arith.index_cast %288 : i32 to index
    %c0_98 = arith.constant 0 : index
    %320 = vector.load %arg13[%319, %c0_98] : memref<64x128xf32, #tpu.memory_space<vmem>>, vector<8x128xf32>
    tpu.vector_store %arg13[%319, %c0_98], %318 {strides = array<i32>} : memref<64x128xf32, #tpu.memory_space<vmem>>, vector<8x128xf32>,
    %c1_i32_99 = arith.constant 1 : i32
    %c8_i32_100 = arith.constant 8 : i32
    %321 = arith.muli %c1_i32_99, %c8_i32_100 : i32
    %322 = tpu.assume_multiple %321, 8 : i32
    %323 = arith.index_cast %322 : i32 to index
    %c0_101 = arith.constant 0 : index
    %324 = vector.load %arg12[%323, %c0_101] : memref<64x512xf32, #tpu.memory_space<vmem>>, vector<8x512xf32>
    %c0_102 = arith.constant 0 : index
    %c0_103 = arith.constant 0 : index
    %325 = vector.load %arg5[%c0_102, %c0_103] : memref<128x512xf32, #tpu.memory_space<vmem>>, vector<128x512xf32>
    %cst_104 = arith.constant dense<0.000000e+00> : vector<8x512xf32>
    %326 = tpu.matmul %318, %325, %cst_104 {dimension_numbers = #tpu.dot_dimension_numbers<[1], [0], [0], [1], [0, 0, 1, 1], [], []>} : vector<8x128xf32>, vector<128x512xf32>, vector<8x512xf32> -> vector<8x512xf32>
    %327 = arith.addf %324, %326 : vector<8x512xf32>
    %328 = vector.extract_strided_slice %327 {offsets = [0, 0], sizes = [8, 128], strides = [1, 1]} : vector<8x512xf32> to vector<8x128xf32>
    %329 = arith.negf %328 : vector<8x128xf32>
    %330 = math.exp %329 : vector<8x128xf32>
    %cst_105 = arith.constant 1.000000e+00 : f32
    %331 = vector.broadcast %cst_105 : f32 to vector<8x128xf32>
    %332 = arith.addf %331, %330 : vector<8x128xf32>
    %333 = arith.divf %331, %332 : vector<8x128xf32>
    %334 = vector.extract_strided_slice %327 {offsets = [0, 128], sizes = [8, 128], strides = [1, 1]} : vector<8x512xf32> to vector<8x128xf32>
    %335 = arith.negf %334 : vector<8x128xf32>
    %336 = math.exp %335 : vector<8x128xf32>
    %cst_106 = arith.constant 1.000000e+00 : f32
    %337 = vector.broadcast %cst_106 : f32 to vector<8x128xf32>
    %338 = arith.addf %337, %336 : vector<8x128xf32>
    %339 = arith.divf %337, %338 : vector<8x128xf32>
    %340 = vector.extract_strided_slice %327 {offsets = [0, 256], sizes = [8, 128], strides = [1, 1]} : vector<8x512xf32> to vector<8x128xf32>
    %341 = math.tanh %340 : vector<8x128xf32>
    %342 = vector.extract_strided_slice %327 {offsets = [0, 384], sizes = [8, 128], strides = [1, 1]} : vector<8x512xf32> to vector<8x128xf32>
    %343 = arith.negf %342 : vector<8x128xf32>
    %344 = math.exp %343 : vector<8x128xf32>
    %cst_107 = arith.constant 1.000000e+00 : f32
    %345 = vector.broadcast %cst_107 : f32 to vector<8x128xf32>
    %346 = arith.addf %345, %344 : vector<8x128xf32>
    %347 = arith.divf %345, %346 : vector<8x128xf32>
    %348 = arith.mulf %339, %316 : vector<8x128xf32>
    %349 = arith.mulf %333, %341 : vector<8x128xf32>
    %350 = arith.addf %348, %349 : vector<8x128xf32>
    %351 = math.tanh %350 : vector<8x128xf32>
    %352 = arith.mulf %347, %351 : vector<8x128xf32>
    %353 = arith.index_cast %322 : i32 to index
    %c0_108 = arith.constant 0 : index
    %354 = vector.load %arg13[%353, %c0_108] : memref<64x128xf32, #tpu.memory_space<vmem>>, vector<8x128xf32>
    tpu.vector_store %arg13[%353, %c0_108], %352 {strides = array<i32>} : memref<64x128xf32, #tpu.memory_space<vmem>>, vector<8x128xf32>,
    %c2_i32_109 = arith.constant 2 : i32
    %c8_i32_110 = arith.constant 8 : i32
    %355 = arith.muli %c2_i32_109, %c8_i32_110 : i32
    %356 = tpu.assume_multiple %355, 8 : i32
    %357 = arith.index_cast %356 : i32 to index
    %c0_111 = arith.constant 0 : index
    %358 = vector.load %arg12[%357, %c0_111] : memref<64x512xf32, #tpu.memory_space<vmem>>, vector<8x512xf32>
    %c0_112 = arith.constant 0 : index
    %c0_113 = arith.constant 0 : index
    %359 = vector.load %arg5[%c0_112, %c0_113] : memref<128x512xf32, #tpu.memory_space<vmem>>, vector<128x512xf32>
    %cst_114 = arith.constant dense<0.000000e+00> : vector<8x512xf32>
    %360 = tpu.matmul %352, %359, %cst_114 {dimension_numbers = #tpu.dot_dimension_numbers<[1], [0], [0], [1], [0, 0, 1, 1], [], []>} : vector<8x128xf32>, vector<128x512xf32>, vector<8x512xf32> -> vector<8x512xf32>
    %361 = arith.addf %358, %360 : vector<8x512xf32>
    %362 = vector.extract_strided_slice %361 {offsets = [0, 0], sizes = [8, 128], strides = [1, 1]} : vector<8x512xf32> to vector<8x128xf32>
    %363 = arith.negf %362 : vector<8x128xf32>
    %364 = math.exp %363 : vector<8x128xf32>
    %cst_115 = arith.constant 1.000000e+00 : f32
    %365 = vector.broadcast %cst_115 : f32 to vector<8x128xf32>
    %366 = arith.addf %365, %364 : vector<8x128xf32>
    %367 = arith.divf %365, %366 : vector<8x128xf32>
    %368 = vector.extract_strided_slice %361 {offsets = [0, 128], sizes = [8, 128], strides = [1, 1]} : vector<8x512xf32> to vector<8x128xf32>
    %369 = arith.negf %368 : vector<8x128xf32>
    %370 = math.exp %369 : vector<8x128xf32>
    %cst_116 = arith.constant 1.000000e+00 : f32
    %371 = vector.broadcast %cst_116 : f32 to vector<8x128xf32>
    %372 = arith.addf %371, %370 : vector<8x128xf32>
    %373 = arith.divf %371, %372 : vector<8x128xf32>
    %374 = vector.extract_strided_slice %361 {offsets = [0, 256], sizes = [8, 128], strides = [1, 1]} : vector<8x512xf32> to vector<8x128xf32>
    %375 = math.tanh %374 : vector<8x128xf32>
    %376 = vector.extract_strided_slice %361 {offsets = [0, 384], sizes = [8, 128], strides = [1, 1]} : vector<8x512xf32> to vector<8x128xf32>
    %377 = arith.negf %376 : vector<8x128xf32>
    %378 = math.exp %377 : vector<8x128xf32>
    %cst_117 = arith.constant 1.000000e+00 : f32
    %379 = vector.broadcast %cst_117 : f32 to vector<8x128xf32>
    %380 = arith.addf %379, %378 : vector<8x128xf32>
    %381 = arith.divf %379, %380 : vector<8x128xf32>
    %382 = arith.mulf %373, %350 : vector<8x128xf32>
    %383 = arith.mulf %367, %375 : vector<8x128xf32>
    %384 = arith.addf %382, %383 : vector<8x128xf32>
    %385 = math.tanh %384 : vector<8x128xf32>
    %386 = arith.mulf %381, %385 : vector<8x128xf32>
    %387 = arith.index_cast %356 : i32 to index
    %c0_118 = arith.constant 0 : index
    %388 = vector.load %arg13[%387, %c0_118] : memref<64x128xf32, #tpu.memory_space<vmem>>, vector<8x128xf32>
    tpu.vector_store %arg13[%387, %c0_118], %386 {strides = array<i32>} : memref<64x128xf32, #tpu.memory_space<vmem>>, vector<8x128xf32>,
    %c3_i32_119 = arith.constant 3 : i32
    %c8_i32_120 = arith.constant 8 : i32
    %389 = arith.muli %c3_i32_119, %c8_i32_120 : i32
    %390 = tpu.assume_multiple %389, 8 : i32
    %391 = arith.index_cast %390 : i32 to index
    %c0_121 = arith.constant 0 : index
    %392 = vector.load %arg12[%391, %c0_121] : memref<64x512xf32, #tpu.memory_space<vmem>>, vector<8x512xf32>
    %c0_122 = arith.constant 0 : index
    %c0_123 = arith.constant 0 : index
    %393 = vector.load %arg5[%c0_122, %c0_123] : memref<128x512xf32, #tpu.memory_space<vmem>>, vector<128x512xf32>
    %cst_124 = arith.constant dense<0.000000e+00> : vector<8x512xf32>
    %394 = tpu.matmul %386, %393, %cst_124 {dimension_numbers = #tpu.dot_dimension_numbers<[1], [0], [0], [1], [0, 0, 1, 1], [], []>} : vector<8x128xf32>, vector<128x512xf32>, vector<8x512xf32> -> vector<8x512xf32>
    %395 = arith.addf %392, %394 : vector<8x512xf32>
    %396 = vector.extract_strided_slice %395 {offsets = [0, 0], sizes = [8, 128], strides = [1, 1]} : vector<8x512xf32> to vector<8x128xf32>
    %397 = arith.negf %396 : vector<8x128xf32>
    %398 = math.exp %397 : vector<8x128xf32>
    %cst_125 = arith.constant 1.000000e+00 : f32
    %399 = vector.broadcast %cst_125 : f32 to vector<8x128xf32>
    %400 = arith.addf %399, %398 : vector<8x128xf32>
    %401 = arith.divf %399, %400 : vector<8x128xf32>
    %402 = vector.extract_strided_slice %395 {offsets = [0, 128], sizes = [8, 128], strides = [1, 1]} : vector<8x512xf32> to vector<8x128xf32>
    %403 = arith.negf %402 : vector<8x128xf32>
    %404 = math.exp %403 : vector<8x128xf32>
    %cst_126 = arith.constant 1.000000e+00 : f32
    %405 = vector.broadcast %cst_126 : f32 to vector<8x128xf32>
    %406 = arith.addf %405, %404 : vector<8x128xf32>
    %407 = arith.divf %405, %406 : vector<8x128xf32>
    %408 = vector.extract_strided_slice %395 {offsets = [0, 256], sizes = [8, 128], strides = [1, 1]} : vector<8x512xf32> to vector<8x128xf32>
    %409 = math.tanh %408 : vector<8x128xf32>
    %410 = vector.extract_strided_slice %395 {offsets = [0, 384], sizes = [8, 128], strides = [1, 1]} : vector<8x512xf32> to vector<8x128xf32>
    %411 = arith.negf %410 : vector<8x128xf32>
    %412 = math.exp %411 : vector<8x128xf32>
    %cst_127 = arith.constant 1.000000e+00 : f32
    %413 = vector.broadcast %cst_127 : f32 to vector<8x128xf32>
    %414 = arith.addf %413, %412 : vector<8x128xf32>
    %415 = arith.divf %413, %414 : vector<8x128xf32>
    %416 = arith.mulf %407, %384 : vector<8x128xf32>
    %417 = arith.mulf %401, %409 : vector<8x128xf32>
    %418 = arith.addf %416, %417 : vector<8x128xf32>
    %419 = math.tanh %418 : vector<8x128xf32>
    %420 = arith.mulf %415, %419 : vector<8x128xf32>
    %421 = arith.index_cast %390 : i32 to index
    %c0_128 = arith.constant 0 : index
    %422 = vector.load %arg13[%421, %c0_128] : memref<64x128xf32, #tpu.memory_space<vmem>>, vector<8x128xf32>
    tpu.vector_store %arg13[%421, %c0_128], %420 {strides = array<i32>} : memref<64x128xf32, #tpu.memory_space<vmem>>, vector<8x128xf32>,
    %c4_i32_129 = arith.constant 4 : i32
    %c8_i32_130 = arith.constant 8 : i32
    %423 = arith.muli %c4_i32_129, %c8_i32_130 : i32
    %424 = tpu.assume_multiple %423, 8 : i32
    %425 = arith.index_cast %424 : i32 to index
    %c0_131 = arith.constant 0 : index
    %426 = vector.load %arg12[%425, %c0_131] : memref<64x512xf32, #tpu.memory_space<vmem>>, vector<8x512xf32>
    %c0_132 = arith.constant 0 : index
    %c0_133 = arith.constant 0 : index
    %427 = vector.load %arg5[%c0_132, %c0_133] : memref<128x512xf32, #tpu.memory_space<vmem>>, vector<128x512xf32>
    %cst_134 = arith.constant dense<0.000000e+00> : vector<8x512xf32>
    %428 = tpu.matmul %420, %427, %cst_134 {dimension_numbers = #tpu.dot_dimension_numbers<[1], [0], [0], [1], [0, 0, 1, 1], [], []>} : vector<8x128xf32>, vector<128x512xf32>, vector<8x512xf32> -> vector<8x512xf32>
    %429 = arith.addf %426, %428 : vector<8x512xf32>
    %430 = vector.extract_strided_slice %429 {offsets = [0, 0], sizes = [8, 128], strides = [1, 1]} : vector<8x512xf32> to vector<8x128xf32>
    %431 = arith.negf %430 : vector<8x128xf32>
    %432 = math.exp %431 : vector<8x128xf32>
    %cst_135 = arith.constant 1.000000e+00 : f32
    %433 = vector.broadcast %cst_135 : f32 to vector<8x128xf32>
    %434 = arith.addf %433, %432 : vector<8x128xf32>
    %435 = arith.divf %433, %434 : vector<8x128xf32>
    %436 = vector.extract_strided_slice %429 {offsets = [0, 128], sizes = [8, 128], strides = [1, 1]} : vector<8x512xf32> to vector<8x128xf32>
    %437 = arith.negf %436 : vector<8x128xf32>
    %438 = math.exp %437 : vector<8x128xf32>
    %cst_136 = arith.constant 1.000000e+00 : f32
    %439 = vector.broadcast %cst_136 : f32 to vector<8x128xf32>
    %440 = arith.addf %439, %438 : vector<8x128xf32>
    %441 = arith.divf %439, %440 : vector<8x128xf32>
    %442 = vector.extract_strided_slice %429 {offsets = [0, 256], sizes = [8, 128], strides = [1, 1]} : vector<8x512xf32> to vector<8x128xf32>
    %443 = math.tanh %442 : vector<8x128xf32>
    %444 = vector.extract_strided_slice %429 {offsets = [0, 384], sizes = [8, 128], strides = [1, 1]} : vector<8x512xf32> to vector<8x128xf32>
    %445 = arith.negf %444 : vector<8x128xf32>
    %446 = math.exp %445 : vector<8x128xf32>
    %cst_137 = arith.constant 1.000000e+00 : f32
    %447 = vector.broadcast %cst_137 : f32 to vector<8x128xf32>
    %448 = arith.addf %447, %446 : vector<8x128xf32>
    %449 = arith.divf %447, %448 : vector<8x128xf32>
    %450 = arith.mulf %441, %418 : vector<8x128xf32>
    %451 = arith.mulf %435, %443 : vector<8x128xf32>
    %452 = arith.addf %450, %451 : vector<8x128xf32>
    %453 = math.tanh %452 : vector<8x128xf32>
    %454 = arith.mulf %449, %453 : vector<8x128xf32>
    %455 = arith.index_cast %424 : i32 to index
    %c0_138 = arith.constant 0 : index
    %456 = vector.load %arg13[%455, %c0_138] : memref<64x128xf32, #tpu.memory_space<vmem>>, vector<8x128xf32>
    tpu.vector_store %arg13[%455, %c0_138], %454 {strides = array<i32>} : memref<64x128xf32, #tpu.memory_space<vmem>>, vector<8x128xf32>,
    %c5_i32_139 = arith.constant 5 : i32
    %c8_i32_140 = arith.constant 8 : i32
    %457 = arith.muli %c5_i32_139, %c8_i32_140 : i32
    %458 = tpu.assume_multiple %457, 8 : i32
    %459 = arith.index_cast %458 : i32 to index
    %c0_141 = arith.constant 0 : index
    %460 = vector.load %arg12[%459, %c0_141] : memref<64x512xf32, #tpu.memory_space<vmem>>, vector<8x512xf32>
    %c0_142 = arith.constant 0 : index
    %c0_143 = arith.constant 0 : index
    %461 = vector.load %arg5[%c0_142, %c0_143] : memref<128x512xf32, #tpu.memory_space<vmem>>, vector<128x512xf32>
    %cst_144 = arith.constant dense<0.000000e+00> : vector<8x512xf32>
    %462 = tpu.matmul %454, %461, %cst_144 {dimension_numbers = #tpu.dot_dimension_numbers<[1], [0], [0], [1], [0, 0, 1, 1], [], []>} : vector<8x128xf32>, vector<128x512xf32>, vector<8x512xf32> -> vector<8x512xf32>
    %463 = arith.addf %460, %462 : vector<8x512xf32>
    %464 = vector.extract_strided_slice %463 {offsets = [0, 0], sizes = [8, 128], strides = [1, 1]} : vector<8x512xf32> to vector<8x128xf32>
    %465 = arith.negf %464 : vector<8x128xf32>
    %466 = math.exp %465 : vector<8x128xf32>
    %cst_145 = arith.constant 1.000000e+00 : f32
    %467 = vector.broadcast %cst_145 : f32 to vector<8x128xf32>
    %468 = arith.addf %467, %466 : vector<8x128xf32>
    %469 = arith.divf %467, %468 : vector<8x128xf32>
    %470 = vector.extract_strided_slice %463 {offsets = [0, 128], sizes = [8, 128], strides = [1, 1]} : vector<8x512xf32> to vector<8x128xf32>
    %471 = arith.negf %470 : vector<8x128xf32>
    %472 = math.exp %471 : vector<8x128xf32>
    %cst_146 = arith.constant 1.000000e+00 : f32
    %473 = vector.broadcast %cst_146 : f32 to vector<8x128xf32>
    %474 = arith.addf %473, %472 : vector<8x128xf32>
    %475 = arith.divf %473, %474 : vector<8x128xf32>
    %476 = vector.extract_strided_slice %463 {offsets = [0, 256], sizes = [8, 128], strides = [1, 1]} : vector<8x512xf32> to vector<8x128xf32>
    %477 = math.tanh %476 : vector<8x128xf32>
    %478 = vector.extract_strided_slice %463 {offsets = [0, 384], sizes = [8, 128], strides = [1, 1]} : vector<8x512xf32> to vector<8x128xf32>
    %479 = arith.negf %478 : vector<8x128xf32>
    %480 = math.exp %479 : vector<8x128xf32>
    %cst_147 = arith.constant 1.000000e+00 : f32
    %481 = vector.broadcast %cst_147 : f32 to vector<8x128xf32>
    %482 = arith.addf %481, %480 : vector<8x128xf32>
    %483 = arith.divf %481, %482 : vector<8x128xf32>
    %484 = arith.mulf %475, %452 : vector<8x128xf32>
    %485 = arith.mulf %469, %477 : vector<8x128xf32>
    %486 = arith.addf %484, %485 : vector<8x128xf32>
    %487 = math.tanh %486 : vector<8x128xf32>
    %488 = arith.mulf %483, %487 : vector<8x128xf32>
    %489 = arith.index_cast %458 : i32 to index
    %c0_148 = arith.constant 0 : index
    %490 = vector.load %arg13[%489, %c0_148] : memref<64x128xf32, #tpu.memory_space<vmem>>, vector<8x128xf32>
    tpu.vector_store %arg13[%489, %c0_148], %488 {strides = array<i32>} : memref<64x128xf32, #tpu.memory_space<vmem>>, vector<8x128xf32>,
    %c6_i32_149 = arith.constant 6 : i32
    %c8_i32_150 = arith.constant 8 : i32
    %491 = arith.muli %c6_i32_149, %c8_i32_150 : i32
    %492 = tpu.assume_multiple %491, 8 : i32
    %493 = arith.index_cast %492 : i32 to index
    %c0_151 = arith.constant 0 : index
    %494 = vector.load %arg12[%493, %c0_151] : memref<64x512xf32, #tpu.memory_space<vmem>>, vector<8x512xf32>
    %c0_152 = arith.constant 0 : index
    %c0_153 = arith.constant 0 : index
    %495 = vector.load %arg5[%c0_152, %c0_153] : memref<128x512xf32, #tpu.memory_space<vmem>>, vector<128x512xf32>
    %cst_154 = arith.constant dense<0.000000e+00> : vector<8x512xf32>
    %496 = tpu.matmul %488, %495, %cst_154 {dimension_numbers = #tpu.dot_dimension_numbers<[1], [0], [0], [1], [0, 0, 1, 1], [], []>} : vector<8x128xf32>, vector<128x512xf32>, vector<8x512xf32> -> vector<8x512xf32>
    %497 = arith.addf %494, %496 : vector<8x512xf32>
    %498 = vector.extract_strided_slice %497 {offsets = [0, 0], sizes = [8, 128], strides = [1, 1]} : vector<8x512xf32> to vector<8x128xf32>
    %499 = arith.negf %498 : vector<8x128xf32>
    %500 = math.exp %499 : vector<8x128xf32>
    %cst_155 = arith.constant 1.000000e+00 : f32
    %501 = vector.broadcast %cst_155 : f32 to vector<8x128xf32>
    %502 = arith.addf %501, %500 : vector<8x128xf32>
    %503 = arith.divf %501, %502 : vector<8x128xf32>
    %504 = vector.extract_strided_slice %497 {offsets = [0, 128], sizes = [8, 128], strides = [1, 1]} : vector<8x512xf32> to vector<8x128xf32>
    %505 = arith.negf %504 : vector<8x128xf32>
    %506 = math.exp %505 : vector<8x128xf32>
    %cst_156 = arith.constant 1.000000e+00 : f32
    %507 = vector.broadcast %cst_156 : f32 to vector<8x128xf32>
    %508 = arith.addf %507, %506 : vector<8x128xf32>
    %509 = arith.divf %507, %508 : vector<8x128xf32>
    %510 = vector.extract_strided_slice %497 {offsets = [0, 256], sizes = [8, 128], strides = [1, 1]} : vector<8x512xf32> to vector<8x128xf32>
    %511 = math.tanh %510 : vector<8x128xf32>
    %512 = vector.extract_strided_slice %497 {offsets = [0, 384], sizes = [8, 128], strides = [1, 1]} : vector<8x512xf32> to vector<8x128xf32>
    %513 = arith.negf %512 : vector<8x128xf32>
    %514 = math.exp %513 : vector<8x128xf32>
    %cst_157 = arith.constant 1.000000e+00 : f32
    %515 = vector.broadcast %cst_157 : f32 to vector<8x128xf32>
    %516 = arith.addf %515, %514 : vector<8x128xf32>
    %517 = arith.divf %515, %516 : vector<8x128xf32>
    %518 = arith.mulf %509, %486 : vector<8x128xf32>
    %519 = arith.mulf %503, %511 : vector<8x128xf32>
    %520 = arith.addf %518, %519 : vector<8x128xf32>
    %521 = math.tanh %520 : vector<8x128xf32>
    %522 = arith.mulf %517, %521 : vector<8x128xf32>
    %523 = arith.index_cast %492 : i32 to index
    %c0_158 = arith.constant 0 : index
    %524 = vector.load %arg13[%523, %c0_158] : memref<64x128xf32, #tpu.memory_space<vmem>>, vector<8x128xf32>
    tpu.vector_store %arg13[%523, %c0_158], %522 {strides = array<i32>} : memref<64x128xf32, #tpu.memory_space<vmem>>, vector<8x128xf32>,
    %c7_i32_159 = arith.constant 7 : i32
    %c8_i32_160 = arith.constant 8 : i32
    %525 = arith.muli %c7_i32_159, %c8_i32_160 : i32
    %526 = tpu.assume_multiple %525, 8 : i32
    %527 = arith.index_cast %526 : i32 to index
    %c0_161 = arith.constant 0 : index
    %528 = vector.load %arg12[%527, %c0_161] : memref<64x512xf32, #tpu.memory_space<vmem>>, vector<8x512xf32>
    %c0_162 = arith.constant 0 : index
    %c0_163 = arith.constant 0 : index
    %529 = vector.load %arg5[%c0_162, %c0_163] : memref<128x512xf32, #tpu.memory_space<vmem>>, vector<128x512xf32>
    %cst_164 = arith.constant dense<0.000000e+00> : vector<8x512xf32>
    %530 = tpu.matmul %522, %529, %cst_164 {dimension_numbers = #tpu.dot_dimension_numbers<[1], [0], [0], [1], [0, 0, 1, 1], [], []>} : vector<8x128xf32>, vector<128x512xf32>, vector<8x512xf32> -> vector<8x512xf32>
    %531 = arith.addf %528, %530 : vector<8x512xf32>
    %532 = vector.extract_strided_slice %531 {offsets = [0, 0], sizes = [8, 128], strides = [1, 1]} : vector<8x512xf32> to vector<8x128xf32>
    %533 = arith.negf %532 : vector<8x128xf32>
    %534 = math.exp %533 : vector<8x128xf32>
    %cst_165 = arith.constant 1.000000e+00 : f32
    %535 = vector.broadcast %cst_165 : f32 to vector<8x128xf32>
    %536 = arith.addf %535, %534 : vector<8x128xf32>
    %537 = arith.divf %535, %536 : vector<8x128xf32>
    %538 = vector.extract_strided_slice %531 {offsets = [0, 128], sizes = [8, 128], strides = [1, 1]} : vector<8x512xf32> to vector<8x128xf32>
    %539 = arith.negf %538 : vector<8x128xf32>
    %540 = math.exp %539 : vector<8x128xf32>
    %cst_166 = arith.constant 1.000000e+00 : f32
    %541 = vector.broadcast %cst_166 : f32 to vector<8x128xf32>
    %542 = arith.addf %541, %540 : vector<8x128xf32>
    %543 = arith.divf %541, %542 : vector<8x128xf32>
    %544 = vector.extract_strided_slice %531 {offsets = [0, 256], sizes = [8, 128], strides = [1, 1]} : vector<8x512xf32> to vector<8x128xf32>
    %545 = math.tanh %544 : vector<8x128xf32>
    %546 = vector.extract_strided_slice %531 {offsets = [0, 384], sizes = [8, 128], strides = [1, 1]} : vector<8x512xf32> to vector<8x128xf32>
    %547 = arith.negf %546 : vector<8x128xf32>
    %548 = math.exp %547 : vector<8x128xf32>
    %cst_167 = arith.constant 1.000000e+00 : f32
    %549 = vector.broadcast %cst_167 : f32 to vector<8x128xf32>
    %550 = arith.addf %549, %548 : vector<8x128xf32>
    %551 = arith.divf %549, %550 : vector<8x128xf32>
    %552 = arith.mulf %543, %520 : vector<8x128xf32>
    %553 = arith.mulf %537, %545 : vector<8x128xf32>
    %554 = arith.addf %552, %553 : vector<8x128xf32>
    %555 = math.tanh %554 : vector<8x128xf32>
    %556 = arith.mulf %551, %555 : vector<8x128xf32>
    %557 = arith.index_cast %526 : i32 to index
    %c0_168 = arith.constant 0 : index
    %558 = vector.load %arg13[%557, %c0_168] : memref<64x128xf32, #tpu.memory_space<vmem>>, vector<8x128xf32>
    tpu.vector_store %arg13[%557, %c0_168], %556 {strides = array<i32>} : memref<64x128xf32, #tpu.memory_space<vmem>>, vector<8x128xf32>,
    %c8_i32_169 = arith.constant 8 : i32
    %c0_170 = arith.constant 0 : index
    %c0_171 = arith.constant 0 : index
    %559 = vector.load %arg13[%c0_170, %c0_171] : memref<64x128xf32, #tpu.memory_space<vmem>>, vector<64x128xf32>
    %c0_172 = arith.constant 0 : index
    %c0_173 = arith.constant 0 : index
    %560 = vector.load %arg7[%c0_172, %c0_173] : memref<128x128xf32, #tpu.memory_space<vmem>>, vector<128x128xf32>
    %cst_174 = arith.constant dense<0.000000e+00> : vector<64x128xf32>
    %561 = tpu.matmul %559, %560, %cst_174 {dimension_numbers = #tpu.dot_dimension_numbers<[1], [0], [0], [1], [0, 0, 1, 1], [], []>} : vector<64x128xf32>, vector<128x128xf32>, vector<64x128xf32> -> vector<64x128xf32>
    %c0_175 = arith.constant 0 : index
    %c0_176 = arith.constant 0 : index
    %562 = vector.load %arg8[%c0_175, %c0_176] : memref<1x128xf32, #tpu.memory_space<vmem>>, vector<1x128xf32>
    %563 = vector.broadcast %562 : vector<1x128xf32> to vector<64x128xf32>
    %564 = arith.addf %561, %563 : vector<64x128xf32>
    %cst_177 = arith.constant dense<0xFF800000> : vector<64xf32>
    %565 = vector.multi_reduction <maximumf>, %564, %cst_177 [1] : vector<64x128xf32> to vector<64xf32>
    %566 = vector.shape_cast %565 : vector<64xf32> to vector<64x1xf32>
    %567 = vector.broadcast %566 : vector<64x1xf32> to vector<64x128xf32>
    %568 = arith.subf %564, %567 : vector<64x128xf32>
    %569 = math.exp %568 : vector<64x128xf32>
    %cst_178 = arith.constant dense<0.000000e+00> : vector<64xf32>
    %570 = vector.multi_reduction <add>, %569, %cst_178 [1] : vector<64x128xf32> to vector<64xf32>
    %571 = vector.shape_cast %570 : vector<64xf32> to vector<64x1xf32>
    %572 = tpu.reciprocal %571 {approx = true} : vector<64x1xf32> -> vector<64x1xf32>
    %573 = vector.broadcast %572 : vector<64x1xf32> to vector<64x128xf32>
    %574 = arith.mulf %569, %573 : vector<64x128xf32>
    %c0_179 = arith.constant 0 : index
    %c0_180 = arith.constant 0 : index
    %575 = vector.load %arg9[%c0_179, %c0_180] : memref<64x128xf32, #tpu.memory_space<vmem>>, vector<64x128xf32>
    tpu.vector_store %arg9[%c0_179, %c0_180], %574 {strides = array<i32>} : memref<64x128xf32, #tpu.memory_space<vmem>>, vector<64x128xf32>,
    return
  }
}

</mosaic_0001>

<llo_original>
// kernel: lstm_model_forward.1
$region0: #{lstm_model_forward.1}
  #allocation0 [shape = 'u32[]', space=smem, size = 0x4, offset = 0x4, fixed_abs, tag = 'smem constant byte address 0x4 - core index']
  #allocation1 [shape = 'u32[72,128]{1,0:T(1,128)}', space=vmem, size = 0x9000, scoped, tag = 'internal scratch']
  #allocation2 [shape = 'f32[64,512]{1,0:T(8,128)}', space=vmem, size = 0x20000, scoped, tag = 'scratch operand']
  #allocation3 [shape = 'f32[64,128]{1,0:T(8,128)}', space=vmem, size = 0x8000, scoped, tag = 'scratch operand']
  #allocation4 [shape = 'f32[64,512]{1,0:T(8,128)}', space=vmem, size = 0x20000, scoped, tag = 'scratch operand']
  #allocation5 [shape = 'f32[64,128]{1,0:T(8,128)}', space=vmem, size = 0x8000, scoped, tag = 'scratch operand']
  %s0 = inlined_call_operand.vmem [shape: f32[64,128], index: 0, kind: input, shape index: {}]
  %s1 = inlined_call_operand.vmem [shape: f32[128,512], index: 1, kind: input, shape index: {}]
  %s2 = inlined_call_operand.vmem [shape: f32[128,512], index: 2, kind: input, shape index: {}]
  %s3 = inlined_call_operand.vmem [shape: f32[1,512], index: 3, kind: input, shape index: {}]
  %s4 = inlined_call_operand.vmem [shape: f32[128,512], index: 4, kind: input, shape index: {}]
  %s5 = inlined_call_operand.vmem [shape: f32[128,512], index: 5, kind: input, shape index: {}]
  %s6 = inlined_call_operand.vmem [shape: f32[1,512], index: 6, kind: input, shape index: {}]
  %s7 = inlined_call_operand.vmem [shape: f32[128,128], index: 7, kind: input, shape index: {}]
  %s8 = inlined_call_operand.vmem [shape: f32[1,128], index: 8, kind: input, shape index: {}]
  %s9 = inlined_call_operand.vmem [shape: f32[64,128], index: 9, kind: output, shape index: {}]
  %s10 = sld [smem:[#allocation0]]
  $region46: #{lstm_model_forward.1} parent=0
    _
  %s12 = ssub.s32 1, %s10
  %s13 = scalar_select 0, %s12, %s10
  // Predicated region
  $region2: #{lstm_model_forward.1} parent=0 // pred_check
    _
  $region3: #{lstm_model_forward.1} parent=0 // pred_check_branch
    %15 = sbr.rel (0) target = $region5
  $region4: #{lstm_model_forward.1} parent=0 // pred_region
    _
  $region5: #{lstm_model_forward.1} parent=0 // pred_fallthru
    _
  // Predicated region
  $region6: #{lstm_model_forward.1} parent=0 // pred_check
    _
  $region7: #{lstm_model_forward.1} parent=0 // pred_check_branch
    %17 = sbr.rel (0) target = $region9
  $region8: #{lstm_model_forward.1} parent=0 // pred_region
    _
  $region9: #{lstm_model_forward.1} parent=0 // pred_fallthru
    _
  // Predicated region
  $region10: #{lstm_model_forward.1} parent=0 // pred_check
    _
  $region11: #{lstm_model_forward.1} parent=0 // pred_check_branch
    %19 = sbr.rel (0) target = $region13
  $region12: #{lstm_model_forward.1} parent=0 // pred_region
    _
  $region13: #{lstm_model_forward.1} parent=0 // pred_fallthru
    _
  // Predicated region
  $region14: #{lstm_model_forward.1} parent=0 // pred_check
    _
  $region15: #{lstm_model_forward.1} parent=0 // pred_check_branch
    %21 = sbr.rel (0) target = $region17
  $region16: #{lstm_model_forward.1} parent=0 // pred_region
    _
  $region17: #{lstm_model_forward.1} parent=0 // pred_fallthru
    _
  // Predicated region
  $region18: #{lstm_model_forward.1} parent=0 // pred_check
    _
  $region19: #{lstm_model_forward.1} parent=0 // pred_check_branch
    %23 = sbr.rel (0) target = $region21
  $region20: #{lstm_model_forward.1} parent=0 // pred_region
    _
  $region21: #{lstm_model_forward.1} parent=0 // pred_fallthru
    _
  // Predicated region
  $region22: #{lstm_model_forward.1} parent=0 // pred_check
    _
  $region23: #{lstm_model_forward.1} parent=0 // pred_check_branch
    %25 = sbr.rel (0) target = $region25
  $region24: #{lstm_model_forward.1} parent=0 // pred_region
    _
  $region25: #{lstm_model_forward.1} parent=0 // pred_fallthru
    _
  // Predicated region
  $region26: #{lstm_model_forward.1} parent=0 // pred_check
    _
  $region27: #{lstm_model_forward.1} parent=0 // pred_check_branch
    %27 = sbr.rel (0) target = $region29
  $region28: #{lstm_model_forward.1} parent=0 // pred_region
    _
  $region29: #{lstm_model_forward.1} parent=0 // pred_fallthru
    _
  // Predicated region
  $region30: #{lstm_model_forward.1} parent=0 // pred_check
    _
  $region31: #{lstm_model_forward.1} parent=0 // pred_check_branch
    %29 = sbr.rel (0) target = $region33
  $region32: #{lstm_model_forward.1} parent=0 // pred_region
    _
  $region33: #{lstm_model_forward.1} parent=0 // pred_fallthru
    _
  // Predicated region
  $region34: #{lstm_model_forward.1} parent=0 // pred_check
    _
  $region35: #{lstm_model_forward.1} parent=0 // pred_check_branch
    %31 = sbr.rel (0) target = $region37
  $region36: #{lstm_model_forward.1} parent=0 // pred_region
    _
  $region37: #{lstm_model_forward.1} parent=0 // pred_fallthru
    _
  %v32 = vld [vmem:[%s0] sm:$0xff]
  %v33 = vld [vmem:[%s0 + $0x8] sm:$0xff]
  %v34 = vld [vmem:[%s0 + $0x10] sm:$0xff]
  %v35 = vld [vmem:[%s0 + $0x18] sm:$0xff]
  %v36 = vld [vmem:[%s0 + $0x20] sm:$0xff]
  %v37 = vld [vmem:[%s0 + $0x28] sm:$0xff]
  %v38 = vld [vmem:[%s0 + $0x30] sm:$0xff]
  %v39 = vld [vmem:[%s0 + $0x38] sm:$0xff]
  %v40 = vld [vmem:[%s1] sm:$0xff]
  %v41 = vld [vmem:[%s1 + $0x8] sm:$0xff]
  %v42 = vld [vmem:[%s1 + $0x10] sm:$0xff]
  %v43 = vld [vmem:[%s1 + $0x18] sm:$0xff]
  %v44 = vld [vmem:[%s1 + $0x20] sm:$0xff]
  %v45 = vld [vmem:[%s1 + $0x28] sm:$0xff]
  %v46 = vld [vmem:[%s1 + $0x30] sm:$0xff]
  %v47 = vld [vmem:[%s1 + $0x38] sm:$0xff]
  %v48 = vld [vmem:[%s1 + $0x40] sm:$0xff]
  %v49 = vld [vmem:[%s1 + $0x48] sm:$0xff]
  %v50 = vld [vmem:[%s1 + $0x50] sm:$0xff]
  %v51 = vld [vmem:[%s1 + $0x58] sm:$0xff]
  %v52 = vld [vmem:[%s1 + $0x60] sm:$0xff]
  %v53 = vld [vmem:[%s1 + $0x68] sm:$0xff]
  %v54 = vld [vmem:[%s1 + $0x70] sm:$0xff]
  %v55 = vld [vmem:[%s1 + $0x78] sm:$0xff]
  %v56 = vld [vmem:[%s1 + $0x80] sm:$0xff]
  %v57 = vld [vmem:[%s1 + $0x88] sm:$0xff]
  %v58 = vld [vmem:[%s1 + $0x90] sm:$0xff]
  %v59 = vld [vmem:[%s1 + $0x98] sm:$0xff]
  %v60 = vld [vmem:[%s1 + $0xa0] sm:$0xff]
  %v61 = vld [vmem:[%s1 + $0xa8] sm:$0xff]
  %v62 = vld [vmem:[%s1 + $0xb0] sm:$0xff]
  %v63 = vld [vmem:[%s1 + $0xb8] sm:$0xff]
  %v64 = vld [vmem:[%s1 + $0xc0] sm:$0xff]
  %v65 = vld [vmem:[%s1 + $0xc8] sm:$0xff]
  %v66 = vld [vmem:[%s1 + $0xd0] sm:$0xff]
  %v67 = vld [vmem:[%s1 + $0xd8] sm:$0xff]
  %v68 = vld [vmem:[%s1 + $0xe0] sm:$0xff]
  %v69 = vld [vmem:[%s1 + $0xe8] sm:$0xff]
  %v70 = vld [vmem:[%s1 + $0xf0] sm:$0xff]
  %v71 = vld [vmem:[%s1 + $0xf8] sm:$0xff]
  %v72 = vld [vmem:[%s1 + $0x100] sm:$0xff]
  %v73 = vld [vmem:[%s1 + $0x108] sm:$0xff]
  %v74 = vld [vmem:[%s1 + $0x110] sm:$0xff]
  %v75 = vld [vmem:[%s1 + $0x118] sm:$0xff]
  %v76 = vld [vmem:[%s1 + $0x120] sm:$0xff]
  %v77 = vld [vmem:[%s1 + $0x128] sm:$0xff]
  %v78 = vld [vmem:[%s1 + $0x130] sm:$0xff]
  %v79 = vld [vmem:[%s1 + $0x138] sm:$0xff]
  %v80 = vld [vmem:[%s1 + $0x140] sm:$0xff]
  %v81 = vld [vmem:[%s1 + $0x148] sm:$0xff]
  %v82 = vld [vmem:[%s1 + $0x150] sm:$0xff]
  %v83 = vld [vmem:[%s1 + $0x158] sm:$0xff]
  %v84 = vld [vmem:[%s1 + $0x160] sm:$0xff]
  %v85 = vld [vmem:[%s1 + $0x168] sm:$0xff]
  %v86 = vld [vmem:[%s1 + $0x170] sm:$0xff]
  %v87 = vld [vmem:[%s1 + $0x178] sm:$0xff]
  %v88 = vld [vmem:[%s1 + $0x180] sm:$0xff]
  %v89 = vld [vmem:[%s1 + $0x188] sm:$0xff]
  %v90 = vld [vmem:[%s1 + $0x190] sm:$0xff]
  %v91 = vld [vmem:[%s1 + $0x198] sm:$0xff]
  %v92 = vld [vmem:[%s1 + $0x1a0] sm:$0xff]
  %v93 = vld [vmem:[%s1 + $0x1a8] sm:$0xff]
  %v94 = vld [vmem:[%s1 + $0x1b0] sm:$0xff]
  %v95 = vld [vmem:[%s1 + $0x1b8] sm:$0xff]
  %v96 = vld [vmem:[%s1 + $0x1c0] sm:$0xff]
  %v97 = vld [vmem:[%s1 + $0x1c8] sm:$0xff]
  %v98 = vld [vmem:[%s1 + $0x1d0] sm:$0xff]
  %v99 = vld [vmem:[%s1 + $0x1d8] sm:$0xff]
  %v100 = vld [vmem:[%s1 + $0x1e0] sm:$0xff]
  %v101 = vld [vmem:[%s1 + $0x1e8] sm:$0xff]
  %v102 = vld [vmem:[%s1 + $0x1f0] sm:$0xff]
  %v103 = vld [vmem:[%s1 + $0x1f8] sm:$0xff]
  %v104 = vld [vmem:[%s3] sm:$0xf]
  %v106 = vperm.slane %v104, 0
  %v107 = vperm.slane %v104, 1
  %v108 = vperm.slane %v104, 2
  %v109 = vperm.slane %v104, 3
  %114 = vmatpush.msra.mxu0 %v100
  %115 = vmatpush.msra.mxu0 %v96
  %116 = vmatpush.msra.mxu0 %v92
  %117 = vmatpush.msra.mxu0 %v88
  %118 = vmatpush.msra.mxu0 %v84
  %119 = vmatpush.msra.mxu0 %v80
  %120 = vmatpush.msra.mxu0 %v76
  %121 = vmatpush.msra.mxu0 %v72
  %122 = vmatpush.msra.mxu0 %v68
  %123 = vmatpush.msra.mxu0 %v64
  %124 = vmatpush.msra.mxu0 %v60
  %125 = vmatpush.msra.mxu0 %v56
  %126 = vmatpush.msra.mxu0 %v52
  %127 = vmatpush.msra.mxu0 %v48
  %128 = vmatpush.msra.mxu0 %v44
  %129 = vmatpush.msra.mxu0 %v40
  %130 = vmatmul.f32.gmra.mxu0 %v32
  %v131 = vpop.f32.mrf.mxu0
  %v132 = vadd.f32 %v106, %v131
  %133 = vmatmul.f32.gmra.mxu0 %v33
  %v134 = vpop.f32.mrf.mxu0
  %v135 = vadd.f32 %v106, %v134
  %136 = vmatmul.f32.gmra.mxu0 %v34
  %v137 = vpop.f32.mrf.mxu0
  %v138 = vadd.f32 %v106, %v137
  %139 = vmatmul.f32.gmra.mxu0 %v35
  %v140 = vpop.f32.mrf.mxu0
  %v141 = vadd.f32 %v106, %v140
  %142 = vmatmul.f32.gmra.mxu0 %v36
  %v143 = vpop.f32.mrf.mxu0
  %v144 = vadd.f32 %v106, %v143
  %145 = vmatmul.f32.gmra.mxu0 %v37
  %v146 = vpop.f32.mrf.mxu0
  %v147 = vadd.f32 %v106, %v146
  %148 = vmatmul.f32.gmra.mxu0 %v38
  %v149 = vpop.f32.mrf.mxu0
  %v150 = vadd.f32 %v106, %v149
  %151 = vmatmul.f32.gmra.mxu0 %v39
  %v152 = vpop.f32.mrf.mxu0
  %v153 = vadd.f32 %v106, %v152
  %154 = vdwg.mxu0
  %155 = vmatpush.msra.mxu0 %v101
  %156 = vmatpush.msra.mxu0 %v97
  %157 = vmatpush.msra.mxu0 %v93
  %158 = vmatpush.msra.mxu0 %v89
  %159 = vmatpush.msra.mxu0 %v85
  %160 = vmatpush.msra.mxu0 %v81
  %161 = vmatpush.msra.mxu0 %v77
  %162 = vmatpush.msra.mxu0 %v73
  %163 = vmatpush.msra.mxu0 %v69
  %164 = vmatpush.msra.mxu0 %v65
  %165 = vmatpush.msra.mxu0 %v61
  %166 = vmatpush.msra.mxu0 %v57
  %167 = vmatpush.msra.mxu0 %v53
  %168 = vmatpush.msra.mxu0 %v49
  %169 = vmatpush.msra.mxu0 %v45
  %170 = vmatpush.msra.mxu0 %v41
  %171 = vmatmul.f32.gmra.mxu0 %v32
  %v172 = vpop.f32.mrf.mxu0
  %v173 = vadd.f32 %v107, %v172
  %174 = vmatmul.f32.gmra.mxu0 %v33
  %v175 = vpop.f32.mrf.mxu0
  %v176 = vadd.f32 %v107, %v175
  %177 = vmatmul.f32.gmra.mxu0 %v34
  %v178 = vpop.f32.mrf.mxu0
  %v179 = vadd.f32 %v107, %v178
  %180 = vmatmul.f32.gmra.mxu0 %v35
  %v181 = vpop.f32.mrf.mxu0
  %v182 = vadd.f32 %v107, %v181
  %183 = vmatmul.f32.gmra.mxu0 %v36
  %v184 = vpop.f32.mrf.mxu0
  %v185 = vadd.f32 %v107, %v184
  %186 = vmatmul.f32.gmra.mxu0 %v37
  %v187 = vpop.f32.mrf.mxu0
  %v188 = vadd.f32 %v107, %v187
  %189 = vmatmul.f32.gmra.mxu0 %v38
  %v190 = vpop.f32.mrf.mxu0
  %v191 = vadd.f32 %v107, %v190
  %192 = vmatmul.f32.gmra.mxu0 %v39
  %v193 = vpop.f32.mrf.mxu0
  %v194 = vadd.f32 %v107, %v193
  %195 = vdwg.mxu0
  %196 = vmatpush.msra.mxu0 %v102
  %197 = vmatpush.msra.mxu0 %v98
  %198 = vmatpush.msra.mxu0 %v94
  %199 = vmatpush.msra.mxu0 %v90
  %200 = vmatpush.msra.mxu0 %v86
  %201 = vmatpush.msra.mxu0 %v82
  %202 = vmatpush.msra.mxu0 %v78
  %203 = vmatpush.msra.mxu0 %v74
  %204 = vmatpush.msra.mxu0 %v70
  %205 = vmatpush.msra.mxu0 %v66
  %206 = vmatpush.msra.mxu0 %v62
  %207 = vmatpush.msra.mxu0 %v58
  %208 = vmatpush.msra.mxu0 %v54
  %209 = vmatpush.msra.mxu0 %v50
  %210 = vmatpush.msra.mxu0 %v46
  %211 = vmatpush.msra.mxu0 %v42
  %212 = vmatmul.f32.gmra.mxu0 %v32
  %v213 = vpop.f32.mrf.mxu0
  %v214 = vadd.f32 %v108, %v213
  %215 = vmatmul.f32.gmra.mxu0 %v33
  %v216 = vpop.f32.mrf.mxu0
  %v217 = vadd.f32 %v108, %v216
  %218 = vmatmul.f32.gmra.mxu0 %v34
  %v219 = vpop.f32.mrf.mxu0
  %v220 = vadd.f32 %v108, %v219
  %221 = vmatmul.f32.gmra.mxu0 %v35
  %v222 = vpop.f32.mrf.mxu0
  %v223 = vadd.f32 %v108, %v222
  %224 = vmatmul.f32.gmra.mxu0 %v36
  %v225 = vpop.f32.mrf.mxu0
  %v226 = vadd.f32 %v108, %v225
  %227 = vmatmul.f32.gmra.mxu0 %v37
  %v228 = vpop.f32.mrf.mxu0
  %v229 = vadd.f32 %v108, %v228
  %230 = vmatmul.f32.gmra.mxu0 %v38
  %v231 = vpop.f32.mrf.mxu0
  %v232 = vadd.f32 %v108, %v231
  %233 = vmatmul.f32.gmra.mxu0 %v39
  %v234 = vpop.f32.mrf.mxu0
  %v235 = vadd.f32 %v108, %v234
  %236 = vdwg.mxu0
  %237 = vmatpush.msra.mxu0 %v103
  %238 = vmatpush.msra.mxu0 %v99
  %239 = vmatpush.msra.mxu0 %v95
  %240 = vmatpush.msra.mxu0 %v91
  %241 = vmatpush.msra.mxu0 %v87
  %242 = vmatpush.msra.mxu0 %v83
  %243 = vmatpush.msra.mxu0 %v79
  %244 = vmatpush.msra.mxu0 %v75
  %245 = vmatpush.msra.mxu0 %v71
  %246 = vmatpush.msra.mxu0 %v67
  %247 = vmatpush.msra.mxu0 %v63
  %248 = vmatpush.msra.mxu0 %v59
  %249 = vmatpush.msra.mxu0 %v55
  %250 = vmatpush.msra.mxu0 %v51
  %251 = vmatpush.msra.mxu0 %v47
  %252 = vmatpush.msra.mxu0 %v43
  %253 = vmatmul.f32.gmra.mxu0 %v32
  %v254 = vpop.f32.mrf.mxu0
  %v255 = vadd.f32 %v109, %v254
  %256 = vmatmul.f32.gmra.mxu0 %v33
  %v257 = vpop.f32.mrf.mxu0
  %v258 = vadd.f32 %v109, %v257
  %259 = vmatmul.f32.gmra.mxu0 %v34
  %v260 = vpop.f32.mrf.mxu0
  %v261 = vadd.f32 %v109, %v260
  %262 = vmatmul.f32.gmra.mxu0 %v35
  %v263 = vpop.f32.mrf.mxu0
  %v264 = vadd.f32 %v109, %v263
  %265 = vmatmul.f32.gmra.mxu0 %v36
  %v266 = vpop.f32.mrf.mxu0
  %v267 = vadd.f32 %v109, %v266
  %268 = vmatmul.f32.gmra.mxu0 %v37
  %v269 = vpop.f32.mrf.mxu0
  %v270 = vadd.f32 %v109, %v269
  %271 = vmatmul.f32.gmra.mxu0 %v38
  %v272 = vpop.f32.mrf.mxu0
  %v273 = vadd.f32 %v109, %v272
  %274 = vmatmul.f32.gmra.mxu0 %v39
  %v275 = vpop.f32.mrf.mxu0
  %v276 = vadd.f32 %v109, %v275
  %277 = vdwg.mxu0
  %278 = vst [vmem:[#allocation2] sm:$0xff] %v132
  %279 = vst [vmem:[#allocation2 + $0x8] sm:$0xff] %v173
  %280 = vst [vmem:[#allocation2 + $0x10] sm:$0xff] %v214
  %281 = vst [vmem:[#allocation2 + $0x18] sm:$0xff] %v255
  %282 = vst [vmem:[#allocation2 + $0x20] sm:$0xff] %v135
  %283 = vst [vmem:[#allocation2 + $0x28] sm:$0xff] %v176
  %284 = vst [vmem:[#allocation2 + $0x30] sm:$0xff] %v217
  %285 = vst [vmem:[#allocation2 + $0x38] sm:$0xff] %v258
  %286 = vst [vmem:[#allocation2 + $0x40] sm:$0xff] %v138
  %287 = vst [vmem:[#allocation2 + $0x48] sm:$0xff] %v179
  %288 = vst [vmem:[#allocation2 + $0x50] sm:$0xff] %v220
  %289 = vst [vmem:[#allocation2 + $0x58] sm:$0xff] %v261
  %290 = vst [vmem:[#allocation2 + $0x60] sm:$0xff] %v141
  %291 = vst [vmem:[#allocation2 + $0x68] sm:$0xff] %v182
  %292 = vst [vmem:[#allocation2 + $0x70] sm:$0xff] %v223
  %293 = vst [vmem:[#allocation2 + $0x78] sm:$0xff] %v264
  %294 = vst [vmem:[#allocation2 + $0x80] sm:$0xff] %v144
  %295 = vst [vmem:[#allocation2 + $0x88] sm:$0xff] %v185
  %296 = vst [vmem:[#allocation2 + $0x90] sm:$0xff] %v226
  %297 = vst [vmem:[#allocation2 + $0x98] sm:$0xff] %v267
  %298 = vst [vmem:[#allocation2 + $0xa0] sm:$0xff] %v147
  %299 = vst [vmem:[#allocation2 + $0xa8] sm:$0xff] %v188
  %300 = vst [vmem:[#allocation2 + $0xb0] sm:$0xff] %v229
  %301 = vst [vmem:[#allocation2 + $0xb8] sm:$0xff] %v270
  %302 = vst [vmem:[#allocation2 + $0xc0] sm:$0xff] %v150
  %303 = vst [vmem:[#allocation2 + $0xc8] sm:$0xff] %v191
  %304 = vst [vmem:[#allocation2 + $0xd0] sm:$0xff] %v232
  %305 = vst [vmem:[#allocation2 + $0xd8] sm:$0xff] %v273
  %306 = vst [vmem:[#allocation2 + $0xe0] sm:$0xff] %v153
  %307 = vst [vmem:[#allocation2 + $0xe8] sm:$0xff] %v194
  %308 = vst [vmem:[#allocation2 + $0xf0] sm:$0xff] %v235
  %309 = vst [vmem:[#allocation2 + $0xf8] sm:$0xff] %v276
  %s310 = smul.u32 0, 4
  %s311 = smul.addr %s310, 8
  %s312 = scalar_lea.vmem [#allocation2], %s311
  %v313 = vld [vmem:[%s312] sm:$0xff]
  %v314 = vld [vmem:[%s312 + $0x8] sm:$0xff]
  %v315 = vld [vmem:[%s312 + $0x10] sm:$0xff]
  %v316 = vld [vmem:[%s312 + $0x18] sm:$0xff]
  %v317 = vld [vmem:[%s2] sm:$0xff]
  %v318 = vld [vmem:[%s2 + $0x8] sm:$0xff]
  %v319 = vld [vmem:[%s2 + $0x10] sm:$0xff]
  %v320 = vld [vmem:[%s2 + $0x18] sm:$0xff]
  %v321 = vld [vmem:[%s2 + $0x20] sm:$0xff]
  %v322 = vld [vmem:[%s2 + $0x28] sm:$0xff]
  %v323 = vld [vmem:[%s2 + $0x30] sm:$0xff]
  %v324 = vld [vmem:[%s2 + $0x38] sm:$0xff]
  %v325 = vld [vmem:[%s2 + $0x40] sm:$0xff]
  %v326 = vld [vmem:[%s2 + $0x48] sm:$0xff]
  %v327 = vld [vmem:[%s2 + $0x50] sm:$0xff]
  %v328 = vld [vmem:[%s2 + $0x58] sm:$0xff]
  %v329 = vld [vmem:[%s2 + $0x60] sm:$0xff]
  %v330 = vld [vmem:[%s2 + $0x68] sm:$0xff]
  %v331 = vld [vmem:[%s2 + $0x70] sm:$0xff]
  %v332 = vld [vmem:[%s2 + $0x78] sm:$0xff]
  %v333 = vld [vmem:[%s2 + $0x80] sm:$0xff]
  %v334 = vld [vmem:[%s2 + $0x88] sm:$0xff]
  %v335 = vld [vmem:[%s2 + $0x90] sm:$0xff]
  %v336 = vld [vmem:[%s2 + $0x98] sm:$0xff]
  %v337 = vld [vmem:[%s2 + $0xa0] sm:$0xff]
  %v338 = vld [vmem:[%s2 + $0xa8] sm:$0xff]
  %v339 = vld [vmem:[%s2 + $0xb0] sm:$0xff]
  %v340 = vld [vmem:[%s2 + $0xb8] sm:$0xff]
  %v341 = vld [vmem:[%s2 + $0xc0] sm:$0xff]
  %v342 = vld [vmem:[%s2 + $0xc8] sm:$0xff]
  %v343 = vld [vmem:[%s2 + $0xd0] sm:$0xff]
  %v344 = vld [vmem:[%s2 + $0xd8] sm:$0xff]
  %v345 = vld [vmem:[%s2 + $0xe0] sm:$0xff]
  %v346 = vld [vmem:[%s2 + $0xe8] sm:$0xff]
  %v347 = vld [vmem:[%s2 + $0xf0] sm:$0xff]
  %v348 = vld [vmem:[%s2 + $0xf8] sm:$0xff]
  %v349 = vld [vmem:[%s2 + $0x100] sm:$0xff]
  %v350 = vld [vmem:[%s2 + $0x108] sm:$0xff]
  %v351 = vld [vmem:[%s2 + $0x110] sm:$0xff]
  %v352 = vld [vmem:[%s2 + $0x118] sm:$0xff]
  %v353 = vld [vmem:[%s2 + $0x120] sm:$0xff]
  %v354 = vld [vmem:[%s2 + $0x128] sm:$0xff]
  %v355 = vld [vmem:[%s2 + $0x130] sm:$0xff]
  %v356 = vld [vmem:[%s2 + $0x138] sm:$0xff]
  %v357 = vld [vmem:[%s2 + $0x140] sm:$0xff]
  %v358 = vld [vmem:[%s2 + $0x148] sm:$0xff]
  %v359 = vld [vmem:[%s2 + $0x150] sm:$0xff]
  %v360 = vld [vmem:[%s2 + $0x158] sm:$0xff]
  %v361 = vld [vmem:[%s2 + $0x160] sm:$0xff]
  %v362 = vld [vmem:[%s2 + $0x168] sm:$0xff]
  %v363 = vld [vmem:[%s2 + $0x170] sm:$0xff]
  %v364 = vld [vmem:[%s2 + $0x178] sm:$0xff]
  %v365 = vld [vmem:[%s2 + $0x180] sm:$0xff]
  %v366 = vld [vmem:[%s2 + $0x188] sm:$0xff]
  %v367 = vld [vmem:[%s2 + $0x190] sm:$0xff]
  %v368 = vld [vmem:[%s2 + $0x198] sm:$0xff]
  %v369 = vld [vmem:[%s2 + $0x1a0] sm:$0xff]
  %v370 = vld [vmem:[%s2 + $0x1a8] sm:$0xff]
  %v371 = vld [vmem:[%s2 + $0x1b0] sm:$0xff]
  %v372 = vld [vmem:[%s2 + $0x1b8] sm:$0xff]
  %v373 = vld [vmem:[%s2 + $0x1c0] sm:$0xff]
  %v374 = vld [vmem:[%s2 + $0x1c8] sm:$0xff]
  %v375 = vld [vmem:[%s2 + $0x1d0] sm:$0xff]
  %v376 = vld [vmem:[%s2 + $0x1d8] sm:$0xff]
  %v377 = vld [vmem:[%s2 + $0x1e0] sm:$0xff]
  %v378 = vld [vmem:[%s2 + $0x1e8] sm:$0xff]
  %v379 = vld [vmem:[%s2 + $0x1f0] sm:$0xff]
  %v380 = vld [vmem:[%s2 + $0x1f8] sm:$0xff]
  %381 = vmatpush.msra.mxu0 %v377
  %382 = vmatpush.msra.mxu0 %v373
  %383 = vmatpush.msra.mxu0 %v369
  %384 = vmatpush.msra.mxu0 %v365
  %385 = vmatpush.msra.mxu0 %v361
  %386 = vmatpush.msra.mxu0 %v357
  %387 = vmatpush.msra.mxu0 %v353
  %388 = vmatpush.msra.mxu0 %v349
  %389 = vmatpush.msra.mxu0 %v345
  %390 = vmatpush.msra.mxu0 %v341
  %391 = vmatpush.msra.mxu0 %v337
  %392 = vmatpush.msra.mxu0 %v333
  %393 = vmatpush.msra.mxu0 %v329
  %394 = vmatpush.msra.mxu0 %v325
  %395 = vmatpush.msra.mxu0 %v321
  %396 = vmatpush.msra.mxu0 %v317
  %397 = vmatmul.f32.gmra.mxu0 0.0
  %v398 = vpop.f32.mrf.mxu0
  %v399 = vadd.f32 0.0, %v398
  %400 = vdwg.mxu0
  %401 = vmatpush.msra.mxu0 %v378
  %402 = vmatpush.msra.mxu0 %v374
  %403 = vmatpush.msra.mxu0 %v370
  %404 = vmatpush.msra.mxu0 %v366
  %405 = vmatpush.msra.mxu0 %v362
  %406 = vmatpush.msra.mxu0 %v358
  %407 = vmatpush.msra.mxu0 %v354
  %408 = vmatpush.msra.mxu0 %v350
  %409 = vmatpush.msra.mxu0 %v346
  %410 = vmatpush.msra.mxu0 %v342
  %411 = vmatpush.msra.mxu0 %v338
  %412 = vmatpush.msra.mxu0 %v334
  %413 = vmatpush.msra.mxu0 %v330
  %414 = vmatpush.msra.mxu0 %v326
  %415 = vmatpush.msra.mxu0 %v322
  %416 = vmatpush.msra.mxu0 %v318
  %417 = vmatmul.f32.gmra.mxu0 0.0
  %v418 = vpop.f32.mrf.mxu0
  %v419 = vadd.f32 0.0, %v418
  %420 = vdwg.mxu0
  %421 = vmatpush.msra.mxu0 %v379
  %422 = vmatpush.msra.mxu0 %v375
  %423 = vmatpush.msra.mxu0 %v371
  %424 = vmatpush.msra.mxu0 %v367
  %425 = vmatpush.msra.mxu0 %v363
  %426 = vmatpush.msra.mxu0 %v359
  %427 = vmatpush.msra.mxu0 %v355
  %428 = vmatpush.msra.mxu0 %v351
  %429 = vmatpush.msra.mxu0 %v347
  %430 = vmatpush.msra.mxu0 %v343
  %431 = vmatpush.msra.mxu0 %v339
  %432 = vmatpush.msra.mxu0 %v335
  %433 = vmatpush.msra.mxu0 %v331
  %434 = vmatpush.msra.mxu0 %v327
  %435 = vmatpush.msra.mxu0 %v323
  %436 = vmatpush.msra.mxu0 %v319
  %437 = vmatmul.f32.gmra.mxu0 0.0
  %v438 = vpop.f32.mrf.mxu0
  %v439 = vadd.f32 0.0, %v438
  %440 = vdwg.mxu0
  %441 = vmatpush.msra.mxu0 %v380
  %442 = vmatpush.msra.mxu0 %v376
  %443 = vmatpush.msra.mxu0 %v372
  %444 = vmatpush.msra.mxu0 %v368
  %445 = vmatpush.msra.mxu0 %v364
  %446 = vmatpush.msra.mxu0 %v360
  %447 = vmatpush.msra.mxu0 %v356
  %448 = vmatpush.msra.mxu0 %v352
  %449 = vmatpush.msra.mxu0 %v348
  %450 = vmatpush.msra.mxu0 %v344
  %451 = vmatpush.msra.mxu0 %v340
  %452 = vmatpush.msra.mxu0 %v336
  %453 = vmatpush.msra.mxu0 %v332
  %454 = vmatpush.msra.mxu0 %v328
  %455 = vmatpush.msra.mxu0 %v324
  %456 = vmatpush.msra.mxu0 %v320
  %457 = vmatmul.f32.gmra.mxu0 0.0
  %v458 = vpop.f32.mrf.mxu0
  %v459 = vadd.f32 0.0, %v458
  %460 = vdwg.mxu0
  %v461 = vadd.f32 %v313, %v399
  %v462 = vadd.f32 %v314, %v419
  %v463 = vadd.f32 %v315, %v439
  %v464 = vadd.f32 %v316, %v459
  %v465 = vxor.u32 %v461, 2147483648
  %v466 = vmul.f32 %v465, 1.442695
  %v467 = vpow.pop %v466
  %v468 = vadd.f32 %v467, 1.0
  %v469 = vrcp.pop %v468
  %v470 = vmul.f32 %v468, %v469
  %v471 = vsub.f32 1.0, %v470
  %v472 = vmul.f32 %v469, %v471
  %v473 = vadd.f32 %v469, %v472
  %vm474 = vweird.f32 %v468
  %vm475 = vweird.f32 %v469
  %vm476 = vmor %vm474, %vm475
  %v477 = vsel %vm476, %v469, %v473
  %v478 = vand.u32 2147483647, %v468
  %vm479 = vcmp.eq.f32.partialorder %v478, 8.507059e+37
  %v480 = vand.u32 %v468, 2147483648
  %v481 = vor.u32 1.1754944e-38, %v480
  %v482 = vsel %vm479, %v481, %v477
  %v483 = vmul.f32 1.0, %v482
  %v484 = vxor.u32 %v462, 2147483648
  %v485 = vmul.f32 %v484, 1.442695
  %v486 = vpow.pop %v485
  %v487 = vadd.f32 %v486, 1.0
  %v488 = vrcp.pop %v487
  %v489 = vmul.f32 %v487, %v488
  %v490 = vsub.f32 1.0, %v489
  %v491 = vmul.f32 %v488, %v490
  %v492 = vadd.f32 %v488, %v491
  %vm493 = vweird.f32 %v487
  %vm494 = vweird.f32 %v488
  %vm495 = vmor %vm493, %vm494
  %v496 = vsel %vm495, %v488, %v492
  %v497 = vand.u32 2147483647, %v487
  %vm498 = vcmp.eq.f32.partialorder %v497, 8.507059e+37
  %v499 = vand.u32 %v487, 2147483648
  %v500 = vor.u32 1.1754944e-38, %v499
  %v501 = vsel %vm498, %v500, %v496
  %v502 = vmul.f32 1.0, %v501
  %v503 = vtanh.pop %v463
  %v504 = vxor.u32 %v464, 2147483648
  %v505 = vmul.f32 %v504, 1.442695
  %v506 = vpow.pop %v505
  %v507 = vadd.f32 %v506, 1.0
  %v508 = vrcp.pop %v507
  %v509 = vmul.f32 %v507, %v508
  %v510 = vsub.f32 1.0, %v509
  %v511 = vmul.f32 %v508, %v510
  %v512 = vadd.f32 %v508, %v511
  %vm513 = vweird.f32 %v507
  %vm514 = vweird.f32 %v508
  %vm515 = vmor %vm513, %vm514
  %v516 = vsel %vm515, %v508, %v512
  %v517 = vand.u32 2147483647, %v507
  %vm518 = vcmp.eq.f32.partialorder %v517, 8.507059e+37
  %v519 = vand.u32 %v507, 2147483648
  %v520 = vor.u32 1.1754944e-38, %v519
  %v521 = vsel %vm518, %v520, %v516
  %v522 = vmul.f32 1.0, %v521
  %v523 = vmul.f32 %v502, 0.0
  %v524 = vmul.f32 %v483, %v503
  %v525 = vadd.f32 %v523, %v524
  %v526 = vtanh.pop %v525
  %v527 = vmul.f32 %v522, %v526
  %528 = vst [vmem:[#allocation3] sm:$0xff] %v527
  %s529 = smul.u32 1, 4
  %s530 = smul.addr %s529, 8
  %s531 = scalar_lea.vmem [#allocation2], %s530
  %v532 = vld [vmem:[%s531] sm:$0xff]
  %v533 = vld [vmem:[%s531 + $0x8] sm:$0xff]
  %v534 = vld [vmem:[%s531 + $0x10] sm:$0xff]
  %v535 = vld [vmem:[%s531 + $0x18] sm:$0xff]
  %v536 = vld [vmem:[%s2] sm:$0xff]
  %v537 = vld [vmem:[%s2 + $0x8] sm:$0xff]
  %v538 = vld [vmem:[%s2 + $0x10] sm:$0xff]
  %v539 = vld [vmem:[%s2 + $0x18] sm:$0xff]
  %v540 = vld [vmem:[%s2 + $0x20] sm:$0xff]
  %v541 = vld [vmem:[%s2 + $0x28] sm:$0xff]
  %v542 = vld [vmem:[%s2 + $0x30] sm:$0xff]
  %v543 = vld [vmem:[%s2 + $0x38] sm:$0xff]
  %v544 = vld [vmem:[%s2 + $0x40] sm:$0xff]
  %v545 = vld [vmem:[%s2 + $0x48] sm:$0xff]
  %v546 = vld [vmem:[%s2 + $0x50] sm:$0xff]
  %v547 = vld [vmem:[%s2 + $0x58] sm:$0xff]
  %v548 = vld [vmem:[%s2 + $0x60] sm:$0xff]
  %v549 = vld [vmem:[%s2 + $0x68] sm:$0xff]
  %v550 = vld [vmem:[%s2 + $0x70] sm:$0xff]
  %v551 = vld [vmem:[%s2 + $0x78] sm:$0xff]
  %v552 = vld [vmem:[%s2 + $0x80] sm:$0xff]
  %v553 = vld [vmem:[%s2 + $0x88] sm:$0xff]
  %v554 = vld [vmem:[%s2 + $0x90] sm:$0xff]
  %v555 = vld [vmem:[%s2 + $0x98] sm:$0xff]
  %v556 = vld [vmem:[%s2 + $0xa0] sm:$0xff]
  %v557 = vld [vmem:[%s2 + $0xa8] sm:$0xff]
  %v558 = vld [vmem:[%s2 + $0xb0] sm:$0xff]
  %v559 = vld [vmem:[%s2 + $0xb8] sm:$0xff]
  %v560 = vld [vmem:[%s2 + $0xc0] sm:$0xff]
  %v561 = vld [vmem:[%s2 + $0xc8] sm:$0xff]
  %v562 = vld [vmem:[%s2 + $0xd0] sm:$0xff]
  %v563 = vld [vmem:[%s2 + $0xd8] sm:$0xff]
  %v564 = vld [vmem:[%s2 + $0xe0] sm:$0xff]
  %v565 = vld [vmem:[%s2 + $0xe8] sm:$0xff]
  %v566 = vld [vmem:[%s2 + $0xf0] sm:$0xff]
  %v567 = vld [vmem:[%s2 + $0xf8] sm:$0xff]
  %v568 = vld [vmem:[%s2 + $0x100] sm:$0xff]
  %v569 = vld [vmem:[%s2 + $0x108] sm:$0xff]
  %v570 = vld [vmem:[%s2 + $0x110] sm:$0xff]
  %v571 = vld [vmem:[%s2 + $0x118] sm:$0xff]
  %v572 = vld [vmem:[%s2 + $0x120] sm:$0xff]
  %v573 = vld [vmem:[%s2 + $0x128] sm:$0xff]
  %v574 = vld [vmem:[%s2 + $0x130] sm:$0xff]
  %v575 = vld [vmem:[%s2 + $0x138] sm:$0xff]
  %v576 = vld [vmem:[%s2 + $0x140] sm:$0xff]
  %v577 = vld [vmem:[%s2 + $0x148] sm:$0xff]
  %v578 = vld [vmem:[%s2 + $0x150] sm:$0xff]
  %v579 = vld [vmem:[%s2 + $0x158] sm:$0xff]
  %v580 = vld [vmem:[%s2 + $0x160] sm:$0xff]
  %v581 = vld [vmem:[%s2 + $0x168] sm:$0xff]
  %v582 = vld [vmem:[%s2 + $0x170] sm:$0xff]
  %v583 = vld [vmem:[%s2 + $0x178] sm:$0xff]
  %v584 = vld [vmem:[%s2 + $0x180] sm:$0xff]
  %v585 = vld [vmem:[%s2 + $0x188] sm:$0xff]
  %v586 = vld [vmem:[%s2 + $0x190] sm:$0xff]
  %v587 = vld [vmem:[%s2 + $0x198] sm:$0xff]
  %v588 = vld [vmem:[%s2 + $0x1a0] sm:$0xff]
  %v589 = vld [vmem:[%s2 + $0x1a8] sm:$0xff]
  %v590 = vld [vmem:[%s2 + $0x1b0] sm:$0xff]
  %v591 = vld [vmem:[%s2 + $0x1b8] sm:$0xff]
  %v592 = vld [vmem:[%s2 + $0x1c0] sm:$0xff]
  %v593 = vld [vmem:[%s2 + $0x1c8] sm:$0xff]
  %v594 = vld [vmem:[%s2 + $0x1d0] sm:$0xff]
  %v595 = vld [vmem:[%s2 + $0x1d8] sm:$0xff]
  %v596 = vld [vmem:[%s2 + $0x1e0] sm:$0xff]
  %v597 = vld [vmem:[%s2 + $0x1e8] sm:$0xff]
  %v598 = vld [vmem:[%s2 + $0x1f0] sm:$0xff]
  %v599 = vld [vmem:[%s2 + $0x1f8] sm:$0xff]
  %600 = vmatpush.msra.mxu0 %v596
  %601 = vmatpush.msra.mxu0 %v592
  %602 = vmatpush.msra.mxu0 %v588
  %603 = vmatpush.msra.mxu0 %v584
  %604 = vmatpush.msra.mxu0 %v580
  %605 = vmatpush.msra.mxu0 %v576
  %606 = vmatpush.msra.mxu0 %v572
  %607 = vmatpush.msra.mxu0 %v568
  %608 = vmatpush.msra.mxu0 %v564
  %609 = vmatpush.msra.mxu0 %v560
  %610 = vmatpush.msra.mxu0 %v556
  %611 = vmatpush.msra.mxu0 %v552
  %612 = vmatpush.msra.mxu0 %v548
  %613 = vmatpush.msra.mxu0 %v544
  %614 = vmatpush.msra.mxu0 %v540
  %615 = vmatpush.msra.mxu0 %v536
  %616 = vmatmul.f32.gmra.mxu0 %v527
  %v617 = vpop.f32.mrf.mxu0
  %v618 = vadd.f32 0.0, %v617
  %619 = vdwg.mxu0
  %620 = vmatpush.msra.mxu0 %v597
  %621 = vmatpush.msra.mxu0 %v593
  %622 = vmatpush.msra.mxu0 %v589
  %623 = vmatpush.msra.mxu0 %v585
  %624 = vmatpush.msra.mxu0 %v581
  %625 = vmatpush.msra.mxu0 %v577
  %626 = vmatpush.msra.mxu0 %v573
  %627 = vmatpush.msra.mxu0 %v569
  %628 = vmatpush.msra.mxu0 %v565
  %629 = vmatpush.msra.mxu0 %v561
  %630 = vmatpush.msra.mxu0 %v557
  %631 = vmatpush.msra.mxu0 %v553
  %632 = vmatpush.msra.mxu0 %v549
  %633 = vmatpush.msra.mxu0 %v545
  %634 = vmatpush.msra.mxu0 %v541
  %635 = vmatpush.msra.mxu0 %v537
  %636 = vmatmul.f32.gmra.mxu0 %v527
  %v637 = vpop.f32.mrf.mxu0
  %v638 = vadd.f32 0.0, %v637
  %639 = vdwg.mxu0
  %640 = vmatpush.msra.mxu0 %v598
  %641 = vmatpush.msra.mxu0 %v594
  %642 = vmatpush.msra.mxu0 %v590
  %643 = vmatpush.msra.mxu0 %v586
  %644 = vmatpush.msra.mxu0 %v582
  %645 = vmatpush.msra.mxu0 %v578
  %646 = vmatpush.msra.mxu0 %v574
  %647 = vmatpush.msra.mxu0 %v570
  %648 = vmatpush.msra.mxu0 %v566
  %649 = vmatpush.msra.mxu0 %v562
  %650 = vmatpush.msra.mxu0 %v558
  %651 = vmatpush.msra.mxu0 %v554
  %652 = vmatpush.msra.mxu0 %v550
  %653 = vmatpush.msra.mxu0 %v546
  %654 = vmatpush.msra.mxu0 %v542
  %655 = vmatpush.msra.mxu0 %v538
  %656 = vmatmul.f32.gmra.mxu0 %v527
  %v657 = vpop.f32.mrf.mxu0
  %v658 = vadd.f32 0.0, %v657
  %659 = vdwg.mxu0
  %660 = vmatpush.msra.mxu0 %v599
  %661 = vmatpush.msra.mxu0 %v595
  %662 = vmatpush.msra.mxu0 %v591
  %663 = vmatpush.msra.mxu0 %v587
  %664 = vmatpush.msra.mxu0 %v583
  %665 = vmatpush.msra.mxu0 %v579
  %666 = vmatpush.msra.mxu0 %v575
  %667 = vmatpush.msra.mxu0 %v571
  %668 = vmatpush.msra.mxu0 %v567
  %669 = vmatpush.msra.mxu0 %v563
  %670 = vmatpush.msra.mxu0 %v559
  %671 = vmatpush.msra.mxu0 %v555
  %672 = vmatpush.msra.mxu0 %v551
  %673 = vmatpush.msra.mxu0 %v547
  %674 = vmatpush.msra.mxu0 %v543
  %675 = vmatpush.msra.mxu0 %v539
  %676 = vmatmul.f32.gmra.mxu0 %v527
  %v677 = vpop.f32.mrf.mxu0
  %v678 = vadd.f32 0.0, %v677
  %679 = vdwg.mxu0
  %v680 = vadd.f32 %v532, %v618
  %v681 = vadd.f32 %v533, %v638
  %v682 = vadd.f32 %v534, %v658
  %v683 = vadd.f32 %v535, %v678
  %v684 = vxor.u32 %v680, 2147483648
  %v685 = vmul.f32 %v684, 1.442695
  %v686 = vpow.pop %v685
  %v687 = vadd.f32 %v686, 1.0
  %v688 = vrcp.pop %v687
  %v689 = vmul.f32 %v687, %v688
  %v690 = vsub.f32 1.0, %v689
  %v691 = vmul.f32 %v688, %v690
  %v692 = vadd.f32 %v688, %v691
  %vm693 = vweird.f32 %v687
  %vm694 = vweird.f32 %v688
  %vm695 = vmor %vm693, %vm694
  %v696 = vsel %vm695, %v688, %v692
  %v697 = vand.u32 2147483647, %v687
  %vm698 = vcmp.eq.f32.partialorder %v697, 8.507059e+37
  %v699 = vand.u32 %v687, 2147483648
  %v700 = vor.u32 1.1754944e-38, %v699
  %v701 = vsel %vm698, %v700, %v696
  %v702 = vmul.f32 1.0, %v701
  %v703 = vxor.u32 %v681, 2147483648
  %v704 = vmul.f32 %v703, 1.442695
  %v705 = vpow.pop %v704
  %v706 = vadd.f32 %v705, 1.0
  %v707 = vrcp.pop %v706
  %v708 = vmul.f32 %v706, %v707
  %v709 = vsub.f32 1.0, %v708
  %v710 = vmul.f32 %v707, %v709
  %v711 = vadd.f32 %v707, %v710
  %vm712 = vweird.f32 %v706
  %vm713 = vweird.f32 %v707
  %vm714 = vmor %vm712, %vm713
  %v715 = vsel %vm714, %v707, %v711
  %v716 = vand.u32 2147483647, %v706
  %vm717 = vcmp.eq.f32.partialorder %v716, 8.507059e+37
  %v718 = vand.u32 %v706, 2147483648
  %v719 = vor.u32 1.1754944e-38, %v718
  %v720 = vsel %vm717, %v719, %v715
  %v721 = vmul.f32 1.0, %v720
  %v722 = vtanh.pop %v682
  %v723 = vxor.u32 %v683, 2147483648
  %v724 = vmul.f32 %v723, 1.442695
  %v725 = vpow.pop %v724
  %v726 = vadd.f32 %v725, 1.0
  %v727 = vrcp.pop %v726
  %v728 = vmul.f32 %v726, %v727
  %v729 = vsub.f32 1.0, %v728
  %v730 = vmul.f32 %v727, %v729
  %v731 = vadd.f32 %v727, %v730
  %vm732 = vweird.f32 %v726
  %vm733 = vweird.f32 %v727
  %vm734 = vmor %vm732, %vm733
  %v735 = vsel %vm734, %v727, %v731
  %v736 = vand.u32 2147483647, %v726
  %vm737 = vcmp.eq.f32.partialorder %v736, 8.507059e+37
  %v738 = vand.u32 %v726, 2147483648
  %v739 = vor.u32 1.1754944e-38, %v738
  %v740 = vsel %vm737, %v739, %v735
  %v741 = vmul.f32 1.0, %v740
  %v742 = vmul.f32 %v721, %v525
  %v743 = vmul.f32 %v702, %v722
  %v744 = vadd.f32 %v742, %v743
  %v745 = vtanh.pop %v744
  %v746 = vmul.f32 %v741, %v745
  %s747 = scalar_lea.vmem [#allocation3], 8
  %748 = vst [vmem:[%s747] sm:$0xff] %v746
  %s749 = smul.u32 2, 4
  %s750 = smul.addr %s749, 8
  %s751 = scalar_lea.vmem [#allocation2], %s750
  %v752 = vld [vmem:[%s751] sm:$0xff]
  %v753 = vld [vmem:[%s751 + $0x8] sm:$0xff]
  %v754 = vld [vmem:[%s751 + $0x10] sm:$0xff]
  %v755 = vld [vmem:[%s751 + $0x18] sm:$0xff]
  %v756 = vld [vmem:[%s2] sm:$0xff]
  %v757 = vld [vmem:[%s2 + $0x8] sm:$0xff]
  %v758 = vld [vmem:[%s2 + $0x10] sm:$0xff]
  %v759 = vld [vmem:[%s2 + $0x18] sm:$0xff]
  %v760 = vld [vmem:[%s2 + $0x20] sm:$0xff]
  %v761 = vld [vmem:[%s2 + $0x28] sm:$0xff]
  %v762 = vld [vmem:[%s2 + $0x30] sm:$0xff]
  %v763 = vld [vmem:[%s2 + $0x38] sm:$0xff]
  %v764 = vld [vmem:[%s2 + $0x40] sm:$0xff]
  %v765 = vld [vmem:[%s2 + $0x48] sm:$0xff]
  %v766 = vld [vmem:[%s2 + $0x50] sm:$0xff]
  %v767 = vld [vmem:[%s2 + $0x58] sm:$0xff]
  %v768 = vld [vmem:[%s2 + $0x60] sm:$0xff]
  %v769 = vld [vmem:[%s2 + $0x68] sm:$0xff]
  %v770 = vld [vmem:[%s2 + $0x70] sm:$0xff]
  %v771 = vld [vmem:[%s2 + $0x78] sm:$0xff]
  %v772 = vld [vmem:[%s2 + $0x80] sm:$0xff]
  %v773 = vld [vmem:[%s2 + $0x88] sm:$0xff]
  %v774 = vld [vmem:[%s2 + $0x90] sm:$0xff]
  %v775 = vld [vmem:[%s2 + $0x98] sm:$0xff]
  %v776 = vld [vmem:[%s2 + $0xa0] sm:$0xff]
  %v777 = vld [vmem:[%s2 + $0xa8] sm:$0xff]
  %v778 = vld [vmem:[%s2 + $0xb0] sm:$0xff]
  %v779 = vld [vmem:[%s2 + $0xb8] sm:$0xff]
  %v780 = vld [vmem:[%s2 + $0xc0] sm:$0xff]
  %v781 = vld [vmem:[%s2 + $0xc8] sm:$0xff]
  %v782 = vld [vmem:[%s2 + $0xd0] sm:$0xff]
  %v783 = vld [vmem:[%s2 + $0xd8] sm:$0xff]
  %v784 = vld [vmem:[%s2 + $0xe0] sm:$0xff]
  %v785 = vld [vmem:[%s2 + $0xe8] sm:$0xff]
  %v786 = vld [vmem:[%s2 + $0xf0] sm:$0xff]
  %v787 = vld [vmem:[%s2 + $0xf8] sm:$0xff]
  %v788 = vld [vmem:[%s2 + $0x100] sm:$0xff]
  %v789 = vld [vmem:[%s2 + $0x108] sm:$0xff]
  %v790 = vld [vmem:[%s2 + $0x110] sm:$0xff]
  %v791 = vld [vmem:[%s2 + $0x118] sm:$0xff]
  %v792 = vld [vmem:[%s2 + $0x120] sm:$0xff]
  %v793 = vld [vmem:[%s2 + $0x128] sm:$0xff]
  %v794 = vld [vmem:[%s2 + $0x130] sm:$0xff]
  %v795 = vld [vmem:[%s2 + $0x138] sm:$0xff]
  %v796 = vld [vmem:[%s2 + $0x140] sm:$0xff]
  %v797 = vld [vmem:[%s2 + $0x148] sm:$0xff]
  %v798 = vld [vmem:[%s2 + $0x150] sm:$0xff]
  %v799 = vld [vmem:[%s2 + $0x158] sm:$0xff]
  %v800 = vld [vmem:[%s2 + $0x160] sm:$0xff]
  %v801 = vld [vmem:[%s2 + $0x168] sm:$0xff]
  %v802 = vld [vmem:[%s2 + $0x170] sm:$0xff]
  %v803 = vld [vmem:[%s2 + $0x178] sm:$0xff]
  %v804 = vld [vmem:[%s2 + $0x180] sm:$0xff]
  %v805 = vld [vmem:[%s2 + $0x188] sm:$0xff]
  %v806 = vld [vmem:[%s2 + $0x190] sm:$0xff]
  %v807 = vld [vmem:[%s2 + $0x198] sm:$0xff]
  %v808 = vld [vmem:[%s2 + $0x1a0] sm:$0xff]
  %v809 = vld [vmem:[%s2 + $0x1a8] sm:$0xff]
  %v810 = vld [vmem:[%s2 + $0x1b0] sm:$0xff]
  %v811 = vld [vmem:[%s2 + $0x1b8] sm:$0xff]
  %v812 = vld [vmem:[%s2 + $0x1c0] sm:$0xff]
  %v813 = vld [vmem:[%s2 + $0x1c8] sm:$0xff]
  %v814 = vld [vmem:[%s2 + $0x1d0] sm:$0xff]
  %v815 = vld [vmem:[%s2 + $0x1d8] sm:$0xff]
  %v816 = vld [vmem:[%s2 + $0x1e0] sm:$0xff]
  %v817 = vld [vmem:[%s2 + $0x1e8] sm:$0xff]
  %v818 = vld [vmem:[%s2 + $0x1f0] sm:$0xff]
  %v819 = vld [vmem:[%s2 + $0x1f8] sm:$0xff]
  %820 = vmatpush.msra.mxu0 %v816
  %821 = vmatpush.msra.mxu0 %v812
  %822 = vmatpush.msra.mxu0 %v808
  %823 = vmatpush.msra.mxu0 %v804
  %824 = vmatpush.msra.mxu0 %v800
  %825 = vmatpush.msra.mxu0 %v796
  %826 = vmatpush.msra.mxu0 %v792
  %827 = vmatpush.msra.mxu0 %v788
  %828 = vmatpush.msra.mxu0 %v784
  %829 = vmatpush.msra.mxu0 %v780
  %830 = vmatpush.msra.mxu0 %v776
  %831 = vmatpush.msra.mxu0 %v772
  %832 = vmatpush.msra.mxu0 %v768
  %833 = vmatpush.msra.mxu0 %v764
  %834 = vmatpush.msra.mxu0 %v760
  %835 = vmatpush.msra.mxu0 %v756
  %836 = vmatmul.f32.gmra.mxu0 %v746
  %v837 = vpop.f32.mrf.mxu0
  %v838 = vadd.f32 0.0, %v837
  %839 = vdwg.mxu0
  %840 = vmatpush.msra.mxu0 %v817
  %841 = vmatpush.msra.mxu0 %v813
  %842 = vmatpush.msra.mxu0 %v809
  %843 = vmatpush.msra.mxu0 %v805
  %844 = vmatpush.msra.mxu0 %v801
  %845 = vmatpush.msra.mxu0 %v797
  %846 = vmatpush.msra.mxu0 %v793
  %847 = vmatpush.msra.mxu0 %v789
  %848 = vmatpush.msra.mxu0 %v785
  %849 = vmatpush.msra.mxu0 %v781
  %850 = vmatpush.msra.mxu0 %v777
  %851 = vmatpush.msra.mxu0 %v773
  %852 = vmatpush.msra.mxu0 %v769
  %853 = vmatpush.msra.mxu0 %v765
  %854 = vmatpush.msra.mxu0 %v761
  %855 = vmatpush.msra.mxu0 %v757
  %856 = vmatmul.f32.gmra.mxu0 %v746
  %v857 = vpop.f32.mrf.mxu0
  %v858 = vadd.f32 0.0, %v857
  %859 = vdwg.mxu0
  %860 = vmatpush.msra.mxu0 %v818
  %861 = vmatpush.msra.mxu0 %v814
  %862 = vmatpush.msra.mxu0 %v810
  %863 = vmatpush.msra.mxu0 %v806
  %864 = vmatpush.msra.mxu0 %v802
  %865 = vmatpush.msra.mxu0 %v798
  %866 = vmatpush.msra.mxu0 %v794
  %867 = vmatpush.msra.mxu0 %v790
  %868 = vmatpush.msra.mxu0 %v786
  %869 = vmatpush.msra.mxu0 %v782
  %870 = vmatpush.msra.mxu0 %v778
  %871 = vmatpush.msra.mxu0 %v774
  %872 = vmatpush.msra.mxu0 %v770
  %873 = vmatpush.msra.mxu0 %v766
  %874 = vmatpush.msra.mxu0 %v762
  %875 = vmatpush.msra.mxu0 %v758
  %876 = vmatmul.f32.gmra.mxu0 %v746
  %v877 = vpop.f32.mrf.mxu0
  %v878 = vadd.f32 0.0, %v877
  %879 = vdwg.mxu0
  %880 = vmatpush.msra.mxu0 %v819
  %881 = vmatpush.msra.mxu0 %v815
  %882 = vmatpush.msra.mxu0 %v811
  %883 = vmatpush.msra.mxu0 %v807
  %884 = vmatpush.msra.mxu0 %v803
  %885 = vmatpush.msra.mxu0 %v799
  %886 = vmatpush.msra.mxu0 %v795
  %887 = vmatpush.msra.mxu0 %v791
  %888 = vmatpush.msra.mxu0 %v787
  %889 = vmatpush.msra.mxu0 %v783
  %890 = vmatpush.msra.mxu0 %v779
  %891 = vmatpush.msra.mxu0 %v775
  %892 = vmatpush.msra.mxu0 %v771
  %893 = vmatpush.msra.mxu0 %v767
  %894 = vmatpush.msra.mxu0 %v763
  %895 = vmatpush.msra.mxu0 %v759
  %896 = vmatmul.f32.gmra.mxu0 %v746
  %v897 = vpop.f32.mrf.mxu0
  %v898 = vadd.f32 0.0, %v897
  %899 = vdwg.mxu0
  %v900 = vadd.f32 %v752, %v838
  %v901 = vadd.f32 %v753, %v858
  %v902 = vadd.f32 %v754, %v878
  %v903 = vadd.f32 %v755, %v898
  %v904 = vxor.u32 %v900, 2147483648
  %v905 = vmul.f32 %v904, 1.442695
  %v906 = vpow.pop %v905
  %v907 = vadd.f32 %v906, 1.0
  %v908 = vrcp.pop %v907
  %v909 = vmul.f32 %v907, %v908
  %v910 = vsub.f32 1.0, %v909
  %v911 = vmul.f32 %v908, %v910
  %v912 = vadd.f32 %v908, %v911
  %vm913 = vweird.f32 %v907
  %vm914 = vweird.f32 %v908
  %vm915 = vmor %vm913, %vm914
  %v916 = vsel %vm915, %v908, %v912
  %v917 = vand.u32 2147483647, %v907
  %vm918 = vcmp.eq.f32.partialorder %v917, 8.507059e+37
  %v919 = vand.u32 %v907, 2147483648
  %v920 = vor.u32 1.1754944e-38, %v919
  %v921 = vsel %vm918, %v920, %v916
  %v922 = vmul.f32 1.0, %v921
  %v923 = vxor.u32 %v901, 2147483648
  %v924 = vmul.f32 %v923, 1.442695
  %v925 = vpow.pop %v924
  %v926 = vadd.f32 %v925, 1.0
  %v927 = vrcp.pop %v926
  %v928 = vmul.f32 %v926, %v927
  %v929 = vsub.f32 1.0, %v928
  %v930 = vmul.f32 %v927, %v929
  %v931 = vadd.f32 %v927, %v930
  %vm932 = vweird.f32 %v926
  %vm933 = vweird.f32 %v927
  %vm934 = vmor %vm932, %vm933
  %v935 = vsel %vm934, %v927, %v931
  %v936 = vand.u32 2147483647, %v926
  %vm937 = vcmp.eq.f32.partialorder %v936, 8.507059e+37
  %v938 = vand.u32 %v926, 2147483648
  %v939 = vor.u32 1.1754944e-38, %v938
  %v940 = vsel %vm937, %v939, %v935
  %v941 = vmul.f32 1.0, %v940
  %v942 = vtanh.pop %v902
  %v943 = vxor.u32 %v903, 2147483648
  %v944 = vmul.f32 %v943, 1.442695
  %v945 = vpow.pop %v944
  %v946 = vadd.f32 %v945, 1.0
  %v947 = vrcp.pop %v946
  %v948 = vmul.f32 %v946, %v947
  %v949 = vsub.f32 1.0, %v948
  %v950 = vmul.f32 %v947, %v949
  %v951 = vadd.f32 %v947, %v950
  %vm952 = vweird.f32 %v946
  %vm953 = vweird.f32 %v947
  %vm954 = vmor %vm952, %vm953
  %v955 = vsel %vm954, %v947, %v951
  %v956 = vand.u32 2147483647, %v946
  %vm957 = vcmp.eq.f32.partialorder %v956, 8.507059e+37
  %v958 = vand.u32 %v946, 2147483648
  %v959 = vor.u32 1.1754944e-38, %v958
  %v960 = vsel %vm957, %v959, %v955
  %v961 = vmul.f32 1.0, %v960
  %v962 = vmul.f32 %v941, %v744
  %v963 = vmul.f32 %v922, %v942
  %v964 = vadd.f32 %v962, %v963
  %v965 = vtanh.pop %v964
  %v966 = vmul.f32 %v961, %v965
  %s967 = scalar_lea.vmem [#allocation3], 16
  %968 = vst [vmem:[%s967] sm:$0xff] %v966
  %s969 = smul.u32 3, 4
  %s970 = smul.addr %s969, 8
  %s971 = scalar_lea.vmem [#allocation2], %s970
  %v972 = vld [vmem:[%s971] sm:$0xff]
  %v973 = vld [vmem:[%s971 + $0x8] sm:$0xff]
  %v974 = vld [vmem:[%s971 + $0x10] sm:$0xff]
  %v975 = vld [vmem:[%s971 + $0x18] sm:$0xff]
  %v976 = vld [vmem:[%s2] sm:$0xff]
  %v977 = vld [vmem:[%s2 + $0x8] sm:$0xff]
  %v978 = vld [vmem:[%s2 + $0x10] sm:$0xff]
  %v979 = vld [vmem:[%s2 + $0x18] sm:$0xff]
  %v980 = vld [vmem:[%s2 + $0x20] sm:$0xff]
  %v981 = vld [vmem:[%s2 + $0x28] sm:$0xff]
  %v982 = vld [vmem:[%s2 + $0x30] sm:$0xff]
  %v983 = vld [vmem:[%s2 + $0x38] sm:$0xff]
  %v984 = vld [vmem:[%s2 + $0x40] sm:$0xff]
  %v985 = vld [vmem:[%s2 + $0x48] sm:$0xff]
  %v986 = vld [vmem:[%s2 + $0x50] sm:$0xff]
  %v987 = vld [vmem:[%s2 + $0x58] sm:$0xff]
  %v988 = vld [vmem:[%s2 + $0x60] sm:$0xff]
  %v989 = vld [vmem:[%s2 + $0x68] sm:$0xff]
  %v990 = vld [vmem:[%s2 + $0x70] sm:$0xff]
  %v991 = vld [vmem:[%s2 + $0x78] sm:$0xff]
  %v992 = vld [vmem:[%s2 + $0x80] sm:$0xff]
  %v993 = vld [vmem:[%s2 + $0x88] sm:$0xff]
  %v994 = vld [vmem:[%s2 + $0x90] sm:$0xff]
  %v995 = vld [vmem:[%s2 + $0x98] sm:$0xff]
  %v996 = vld [vmem:[%s2 + $0xa0] sm:$0xff]
  %v997 = vld [vmem:[%s2 + $0xa8] sm:$0xff]
  %v998 = vld [vmem:[%s2 + $0xb0] sm:$0xff]
  %v999 = vld [vmem:[%s2 + $0xb8] sm:$0xff]
  %v1000 = vld [vmem:[%s2 + $0xc0] sm:$0xff]
  %v1001 = vld [vmem:[%s2 + $0xc8] sm:$0xff]
  %v1002 = vld [vmem:[%s2 + $0xd0] sm:$0xff]
  %v1003 = vld [vmem:[%s2 + $0xd8] sm:$0xff]
  %v1004 = vld [vmem:[%s2 + $0xe0] sm:$0xff]
  %v1005 = vld [vmem:[%s2 + $0xe8] sm:$0xff]
  %v1006 = vld [vmem:[%s2 + $0xf0] sm:$0xff]
  %v1007 = vld [vmem:[%s2 + $0xf8] sm:$0xff]
  %v1008 = vld [vmem:[%s2 + $0x100] sm:$0xff]
  %v1009 = vld [vmem:[%s2 + $0x108] sm:$0xff]
  %v1010 = vld [vmem:[%s2 + $0x110] sm:$0xff]
  %v1011 = vld [vmem:[%s2 + $0x118] sm:$0xff]
  %v1012 = vld [vmem:[%s2 + $0x120] sm:$0xff]
  %v1013 = vld [vmem:[%s2 + $0x128] sm:$0xff]
  %v1014 = vld [vmem:[%s2 + $0x130] sm:$0xff]
  %v1015 = vld [vmem:[%s2 + $0x138] sm:$0xff]
  %v1016 = vld [vmem:[%s2 + $0x140] sm:$0xff]
  %v1017 = vld [vmem:[%s2 + $0x148] sm:$0xff]
  %v1018 = vld [vmem:[%s2 + $0x150] sm:$0xff]
  %v1019 = vld [vmem:[%s2 + $0x158] sm:$0xff]
  %v1020 = vld [vmem:[%s2 + $0x160] sm:$0xff]
  %v1021 = vld [vmem:[%s2 + $0x168] sm:$0xff]
  %v1022 = vld [vmem:[%s2 + $0x170] sm:$0xff]
  %v1023 = vld [vmem:[%s2 + $0x178] sm:$0xff]
  %v1024 = vld [vmem:[%s2 + $0x180] sm:$0xff]
  %v1025 = vld [vmem:[%s2 + $0x188] sm:$0xff]
  %v1026 = vld [vmem:[%s2 + $0x190] sm:$0xff]
  %v1027 = vld [vmem:[%s2 + $0x198] sm:$0xff]
  %v1028 = vld [vmem:[%s2 + $0x1a0] sm:$0xff]
  %v1029 = vld [vmem:[%s2 + $0x1a8] sm:$0xff]
  %v1030 = vld [vmem:[%s2 + $0x1b0] sm:$0xff]
  %v1031 = vld [vmem:[%s2 + $0x1b8] sm:$0xff]
  %v1032 = vld [vmem:[%s2 + $0x1c0] sm:$0xff]
  %v1033 = vld [vmem:[%s2 + $0x1c8] sm:$0xff]
  %v1034 = vld [vmem:[%s2 + $0x1d0] sm:$0xff]
  %v1035 = vld [vmem:[%s2 + $0x1d8] sm:$0xff]
  %v1036 = vld [vmem:[%s2 + $0x1e0] sm:$0xff]
  %v1037 = vld [vmem:[%s2 + $0x1e8] sm:$0xff]
  %v1038 = vld [vmem:[%s2 + $0x1f0] sm:$0xff]
  %v1039 = vld [vmem:[%s2 + $0x1f8] sm:$0xff]
  %1040 = vmatpush.msra.mxu0 %v1036
  %1041 = vmatpush.msra.mxu0 %v1032
  %1042 = vmatpush.msra.mxu0 %v1028
  %1043 = vmatpush.msra.mxu0 %v1024
  %1044 = vmatpush.msra.mxu0 %v1020
  %1045 = vmatpush.msra.mxu0 %v1016
  %1046 = vmatpush.msra.mxu0 %v1012
  %1047 = vmatpush.msra.mxu0 %v1008
  %1048 = vmatpush.msra.mxu0 %v1004
  %1049 = vmatpush.msra.mxu0 %v1000
  %1050 = vmatpush.msra.mxu0 %v996
  %1051 = vmatpush.msra.mxu0 %v992
  %1052 = vmatpush.msra.mxu0 %v988
  %1053 = vmatpush.msra.mxu0 %v984
  %1054 = vmatpush.msra.mxu0 %v980
  %1055 = vmatpush.msra.mxu0 %v976
  %1056 = vmatmul.f32.gmra.mxu0 %v966
  %v1057 = vpop.f32.mrf.mxu0
  %v1058 = vadd.f32 0.0, %v1057
  %1059 = vdwg.mxu0
  %1060 = vmatpush.msra.mxu0 %v1037
  %1061 = vmatpush.msra.mxu0 %v1033
  %1062 = vmatpush.msra.mxu0 %v1029
  %1063 = vmatpush.msra.mxu0 %v1025
  %1064 = vmatpush.msra.mxu0 %v1021
  %1065 = vmatpush.msra.mxu0 %v1017
  %1066 = vmatpush.msra.mxu0 %v1013
  %1067 = vmatpush.msra.mxu0 %v1009
  %1068 = vmatpush.msra.mxu0 %v1005
  %1069 = vmatpush.msra.mxu0 %v1001
  %1070 = vmatpush.msra.mxu0 %v997
  %1071 = vmatpush.msra.mxu0 %v993
  %1072 = vmatpush.msra.mxu0 %v989
  %1073 = vmatpush.msra.mxu0 %v985
  %1074 = vmatpush.msra.mxu0 %v981
  %1075 = vmatpush.msra.mxu0 %v977
  %1076 = vmatmul.f32.gmra.mxu0 %v966
  %v1077 = vpop.f32.mrf.mxu0
  %v1078 = vadd.f32 0.0, %v1077
  %1079 = vdwg.mxu0
  %1080 = vmatpush.msra.mxu0 %v1038
  %1081 = vmatpush.msra.mxu0 %v1034
  %1082 = vmatpush.msra.mxu0 %v1030
  %1083 = vmatpush.msra.mxu0 %v1026
  %1084 = vmatpush.msra.mxu0 %v1022
  %1085 = vmatpush.msra.mxu0 %v1018
  %1086 = vmatpush.msra.mxu0 %v1014
  %1087 = vmatpush.msra.mxu0 %v1010
  %1088 = vmatpush.msra.mxu0 %v1006
  %1089 = vmatpush.msra.mxu0 %v1002
  %1090 = vmatpush.msra.mxu0 %v998
  %1091 = vmatpush.msra.mxu0 %v994
  %1092 = vmatpush.msra.mxu0 %v990
  %1093 = vmatpush.msra.mxu0 %v986
  %1094 = vmatpush.msra.mxu0 %v982
  %1095 = vmatpush.msra.mxu0 %v978
  %1096 = vmatmul.f32.gmra.mxu0 %v966
  %v1097 = vpop.f32.mrf.mxu0
  %v1098 = vadd.f32 0.0, %v1097
  %1099 = vdwg.mxu0
  %1100 = vmatpush.msra.mxu0 %v1039
  %1101 = vmatpush.msra.mxu0 %v1035
  %1102 = vmatpush.msra.mxu0 %v1031
  %1103 = vmatpush.msra.mxu0 %v1027
  %1104 = vmatpush.msra.mxu0 %v1023
  %1105 = vmatpush.msra.mxu0 %v1019
  %1106 = vmatpush.msra.mxu0 %v1015
  %1107 = vmatpush.msra.mxu0 %v1011
  %1108 = vmatpush.msra.mxu0 %v1007
  %1109 = vmatpush.msra.mxu0 %v1003
  %1110 = vmatpush.msra.mxu0 %v999
  %1111 = vmatpush.msra.mxu0 %v995
  %1112 = vmatpush.msra.mxu0 %v991
  %1113 = vmatpush.msra.mxu0 %v987
  %1114 = vmatpush.msra.mxu0 %v983
  %1115 = vmatpush.msra.mxu0 %v979
  %1116 = vmatmul.f32.gmra.mxu0 %v966
  %v1117 = vpop.f32.mrf.mxu0
  %v1118 = vadd.f32 0.0, %v1117
  %1119 = vdwg.mxu0
  %v1120 = vadd.f32 %v972, %v1058
  %v1121 = vadd.f32 %v973, %v1078
  %v1122 = vadd.f32 %v974, %v1098
  %v1123 = vadd.f32 %v975, %v1118
  %v1124 = vxor.u32 %v1120, 2147483648
  %v1125 = vmul.f32 %v1124, 1.442695
  %v1126 = vpow.pop %v1125
  %v1127 = vadd.f32 %v1126, 1.0
  %v1128 = vrcp.pop %v1127
  %v1129 = vmul.f32 %v1127, %v1128
  %v1130 = vsub.f32 1.0, %v1129
  %v1131 = vmul.f32 %v1128, %v1130
  %v1132 = vadd.f32 %v1128, %v1131
  %vm1133 = vweird.f32 %v1127
  %vm1134 = vweird.f32 %v1128
  %vm1135 = vmor %vm1133, %vm1134
  %v1136 = vsel %vm1135, %v1128, %v1132
  %v1137 = vand.u32 2147483647, %v1127
  %vm1138 = vcmp.eq.f32.partialorder %v1137, 8.507059e+37
  %v1139 = vand.u32 %v1127, 2147483648
  %v1140 = vor.u32 1.1754944e-38, %v1139
  %v1141 = vsel %vm1138, %v1140, %v1136
  %v1142 = vmul.f32 1.0, %v1141
  %v1143 = vxor.u32 %v1121, 2147483648
  %v1144 = vmul.f32 %v1143, 1.442695
  %v1145 = vpow.pop %v1144
  %v1146 = vadd.f32 %v1145, 1.0
  %v1147 = vrcp.pop %v1146
  %v1148 = vmul.f32 %v1146, %v1147
  %v1149 = vsub.f32 1.0, %v1148
  %v1150 = vmul.f32 %v1147, %v1149
  %v1151 = vadd.f32 %v1147, %v1150
  %vm1152 = vweird.f32 %v1146
  %vm1153 = vweird.f32 %v1147
  %vm1154 = vmor %vm1152, %vm1153
  %v1155 = vsel %vm1154, %v1147, %v1151
  %v1156 = vand.u32 2147483647, %v1146
  %vm1157 = vcmp.eq.f32.partialorder %v1156, 8.507059e+37
  %v1158 = vand.u32 %v1146, 2147483648
  %v1159 = vor.u32 1.1754944e-38, %v1158
  %v1160 = vsel %vm1157, %v1159, %v1155
  %v1161 = vmul.f32 1.0, %v1160
  %v1162 = vtanh.pop %v1122
  %v1163 = vxor.u32 %v1123, 2147483648
  %v1164 = vmul.f32 %v1163, 1.442695
  %v1165 = vpow.pop %v1164
  %v1166 = vadd.f32 %v1165, 1.0
  %v1167 = vrcp.pop %v1166
  %v1168 = vmul.f32 %v1166, %v1167
  %v1169 = vsub.f32 1.0, %v1168
  %v1170 = vmul.f32 %v1167, %v1169
  %v1171 = vadd.f32 %v1167, %v1170
  %vm1172 = vweird.f32 %v1166
  %vm1173 = vweird.f32 %v1167
  %vm1174 = vmor %vm1172, %vm1173
  %v1175 = vsel %vm1174, %v1167, %v1171
  %v1176 = vand.u32 2147483647, %v1166
  %vm1177 = vcmp.eq.f32.partialorder %v1176, 8.507059e+37
  %v1178 = vand.u32 %v1166, 2147483648
  %v1179 = vor.u32 1.1754944e-38, %v1178
  %v1180 = vsel %vm1177, %v1179, %v1175
  %v1181 = vmul.f32 1.0, %v1180
  %v1182 = vmul.f32 %v1161, %v964
  %v1183 = vmul.f32 %v1142, %v1162
  %v1184 = vadd.f32 %v1182, %v1183
  %v1185 = vtanh.pop %v1184
  %v1186 = vmul.f32 %v1181, %v1185
  %s1187 = scalar_lea.vmem [#allocation3], 24
  %1188 = vst [vmem:[%s1187] sm:$0xff] %v1186
  %s1189 = smul.u32 4, 4
  %s1190 = smul.addr %s1189, 8
  %s1191 = scalar_lea.vmem [#allocation2], %s1190
  %v1192 = vld [vmem:[%s1191] sm:$0xff]
  %v1193 = vld [vmem:[%s1191 + $0x8] sm:$0xff]
  %v1194 = vld [vmem:[%s1191 + $0x10] sm:$0xff]
  %v1195 = vld [vmem:[%s1191 + $0x18] sm:$0xff]
  %v1196 = vld [vmem:[%s2] sm:$0xff]
  %v1197 = vld [vmem:[%s2 + $0x8] sm:$0xff]
  %v1198 = vld [vmem:[%s2 + $0x10] sm:$0xff]
  %v1199 = vld [vmem:[%s2 + $0x18] sm:$0xff]
  %v1200 = vld [vmem:[%s2 + $0x20] sm:$0xff]
  %v1201 = vld [vmem:[%s2 + $0x28] sm:$0xff]
  %v1202 = vld [vmem:[%s2 + $0x30] sm:$0xff]
  %v1203 = vld [vmem:[%s2 + $0x38] sm:$0xff]
  %v1204 = vld [vmem:[%s2 + $0x40] sm:$0xff]
  %v1205 = vld [vmem:[%s2 + $0x48] sm:$0xff]
  %v1206 = vld [vmem:[%s2 + $0x50] sm:$0xff]
  %v1207 = vld [vmem:[%s2 + $0x58] sm:$0xff]
  %v1208 = vld [vmem:[%s2 + $0x60] sm:$0xff]
  %v1209 = vld [vmem:[%s2 + $0x68] sm:$0xff]
  %v1210 = vld [vmem:[%s2 + $0x70] sm:$0xff]
  %v1211 = vld [vmem:[%s2 + $0x78] sm:$0xff]
  %v1212 = vld [vmem:[%s2 + $0x80] sm:$0xff]
  %v1213 = vld [vmem:[%s2 + $0x88] sm:$0xff]
  %v1214 = vld [vmem:[%s2 + $0x90] sm:$0xff]
  %v1215 = vld [vmem:[%s2 + $0x98] sm:$0xff]
  %v1216 = vld [vmem:[%s2 + $0xa0] sm:$0xff]
  %v1217 = vld [vmem:[%s2 + $0xa8] sm:$0xff]
  %v1218 = vld [vmem:[%s2 + $0xb0] sm:$0xff]
  %v1219 = vld [vmem:[%s2 + $0xb8] sm:$0xff]
  %v1220 = vld [vmem:[%s2 + $0xc0] sm:$0xff]
  %v1221 = vld [vmem:[%s2 + $0xc8] sm:$0xff]
  %v1222 = vld [vmem:[%s2 + $0xd0] sm:$0xff]
  %v1223 = vld [vmem:[%s2 + $0xd8] sm:$0xff]
  %v1224 = vld [vmem:[%s2 + $0xe0] sm:$0xff]
  %v1225 = vld [vmem:[%s2 + $0xe8] sm:$0xff]
  %v1226 = vld [vmem:[%s2 + $0xf0] sm:$0xff]
  %v1227 = vld [vmem:[%s2 + $0xf8] sm:$0xff]
  %v1228 = vld [vmem:[%s2 + $0x100] sm:$0xff]
  %v1229 = vld [vmem:[%s2 + $0x108] sm:$0xff]
  %v1230 = vld [vmem:[%s2 + $0x110] sm:$0xff]
  %v1231 = vld [vmem:[%s2 + $0x118] sm:$0xff]
  %v1232 = vld [vmem:[%s2 + $0x120] sm:$0xff]
  %v1233 = vld [vmem:[%s2 + $0x128] sm:$0xff]
  %v1234 = vld [vmem:[%s2 + $0x130] sm:$0xff]
  %v1235 = vld [vmem:[%s2 + $0x138] sm:$0xff]
  %v1236 = vld [vmem:[%s2 + $0x140] sm:$0xff]
  %v1237 = vld [vmem:[%s2 + $0x148] sm:$0xff]
  %v1238 = vld [vmem:[%s2 + $0x150] sm:$0xff]
  %v1239 = vld [vmem:[%s2 + $0x158] sm:$0xff]
  %v1240 = vld [vmem:[%s2 + $0x160] sm:$0xff]
  %v1241 = vld [vmem:[%s2 + $0x168] sm:$0xff]
  %v1242 = vld [vmem:[%s2 + $0x170] sm:$0xff]
  %v1243 = vld [vmem:[%s2 + $0x178] sm:$0xff]
  %v1244 = vld [vmem:[%s2 + $0x180] sm:$0xff]
  %v1245 = vld [vmem:[%s2 + $0x188] sm:$0xff]
  %v1246 = vld [vmem:[%s2 + $0x190] sm:$0xff]
  %v1247 = vld [vmem:[%s2 + $0x198] sm:$0xff]
  %v1248 = vld [vmem:[%s2 + $0x1a0] sm:$0xff]
  %v1249 = vld [vmem:[%s2 + $0x1a8] sm:$0xff]
  %v1250 = vld [vmem:[%s2 + $0x1b0] sm:$0xff]
  %v1251 = vld [vmem:[%s2 + $0x1b8] sm:$0xff]
  %v1252 = vld [vmem:[%s2 + $0x1c0] sm:$0xff]
  %v1253 = vld [vmem:[%s2 + $0x1c8] sm:$0xff]
  %v1254 = vld [vmem:[%s2 + $0x1d0] sm:$0xff]
  %v1255 = vld [vmem:[%s2 + $0x1d8] sm:$0xff]
  %v1256 = vld [vmem:[%s2 + $0x1e0] sm:$0xff]
  %v1257 = vld [vmem:[%s2 + $0x1e8] sm:$0xff]
  %v1258 = vld [vmem:[%s2 + $0x1f0] sm:$0xff]
  %v1259 = vld [vmem:[%s2 + $0x1f8] sm:$0xff]
  %1260 = vmatpush.msra.mxu0 %v1256
  %1261 = vmatpush.msra.mxu0 %v1252
  %1262 = vmatpush.msra.mxu0 %v1248
  %1263 = vmatpush.msra.mxu0 %v1244
  %1264 = vmatpush.msra.mxu0 %v1240
  %1265 = vmatpush.msra.mxu0 %v1236
  %1266 = vmatpush.msra.mxu0 %v1232
  %1267 = vmatpush.msra.mxu0 %v1228
  %1268 = vmatpush.msra.mxu0 %v1224
  %1269 = vmatpush.msra.mxu0 %v1220
  %1270 = vmatpush.msra.mxu0 %v1216
  %1271 = vmatpush.msra.mxu0 %v1212
  %1272 = vmatpush.msra.mxu0 %v1208
  %1273 = vmatpush.msra.mxu0 %v1204
  %1274 = vmatpush.msra.mxu0 %v1200
  %1275 = vmatpush.msra.mxu0 %v1196
  %1276 = vmatmul.f32.gmra.mxu0 %v1186
  %v1277 = vpop.f32.mrf.mxu0
  %v1278 = vadd.f32 0.0, %v1277
  %1279 = vdwg.mxu0
  %1280 = vmatpush.msra.mxu0 %v1257
  %1281 = vmatpush.msra.mxu0 %v1253
  %1282 = vmatpush.msra.mxu0 %v1249
  %1283 = vmatpush.msra.mxu0 %v1245
  %1284 = vmatpush.msra.mxu0 %v1241
  %1285 = vmatpush.msra.mxu0 %v1237
  %1286 = vmatpush.msra.mxu0 %v1233
  %1287 = vmatpush.msra.mxu0 %v1229
  %1288 = vmatpush.msra.mxu0 %v1225
  %1289 = vmatpush.msra.mxu0 %v1221
  %1290 = vmatpush.msra.mxu0 %v1217
  %1291 = vmatpush.msra.mxu0 %v1213
  %1292 = vmatpush.msra.mxu0 %v1209
  %1293 = vmatpush.msra.mxu0 %v1205
  %1294 = vmatpush.msra.mxu0 %v1201
  %1295 = vmatpush.msra.mxu0 %v1197
  %1296 = vmatmul.f32.gmra.mxu0 %v1186
  %v1297 = vpop.f32.mrf.mxu0
  %v1298 = vadd.f32 0.0, %v1297
  %1299 = vdwg.mxu0
  %1300 = vmatpush.msra.mxu0 %v1258
  %1301 = vmatpush.msra.mxu0 %v1254
  %1302 = vmatpush.msra.mxu0 %v1250
  %1303 = vmatpush.msra.mxu0 %v1246
  %1304 = vmatpush.msra.mxu0 %v1242
  %1305 = vmatpush.msra.mxu0 %v1238
  %1306 = vmatpush.msra.mxu0 %v1234
  %1307 = vmatpush.msra.mxu0 %v1230
  %1308 = vmatpush.msra.mxu0 %v1226
  %1309 = vmatpush.msra.mxu0 %v1222
  %1310 = vmatpush.msra.mxu0 %v1218
  %1311 = vmatpush.msra.mxu0 %v1214
  %1312 = vmatpush.msra.mxu0 %v1210
  %1313 = vmatpush.msra.mxu0 %v1206
  %1314 = vmatpush.msra.mxu0 %v1202
  %1315 = vmatpush.msra.mxu0 %v1198
  %1316 = vmatmul.f32.gmra.mxu0 %v1186
  %v1317 = vpop.f32.mrf.mxu0
  %v1318 = vadd.f32 0.0, %v1317
  %1319 = vdwg.mxu0
  %1320 = vmatpush.msra.mxu0 %v1259
  %1321 = vmatpush.msra.mxu0 %v1255
  %1322 = vmatpush.msra.mxu0 %v1251
  %1323 = vmatpush.msra.mxu0 %v1247
  %1324 = vmatpush.msra.mxu0 %v1243
  %1325 = vmatpush.msra.mxu0 %v1239
  %1326 = vmatpush.msra.mxu0 %v1235
  %1327 = vmatpush.msra.mxu0 %v1231
  %1328 = vmatpush.msra.mxu0 %v1227
  %1329 = vmatpush.msra.mxu0 %v1223
  %1330 = vmatpush.msra.mxu0 %v1219
  %1331 = vmatpush.msra.mxu0 %v1215
  %1332 = vmatpush.msra.mxu0 %v1211
  %1333 = vmatpush.msra.mxu0 %v1207
  %1334 = vmatpush.msra.mxu0 %v1203
  %1335 = vmatpush.msra.mxu0 %v1199
  %1336 = vmatmul.f32.gmra.mxu0 %v1186
  %v1337 = vpop.f32.mrf.mxu0
  %v1338 = vadd.f32 0.0, %v1337
  %1339 = vdwg.mxu0
  %v1340 = vadd.f32 %v1192, %v1278
  %v1341 = vadd.f32 %v1193, %v1298
  %v1342 = vadd.f32 %v1194, %v1318
  %v1343 = vadd.f32 %v1195, %v1338
  %v1344 = vxor.u32 %v1340, 2147483648
  %v1345 = vmul.f32 %v1344, 1.442695
  %v1346 = vpow.pop %v1345
  %v1347 = vadd.f32 %v1346, 1.0
  %v1348 = vrcp.pop %v1347
  %v1349 = vmul.f32 %v1347, %v1348
  %v1350 = vsub.f32 1.0, %v1349
  %v1351 = vmul.f32 %v1348, %v1350
  %v1352 = vadd.f32 %v1348, %v1351
  %vm1353 = vweird.f32 %v1347
  %vm1354 = vweird.f32 %v1348
  %vm1355 = vmor %vm1353, %vm1354
  %v1356 = vsel %vm1355, %v1348, %v1352
  %v1357 = vand.u32 2147483647, %v1347
  %vm1358 = vcmp.eq.f32.partialorder %v1357, 8.507059e+37
  %v1359 = vand.u32 %v1347, 2147483648
  %v1360 = vor.u32 1.1754944e-38, %v1359
  %v1361 = vsel %vm1358, %v1360, %v1356
  %v1362 = vmul.f32 1.0, %v1361
  %v1363 = vxor.u32 %v1341, 2147483648
  %v1364 = vmul.f32 %v1363, 1.442695
  %v1365 = vpow.pop %v1364
  %v1366 = vadd.f32 %v1365, 1.0
  %v1367 = vrcp.pop %v1366
  %v1368 = vmul.f32 %v1366, %v1367
  %v1369 = vsub.f32 1.0, %v1368
  %v1370 = vmul.f32 %v1367, %v1369
  %v1371 = vadd.f32 %v1367, %v1370
  %vm1372 = vweird.f32 %v1366
  %vm1373 = vweird.f32 %v1367
  %vm1374 = vmor %vm1372, %vm1373
  %v1375 = vsel %vm1374, %v1367, %v1371
  %v1376 = vand.u32 2147483647, %v1366
  %vm1377 = vcmp.eq.f32.partialorder %v1376, 8.507059e+37
  %v1378 = vand.u32 %v1366, 2147483648
  %v1379 = vor.u32 1.1754944e-38, %v1378
  %v1380 = vsel %vm1377, %v1379, %v1375
  %v1381 = vmul.f32 1.0, %v1380
  %v1382 = vtanh.pop %v1342
  %v1383 = vxor.u32 %v1343, 2147483648
  %v1384 = vmul.f32 %v1383, 1.442695
  %v1385 = vpow.pop %v1384
  %v1386 = vadd.f32 %v1385, 1.0
  %v1387 = vrcp.pop %v1386
  %v1388 = vmul.f32 %v1386, %v1387
  %v1389 = vsub.f32 1.0, %v1388
  %v1390 = vmul.f32 %v1387, %v1389
  %v1391 = vadd.f32 %v1387, %v1390
  %vm1392 = vweird.f32 %v1386
  %vm1393 = vweird.f32 %v1387
  %vm1394 = vmor %vm1392, %vm1393
  %v1395 = vsel %vm1394, %v1387, %v1391
  %v1396 = vand.u32 2147483647, %v1386
  %vm1397 = vcmp.eq.f32.partialorder %v1396, 8.507059e+37
  %v1398 = vand.u32 %v1386, 2147483648
  %v1399 = vor.u32 1.1754944e-38, %v1398
  %v1400 = vsel %vm1397, %v1399, %v1395
  %v1401 = vmul.f32 1.0, %v1400
  %v1402 = vmul.f32 %v1381, %v1184
  %v1403 = vmul.f32 %v1362, %v1382
  %v1404 = vadd.f32 %v1402, %v1403
  %v1405 = vtanh.pop %v1404
  %v1406 = vmul.f32 %v1401, %v1405
  %s1407 = scalar_lea.vmem [#allocation3], 32
  %1408 = vst [vmem:[%s1407] sm:$0xff] %v1406
  %s1409 = smul.u32 5, 4
  %s1410 = smul.addr %s1409, 8
  %s1411 = scalar_lea.vmem [#allocation2], %s1410
  %v1412 = vld [vmem:[%s1411] sm:$0xff]
  %v1413 = vld [vmem:[%s1411 + $0x8] sm:$0xff]
  %v1414 = vld [vmem:[%s1411 + $0x10] sm:$0xff]
  %v1415 = vld [vmem:[%s1411 + $0x18] sm:$0xff]
  %v1416 = vld [vmem:[%s2] sm:$0xff]
  %v1417 = vld [vmem:[%s2 + $0x8] sm:$0xff]
  %v1418 = vld [vmem:[%s2 + $0x10] sm:$0xff]
  %v1419 = vld [vmem:[%s2 + $0x18] sm:$0xff]
  %v1420 = vld [vmem:[%s2 + $0x20] sm:$0xff]
  %v1421 = vld [vmem:[%s2 + $0x28] sm:$0xff]
  %v1422 = vld [vmem:[%s2 + $0x30] sm:$0xff]
  %v1423 = vld [vmem:[%s2 + $0x38] sm:$0xff]
  %v1424 = vld [vmem:[%s2 + $0x40] sm:$0xff]
  %v1425 = vld [vmem:[%s2 + $0x48] sm:$0xff]
  %v1426 = vld [vmem:[%s2 + $0x50] sm:$0xff]
  %v1427 = vld [vmem:[%s2 + $0x58] sm:$0xff]
  %v1428 = vld [vmem:[%s2 + $0x60] sm:$0xff]
  %v1429 = vld [vmem:[%s2 + $0x68] sm:$0xff]
  %v1430 = vld [vmem:[%s2 + $0x70] sm:$0xff]
  %v1431 = vld [vmem:[%s2 + $0x78] sm:$0xff]
  %v1432 = vld [vmem:[%s2 + $0x80] sm:$0xff]
  %v1433 = vld [vmem:[%s2 + $0x88] sm:$0xff]
  %v1434 = vld [vmem:[%s2 + $0x90] sm:$0xff]
  %v1435 = vld [vmem:[%s2 + $0x98] sm:$0xff]
  %v1436 = vld [vmem:[%s2 + $0xa0] sm:$0xff]
  %v1437 = vld [vmem:[%s2 + $0xa8] sm:$0xff]
  %v1438 = vld [vmem:[%s2 + $0xb0] sm:$0xff]
  %v1439 = vld [vmem:[%s2 + $0xb8] sm:$0xff]
  %v1440 = vld [vmem:[%s2 + $0xc0] sm:$0xff]
  %v1441 = vld [vmem:[%s2 + $0xc8] sm:$0xff]
  %v1442 = vld [vmem:[%s2 + $0xd0] sm:$0xff]
  %v1443 = vld [vmem:[%s2 + $0xd8] sm:$0xff]
  %v1444 = vld [vmem:[%s2 + $0xe0] sm:$0xff]
  %v1445 = vld [vmem:[%s2 + $0xe8] sm:$0xff]
  %v1446 = vld [vmem:[%s2 + $0xf0] sm:$0xff]
  %v1447 = vld [vmem:[%s2 + $0xf8] sm:$0xff]
  %v1448 = vld [vmem:[%s2 + $0x100] sm:$0xff]
  %v1449 = vld [vmem:[%s2 + $0x108] sm:$0xff]
  %v1450 = vld [vmem:[%s2 + $0x110] sm:$0xff]
  %v1451 = vld [vmem:[%s2 + $0x118] sm:$0xff]
  %v1452 = vld [vmem:[%s2 + $0x120] sm:$0xff]
  %v1453 = vld [vmem:[%s2 + $0x128] sm:$0xff]
  %v1454 = vld [vmem:[%s2 + $0x130] sm:$0xff]
  %v1455 = vld [vmem:[%s2 + $0x138] sm:$0xff]
  %v1456 = vld [vmem:[%s2 + $0x140] sm:$0xff]
  %v1457 = vld [vmem:[%s2 + $0x148] sm:$0xff]
  %v1458 = vld [vmem:[%s2 + $0x150] sm:$0xff]
  %v1459 = vld [vmem:[%s2 + $0x158] sm:$0xff]
  %v1460 = vld [vmem:[%s2 + $0x160] sm:$0xff]
  %v1461 = vld [vmem:[%s2 + $0x168] sm:$0xff]
  %v1462 = vld [vmem:[%s2 + $0x170] sm:$0xff]
  %v1463 = vld [vmem:[%s2 + $0x178] sm:$0xff]
  %v1464 = vld [vmem:[%s2 + $0x180] sm:$0xff]
  %v1465 = vld [vmem:[%s2 + $0x188] sm:$0xff]
  %v1466 = vld [vmem:[%s2 + $0x190] sm:$0xff]
  %v1467 = vld [vmem:[%s2 + $0x198] sm:$0xff]
  %v1468 = vld [vmem:[%s2 + $0x1a0] sm:$0xff]
  %v1469 = vld [vmem:[%s2 + $0x1a8] sm:$0xff]
  %v1470 = vld [vmem:[%s2 + $0x1b0] sm:$0xff]
  %v1471 = vld [vmem:[%s2 + $0x1b8] sm:$0xff]
  %v1472 = vld [vmem:[%s2 + $0x1c0] sm:$0xff]
  %v1473 = vld [vmem:[%s2 + $0x1c8] sm:$0xff]
  %v1474 = vld [vmem:[%s2 + $0x1d0] sm:$0xff]
  %v1475 = vld [vmem:[%s2 + $0x1d8] sm:$0xff]
  %v1476 = vld [vmem:[%s2 + $0x1e0] sm:$0xff]
  %v1477 = vld [vmem:[%s2 + $0x1e8] sm:$0xff]
  %v1478 = vld [vmem:[%s2 + $0x1f0] sm:$0xff]
  %v1479 = vld [vmem:[%s2 + $0x1f8] sm:$0xff]
  %1480 = vmatpush.msra.mxu0 %v1476
  %1481 = vmatpush.msra.mxu0 %v1472
  %1482 = vmatpush.msra.mxu0 %v1468
  %1483 = vmatpush.msra.mxu0 %v1464
  %1484 = vmatpush.msra.mxu0 %v1460
  %1485 = vmatpush.msra.mxu0 %v1456
  %1486 = vmatpush.msra.mxu0 %v1452
  %1487 = vmatpush.msra.mxu0 %v1448
  %1488 = vmatpush.msra.mxu0 %v1444
  %1489 = vmatpush.msra.mxu0 %v1440
  %1490 = vmatpush.msra.mxu0 %v1436
  %1491 = vmatpush.msra.mxu0 %v1432
  %1492 = vmatpush.msra.mxu0 %v1428
  %1493 = vmatpush.msra.mxu0 %v1424
  %1494 = vmatpush.msra.mxu0 %v1420
  %1495 = vmatpush.msra.mxu0 %v1416
  %1496 = vmatmul.f32.gmra.mxu0 %v1406
  %v1497 = vpop.f32.mrf.mxu0
  %v1498 = vadd.f32 0.0, %v1497
  %1499 = vdwg.mxu0
  %1500 = vmatpush.msra.mxu0 %v1477
  %1501 = vmatpush.msra.mxu0 %v1473
  %1502 = vmatpush.msra.mxu0 %v1469
  %1503 = vmatpush.msra.mxu0 %v1465
  %1504 = vmatpush.msra.mxu0 %v1461
  %1505 = vmatpush.msra.mxu0 %v1457
  %1506 = vmatpush.msra.mxu0 %v1453
  %1507 = vmatpush.msra.mxu0 %v1449
  %1508 = vmatpush.msra.mxu0 %v1445
  %1509 = vmatpush.msra.mxu0 %v1441
  %1510 = vmatpush.msra.mxu0 %v1437
  %1511 = vmatpush.msra.mxu0 %v1433
  %1512 = vmatpush.msra.mxu0 %v1429
  %1513 = vmatpush.msra.mxu0 %v1425
  %1514 = vmatpush.msra.mxu0 %v1421
  %1515 = vmatpush.msra.mxu0 %v1417
  %1516 = vmatmul.f32.gmra.mxu0 %v1406
  %v1517 = vpop.f32.mrf.mxu0
  %v1518 = vadd.f32 0.0, %v1517
  %1519 = vdwg.mxu0
  %1520 = vmatpush.msra.mxu0 %v1478
  %1521 = vmatpush.msra.mxu0 %v1474
  %1522 = vmatpush.msra.mxu0 %v1470
  %1523 = vmatpush.msra.mxu0 %v1466
  %1524 = vmatpush.msra.mxu0 %v1462
  %1525 = vmatpush.msra.mxu0 %v1458
  %1526 = vmatpush.msra.mxu0 %v1454
  %1527 = vmatpush.msra.mxu0 %v1450
  %1528 = vmatpush.msra.mxu0 %v1446
  %1529 = vmatpush.msra.mxu0 %v1442
  %1530 = vmatpush.msra.mxu0 %v1438
  %1531 = vmatpush.msra.mxu0 %v1434
  %1532 = vmatpush.msra.mxu0 %v1430
  %1533 = vmatpush.msra.mxu0 %v1426
  %1534 = vmatpush.msra.mxu0 %v1422
  %1535 = vmatpush.msra.mxu0 %v1418
  %1536 = vmatmul.f32.gmra.mxu0 %v1406
  %v1537 = vpop.f32.mrf.mxu0
  %v1538 = vadd.f32 0.0, %v1537
  %1539 = vdwg.mxu0
  %1540 = vmatpush.msra.mxu0 %v1479
  %1541 = vmatpush.msra.mxu0 %v1475
  %1542 = vmatpush.msra.mxu0 %v1471
  %1543 = vmatpush.msra.mxu0 %v1467
  %1544 = vmatpush.msra.mxu0 %v1463
  %1545 = vmatpush.msra.mxu0 %v1459
  %1546 = vmatpush.msra.mxu0 %v1455
  %1547 = vmatpush.msra.mxu0 %v1451
  %1548 = vmatpush.msra.mxu0 %v1447
  %1549 = vmatpush.msra.mxu0 %v1443
  %1550 = vmatpush.msra.mxu0 %v1439
  %1551 = vmatpush.msra.mxu0 %v1435
  %1552 = vmatpush.msra.mxu0 %v1431
  %1553 = vmatpush.msra.mxu0 %v1427
  %1554 = vmatpush.msra.mxu0 %v1423
  %1555 = vmatpush.msra.mxu0 %v1419
  %1556 = vmatmul.f32.gmra.mxu0 %v1406
  %v1557 = vpop.f32.mrf.mxu0
  %v1558 = vadd.f32 0.0, %v1557
  %1559 = vdwg.mxu0
  %v1560 = vadd.f32 %v1412, %v1498
  %v1561 = vadd.f32 %v1413, %v1518
  %v1562 = vadd.f32 %v1414, %v1538
  %v1563 = vadd.f32 %v1415, %v1558
  %v1564 = vxor.u32 %v1560, 2147483648
  %v1565 = vmul.f32 %v1564, 1.442695
  %v1566 = vpow.pop %v1565
  %v1567 = vadd.f32 %v1566, 1.0
  %v1568 = vrcp.pop %v1567
  %v1569 = vmul.f32 %v1567, %v1568
  %v1570 = vsub.f32 1.0, %v1569
  %v1571 = vmul.f32 %v1568, %v1570
  %v1572 = vadd.f32 %v1568, %v1571
  %vm1573 = vweird.f32 %v1567
  %vm1574 = vweird.f32 %v1568
  %vm1575 = vmor %vm1573, %vm1574
  %v1576 = vsel %vm1575, %v1568, %v1572
  %v1577 = vand.u32 2147483647, %v1567
  %vm1578 = vcmp.eq.f32.partialorder %v1577, 8.507059e+37
  %v1579 = vand.u32 %v1567, 2147483648
  %v1580 = vor.u32 1.1754944e-38, %v1579
  %v1581 = vsel %vm1578, %v1580, %v1576
  %v1582 = vmul.f32 1.0, %v1581
  %v1583 = vxor.u32 %v1561, 2147483648
  %v1584 = vmul.f32 %v1583, 1.442695
  %v1585 = vpow.pop %v1584
  %v1586 = vadd.f32 %v1585, 1.0
  %v1587 = vrcp.pop %v1586
  %v1588 = vmul.f32 %v1586, %v1587
  %v1589 = vsub.f32 1.0, %v1588
  %v1590 = vmul.f32 %v1587, %v1589
  %v1591 = vadd.f32 %v1587, %v1590
  %vm1592 = vweird.f32 %v1586
  %vm1593 = vweird.f32 %v1587
  %vm1594 = vmor %vm1592, %vm1593
  %v1595 = vsel %vm1594, %v1587, %v1591
  %v1596 = vand.u32 2147483647, %v1586
  %vm1597 = vcmp.eq.f32.partialorder %v1596, 8.507059e+37
  %v1598 = vand.u32 %v1586, 2147483648
  %v1599 = vor.u32 1.1754944e-38, %v1598
  %v1600 = vsel %vm1597, %v1599, %v1595
  %v1601 = vmul.f32 1.0, %v1600
  %v1602 = vtanh.pop %v1562
  %v1603 = vxor.u32 %v1563, 2147483648
  %v1604 = vmul.f32 %v1603, 1.442695
  %v1605 = vpow.pop %v1604
  %v1606 = vadd.f32 %v1605, 1.0
  %v1607 = vrcp.pop %v1606
  %v1608 = vmul.f32 %v1606, %v1607
  %v1609 = vsub.f32 1.0, %v1608
  %v1610 = vmul.f32 %v1607, %v1609
  %v1611 = vadd.f32 %v1607, %v1610
  %vm1612 = vweird.f32 %v1606
  %vm1613 = vweird.f32 %v1607
  %vm1614 = vmor %vm1612, %vm1613
  %v1615 = vsel %vm1614, %v1607, %v1611
  %v1616 = vand.u32 2147483647, %v1606
  %vm1617 = vcmp.eq.f32.partialorder %v1616, 8.507059e+37
  %v1618 = vand.u32 %v1606, 2147483648
  %v1619 = vor.u32 1.1754944e-38, %v1618
  %v1620 = vsel %vm1617, %v1619, %v1615
  %v1621 = vmul.f32 1.0, %v1620
  %v1622 = vmul.f32 %v1601, %v1404
  %v1623 = vmul.f32 %v1582, %v1602
  %v1624 = vadd.f32 %v1622, %v1623
  %v1625 = vtanh.pop %v1624
  %v1626 = vmul.f32 %v1621, %v1625
  %s1627 = scalar_lea.vmem [#allocation3], 40
  %1628 = vst [vmem:[%s1627] sm:$0xff] %v1626
  %s1629 = smul.u32 6, 4
  %s1630 = smul.addr %s1629, 8
  %s1631 = scalar_lea.vmem [#allocation2], %s1630
  %v1632 = vld [vmem:[%s1631] sm:$0xff]
  %v1633 = vld [vmem:[%s1631 + $0x8] sm:$0xff]
  %v1634 = vld [vmem:[%s1631 + $0x10] sm:$0xff]
  %v1635 = vld [vmem:[%s1631 + $0x18] sm:$0xff]
  %v1636 = vld [vmem:[%s2] sm:$0xff]
  %v1637 = vld [vmem:[%s2 + $0x8] sm:$0xff]
  %v1638 = vld [vmem:[%s2 + $0x10] sm:$0xff]
  %v1639 = vld [vmem:[%s2 + $0x18] sm:$0xff]
  %v1640 = vld [vmem:[%s2 + $0x20] sm:$0xff]
  %v1641 = vld [vmem:[%s2 + $0x28] sm:$0xff]
  %v1642 = vld [vmem:[%s2 + $0x30] sm:$0xff]
  %v1643 = vld [vmem:[%s2 + $0x38] sm:$0xff]
  %v1644 = vld [vmem:[%s2 + $0x40] sm:$0xff]
  %v1645 = vld [vmem:[%s2 + $0x48] sm:$0xff]
  %v1646 = vld [vmem:[%s2 + $0x50] sm:$0xff]
  %v1647 = vld [vmem:[%s2 + $0x58] sm:$0xff]
  %v1648 = vld [vmem:[%s2 + $0x60] sm:$0xff]
  %v1649 = vld [vmem:[%s2 + $0x68] sm:$0xff]
  %v1650 = vld [vmem:[%s2 + $0x70] sm:$0xff]
  %v1651 = vld [vmem:[%s2 + $0x78] sm:$0xff]
  %v1652 = vld [vmem:[%s2 + $0x80] sm:$0xff]
  %v1653 = vld [vmem:[%s2 + $0x88] sm:$0xff]
  %v1654 = vld [vmem:[%s2 + $0x90] sm:$0xff]
  %v1655 = vld [vmem:[%s2 + $0x98] sm:$0xff]
  %v1656 = vld [vmem:[%s2 + $0xa0] sm:$0xff]
  %v1657 = vld [vmem:[%s2 + $0xa8] sm:$0xff]
  %v1658 = vld [vmem:[%s2 + $0xb0] sm:$0xff]
  %v1659 = vld [vmem:[%s2 + $0xb8] sm:$0xff]
  %v1660 = vld [vmem:[%s2 + $0xc0] sm:$0xff]
  %v1661 = vld [vmem:[%s2 + $0xc8] sm:$0xff]
  %v1662 = vld [vmem:[%s2 + $0xd0] sm:$0xff]
  %v1663 = vld [vmem:[%s2 + $0xd8] sm:$0xff]
  %v1664 = vld [vmem:[%s2 + $0xe0] sm:$0xff]
  %v1665 = vld [vmem:[%s2 + $0xe8] sm:$0xff]
  %v1666 = vld [vmem:[%s2 + $0xf0] sm:$0xff]
  %v1667 = vld [vmem:[%s2 + $0xf8] sm:$0xff]
  %v1668 = vld [vmem:[%s2 + $0x100] sm:$0xff]
  %v1669 = vld [vmem:[%s2 + $0x108] sm:$0xff]
  %v1670 = vld [vmem:[%s2 + $0x110] sm:$0xff]
  %v1671 = vld [vmem:[%s2 + $0x118] sm:$0xff]
  %v1672 = vld [vmem:[%s2 + $0x120] sm:$0xff]
  %v1673 = vld [vmem:[%s2 + $0x128] sm:$0xff]
  %v1674 = vld [vmem:[%s2 + $0x130] sm:$0xff]
  %v1675 = vld [vmem:[%s2 + $0x138] sm:$0xff]
  %v1676 = vld [vmem:[%s2 + $0x140] sm:$0xff]
  %v1677 = vld [vmem:[%s2 + $0x148] sm:$0xff]
  %v1678 = vld [vmem:[%s2 + $0x150] sm:$0xff]
  %v1679 = vld [vmem:[%s2 + $0x158] sm:$0xff]
  %v1680 = vld [vmem:[%s2 + $0x160] sm:$0xff]
  %v1681 = vld [vmem:[%s2 + $0x168] sm:$0xff]
  %v1682 = vld [vmem:[%s2 + $0x170] sm:$0xff]
  %v1683 = vld [vmem:[%s2 + $0x178] sm:$0xff]
  %v1684 = vld [vmem:[%s2 + $0x180] sm:$0xff]
  %v1685 = vld [vmem:[%s2 + $0x188] sm:$0xff]
  %v1686 = vld [vmem:[%s2 + $0x190] sm:$0xff]
  %v1687 = vld [vmem:[%s2 + $0x198] sm:$0xff]
  %v1688 = vld [vmem:[%s2 + $0x1a0] sm:$0xff]
  %v1689 = vld [vmem:[%s2 + $0x1a8] sm:$0xff]
  %v1690 = vld [vmem:[%s2 + $0x1b0] sm:$0xff]
  %v1691 = vld [vmem:[%s2 + $0x1b8] sm:$0xff]
  %v1692 = vld [vmem:[%s2 + $0x1c0] sm:$0xff]
  %v1693 = vld [vmem:[%s2 + $0x1c8] sm:$0xff]
  %v1694 = vld [vmem:[%s2 + $0x1d0] sm:$0xff]
  %v1695 = vld [vmem:[%s2 + $0x1d8] sm:$0xff]
  %v1696 = vld [vmem:[%s2 + $0x1e0] sm:$0xff]
  %v1697 = vld [vmem:[%s2 + $0x1e8] sm:$0xff]
  %v1698 = vld [vmem:[%s2 + $0x1f0] sm:$0xff]
  %v1699 = vld [vmem:[%s2 + $0x1f8] sm:$0xff]
  %1700 = vmatpush.msra.mxu0 %v1696
  %1701 = vmatpush.msra.mxu0 %v1692
  %1702 = vmatpush.msra.mxu0 %v1688
  %1703 = vmatpush.msra.mxu0 %v1684
  %1704 = vmatpush.msra.mxu0 %v1680
  %1705 = vmatpush.msra.mxu0 %v1676
  %1706 = vmatpush.msra.mxu0 %v1672
  %1707 = vmatpush.msra.mxu0 %v1668
  %1708 = vmatpush.msra.mxu0 %v1664
  %1709 = vmatpush.msra.mxu0 %v1660
  %1710 = vmatpush.msra.mxu0 %v1656
  %1711 = vmatpush.msra.mxu0 %v1652
  %1712 = vmatpush.msra.mxu0 %v1648
  %1713 = vmatpush.msra.mxu0 %v1644
  %1714 = vmatpush.msra.mxu0 %v1640
  %1715 = vmatpush.msra.mxu0 %v1636
  %1716 = vmatmul.f32.gmra.mxu0 %v1626
  %v1717 = vpop.f32.mrf.mxu0
  %v1718 = vadd.f32 0.0, %v1717
  %1719 = vdwg.mxu0
  %1720 = vmatpush.msra.mxu0 %v1697
  %1721 = vmatpush.msra.mxu0 %v1693
  %1722 = vmatpush.msra.mxu0 %v1689
  %1723 = vmatpush.msra.mxu0 %v1685
  %1724 = vmatpush.msra.mxu0 %v1681
  %1725 = vmatpush.msra.mxu0 %v1677
  %1726 = vmatpush.msra.mxu0 %v1673
  %1727 = vmatpush.msra.mxu0 %v1669
  %1728 = vmatpush.msra.mxu0 %v1665
  %1729 = vmatpush.msra.mxu0 %v1661
  %1730 = vmatpush.msra.mxu0 %v1657
  %1731 = vmatpush.msra.mxu0 %v1653
  %1732 = vmatpush.msra.mxu0 %v1649
  %1733 = vmatpush.msra.mxu0 %v1645
  %1734 = vmatpush.msra.mxu0 %v1641
  %1735 = vmatpush.msra.mxu0 %v1637
  %1736 = vmatmul.f32.gmra.mxu0 %v1626
  %v1737 = vpop.f32.mrf.mxu0
  %v1738 = vadd.f32 0.0, %v1737
  %1739 = vdwg.mxu0
  %1740 = vmatpush.msra.mxu0 %v1698
  %1741 = vmatpush.msra.mxu0 %v1694
  %1742 = vmatpush.msra.mxu0 %v1690
  %1743 = vmatpush.msra.mxu0 %v1686
  %1744 = vmatpush.msra.mxu0 %v1682
  %1745 = vmatpush.msra.mxu0 %v1678
  %1746 = vmatpush.msra.mxu0 %v1674
  %1747 = vmatpush.msra.mxu0 %v1670
  %1748 = vmatpush.msra.mxu0 %v1666
  %1749 = vmatpush.msra.mxu0 %v1662
  %1750 = vmatpush.msra.mxu0 %v1658
  %1751 = vmatpush.msra.mxu0 %v1654
  %1752 = vmatpush.msra.mxu0 %v1650
  %1753 = vmatpush.msra.mxu0 %v1646
  %1754 = vmatpush.msra.mxu0 %v1642
  %1755 = vmatpush.msra.mxu0 %v1638
  %1756 = vmatmul.f32.gmra.mxu0 %v1626
  %v1757 = vpop.f32.mrf.mxu0
  %v1758 = vadd.f32 0.0, %v1757
  %1759 = vdwg.mxu0
  %1760 = vmatpush.msra.mxu0 %v1699
  %1761 = vmatpush.msra.mxu0 %v1695
  %1762 = vmatpush.msra.mxu0 %v1691
  %1763 = vmatpush.msra.mxu0 %v1687
  %1764 = vmatpush.msra.mxu0 %v1683
  %1765 = vmatpush.msra.mxu0 %v1679
  %1766 = vmatpush.msra.mxu0 %v1675
  %1767 = vmatpush.msra.mxu0 %v1671
  %1768 = vmatpush.msra.mxu0 %v1667
  %1769 = vmatpush.msra.mxu0 %v1663
  %1770 = vmatpush.msra.mxu0 %v1659
  %1771 = vmatpush.msra.mxu0 %v1655
  %1772 = vmatpush.msra.mxu0 %v1651
  %1773 = vmatpush.msra.mxu0 %v1647
  %1774 = vmatpush.msra.mxu0 %v1643
  %1775 = vmatpush.msra.mxu0 %v1639
  %1776 = vmatmul.f32.gmra.mxu0 %v1626
  %v1777 = vpop.f32.mrf.mxu0
  %v1778 = vadd.f32 0.0, %v1777
  %1779 = vdwg.mxu0
  %v1780 = vadd.f32 %v1632, %v1718
  %v1781 = vadd.f32 %v1633, %v1738
  %v1782 = vadd.f32 %v1634, %v1758
  %v1783 = vadd.f32 %v1635, %v1778
  %v1784 = vxor.u32 %v1780, 2147483648
  %v1785 = vmul.f32 %v1784, 1.442695
  %v1786 = vpow.pop %v1785
  %v1787 = vadd.f32 %v1786, 1.0
  %v1788 = vrcp.pop %v1787
  %v1789 = vmul.f32 %v1787, %v1788
  %v1790 = vsub.f32 1.0, %v1789
  %v1791 = vmul.f32 %v1788, %v1790
  %v1792 = vadd.f32 %v1788, %v1791
  %vm1793 = vweird.f32 %v1787
  %vm1794 = vweird.f32 %v1788
  %vm1795 = vmor %vm1793, %vm1794
  %v1796 = vsel %vm1795, %v1788, %v1792
  %v1797 = vand.u32 2147483647, %v1787
  %vm1798 = vcmp.eq.f32.partialorder %v1797, 8.507059e+37
  %v1799 = vand.u32 %v1787, 2147483648
  %v1800 = vor.u32 1.1754944e-38, %v1799
  %v1801 = vsel %vm1798, %v1800, %v1796
  %v1802 = vmul.f32 1.0, %v1801
  %v1803 = vxor.u32 %v1781, 2147483648
  %v1804 = vmul.f32 %v1803, 1.442695
  %v1805 = vpow.pop %v1804
  %v1806 = vadd.f32 %v1805, 1.0
  %v1807 = vrcp.pop %v1806
  %v1808 = vmul.f32 %v1806, %v1807
  %v1809 = vsub.f32 1.0, %v1808
  %v1810 = vmul.f32 %v1807, %v1809
  %v1811 = vadd.f32 %v1807, %v1810
  %vm1812 = vweird.f32 %v1806
  %vm1813 = vweird.f32 %v1807
  %vm1814 = vmor %vm1812, %vm1813
  %v1815 = vsel %vm1814, %v1807, %v1811
  %v1816 = vand.u32 2147483647, %v1806
  %vm1817 = vcmp.eq.f32.partialorder %v1816, 8.507059e+37
  %v1818 = vand.u32 %v1806, 2147483648
  %v1819 = vor.u32 1.1754944e-38, %v1818
  %v1820 = vsel %vm1817, %v1819, %v1815
  %v1821 = vmul.f32 1.0, %v1820
  %v1822 = vtanh.pop %v1782
  %v1823 = vxor.u32 %v1783, 2147483648
  %v1824 = vmul.f32 %v1823, 1.442695
  %v1825 = vpow.pop %v1824
  %v1826 = vadd.f32 %v1825, 1.0
  %v1827 = vrcp.pop %v1826
  %v1828 = vmul.f32 %v1826, %v1827
  %v1829 = vsub.f32 1.0, %v1828
  %v1830 = vmul.f32 %v1827, %v1829
  %v1831 = vadd.f32 %v1827, %v1830
  %vm1832 = vweird.f32 %v1826
  %vm1833 = vweird.f32 %v1827
  %vm1834 = vmor %vm1832, %vm1833
  %v1835 = vsel %vm1834, %v1827, %v1831
  %v1836 = vand.u32 2147483647, %v1826
  %vm1837 = vcmp.eq.f32.partialorder %v1836, 8.507059e+37
  %v1838 = vand.u32 %v1826, 2147483648
  %v1839 = vor.u32 1.1754944e-38, %v1838
  %v1840 = vsel %vm1837, %v1839, %v1835
  %v1841 = vmul.f32 1.0, %v1840
  %v1842 = vmul.f32 %v1821, %v1624
  %v1843 = vmul.f32 %v1802, %v1822
  %v1844 = vadd.f32 %v1842, %v1843
  %v1845 = vtanh.pop %v1844
  %v1846 = vmul.f32 %v1841, %v1845
  %s1847 = scalar_lea.vmem [#allocation3], 48
  %1848 = vst [vmem:[%s1847] sm:$0xff] %v1846
  %s1849 = smul.u32 7, 4
  %s1850 = smul.addr %s1849, 8
  %s1851 = scalar_lea.vmem [#allocation2], %s1850
  %v1852 = vld [vmem:[%s1851] sm:$0xff]
  %v1853 = vld [vmem:[%s1851 + $0x8] sm:$0xff]
  %v1854 = vld [vmem:[%s1851 + $0x10] sm:$0xff]
  %v1855 = vld [vmem:[%s1851 + $0x18] sm:$0xff]
  %v1856 = vld [vmem:[%s2] sm:$0xff]
  %v1857 = vld [vmem:[%s2 + $0x8] sm:$0xff]
  %v1858 = vld [vmem:[%s2 + $0x10] sm:$0xff]
  %v1859 = vld [vmem:[%s2 + $0x18] sm:$0xff]
  %v1860 = vld [vmem:[%s2 + $0x20] sm:$0xff]
  %v1861 = vld [vmem:[%s2 + $0x28] sm:$0xff]
  %v1862 = vld [vmem:[%s2 + $0x30] sm:$0xff]
  %v1863 = vld [vmem:[%s2 + $0x38] sm:$0xff]
  %v1864 = vld [vmem:[%s2 + $0x40] sm:$0xff]
  %v1865 = vld [vmem:[%s2 + $0x48] sm:$0xff]
  %v1866 = vld [vmem:[%s2 + $0x50] sm:$0xff]
  %v1867 = vld [vmem:[%s2 + $0x58] sm:$0xff]
  %v1868 = vld [vmem:[%s2 + $0x60] sm:$0xff]
  %v1869 = vld [vmem:[%s2 + $0x68] sm:$0xff]
  %v1870 = vld [vmem:[%s2 + $0x70] sm:$0xff]
  %v1871 = vld [vmem:[%s2 + $0x78] sm:$0xff]
  %v1872 = vld [vmem:[%s2 + $0x80] sm:$0xff]
  %v1873 = vld [vmem:[%s2 + $0x88] sm:$0xff]
  %v1874 = vld [vmem:[%s2 + $0x90] sm:$0xff]
  %v1875 = vld [vmem:[%s2 + $0x98] sm:$0xff]
  %v1876 = vld [vmem:[%s2 + $0xa0] sm:$0xff]
  %v1877 = vld [vmem:[%s2 + $0xa8] sm:$0xff]
  %v1878 = vld [vmem:[%s2 + $0xb0] sm:$0xff]
  %v1879 = vld [vmem:[%s2 + $0xb8] sm:$0xff]
  %v1880 = vld [vmem:[%s2 + $0xc0] sm:$0xff]
  %v1881 = vld [vmem:[%s2 + $0xc8] sm:$0xff]
  %v1882 = vld [vmem:[%s2 + $0xd0] sm:$0xff]
  %v1883 = vld [vmem:[%s2 + $0xd8] sm:$0xff]
  %v1884 = vld [vmem:[%s2 + $0xe0] sm:$0xff]
  %v1885 = vld [vmem:[%s2 + $0xe8] sm:$0xff]
  %v1886 = vld [vmem:[%s2 + $0xf0] sm:$0xff]
  %v1887 = vld [vmem:[%s2 + $0xf8] sm:$0xff]
  %v1888 = vld [vmem:[%s2 + $0x100] sm:$0xff]
  %v1889 = vld [vmem:[%s2 + $0x108] sm:$0xff]
  %v1890 = vld [vmem:[%s2 + $0x110] sm:$0xff]
  %v1891 = vld [vmem:[%s2 + $0x118] sm:$0xff]
  %v1892 = vld [vmem:[%s2 + $0x120] sm:$0xff]
  %v1893 = vld [vmem:[%s2 + $0x128] sm:$0xff]
  %v1894 = vld [vmem:[%s2 + $0x130] sm:$0xff]
  %v1895 = vld [vmem:[%s2 + $0x138] sm:$0xff]
  %v1896 = vld [vmem:[%s2 + $0x140] sm:$0xff]
  %v1897 = vld [vmem:[%s2 + $0x148] sm:$0xff]
  %v1898 = vld [vmem:[%s2 + $0x150] sm:$0xff]
  %v1899 = vld [vmem:[%s2 + $0x158] sm:$0xff]
  %v1900 = vld [vmem:[%s2 + $0x160] sm:$0xff]
  %v1901 = vld [vmem:[%s2 + $0x168] sm:$0xff]
  %v1902 = vld [vmem:[%s2 + $0x170] sm:$0xff]
  %v1903 = vld [vmem:[%s2 + $0x178] sm:$0xff]
  %v1904 = vld [vmem:[%s2 + $0x180] sm:$0xff]
  %v1905 = vld [vmem:[%s2 + $0x188] sm:$0xff]
  %v1906 = vld [vmem:[%s2 + $0x190] sm:$0xff]
  %v1907 = vld [vmem:[%s2 + $0x198] sm:$0xff]
  %v1908 = vld [vmem:[%s2 + $0x1a0] sm:$0xff]
  %v1909 = vld [vmem:[%s2 + $0x1a8] sm:$0xff]
  %v1910 = vld [vmem:[%s2 + $0x1b0] sm:$0xff]
  %v1911 = vld [vmem:[%s2 + $0x1b8] sm:$0xff]
  %v1912 = vld [vmem:[%s2 + $0x1c0] sm:$0xff]
  %v1913 = vld [vmem:[%s2 + $0x1c8] sm:$0xff]
  %v1914 = vld [vmem:[%s2 + $0x1d0] sm:$0xff]
  %v1915 = vld [vmem:[%s2 + $0x1d8] sm:$0xff]
  %v1916 = vld [vmem:[%s2 + $0x1e0] sm:$0xff]
  %v1917 = vld [vmem:[%s2 + $0x1e8] sm:$0xff]
  %v1918 = vld [vmem:[%s2 + $0x1f0] sm:$0xff]
  %v1919 = vld [vmem:[%s2 + $0x1f8] sm:$0xff]
  %1920 = vmatpush.msra.mxu0 %v1916
  %1921 = vmatpush.msra.mxu0 %v1912
  %1922 = vmatpush.msra.mxu0 %v1908
  %1923 = vmatpush.msra.mxu0 %v1904
  %1924 = vmatpush.msra.mxu0 %v1900
  %1925 = vmatpush.msra.mxu0 %v1896
  %1926 = vmatpush.msra.mxu0 %v1892
  %1927 = vmatpush.msra.mxu0 %v1888
  %1928 = vmatpush.msra.mxu0 %v1884
  %1929 = vmatpush.msra.mxu0 %v1880
  %1930 = vmatpush.msra.mxu0 %v1876
  %1931 = vmatpush.msra.mxu0 %v1872
  %1932 = vmatpush.msra.mxu0 %v1868
  %1933 = vmatpush.msra.mxu0 %v1864
  %1934 = vmatpush.msra.mxu0 %v1860
  %1935 = vmatpush.msra.mxu0 %v1856
  %1936 = vmatmul.f32.gmra.mxu0 %v1846
  %v1937 = vpop.f32.mrf.mxu0
  %v1938 = vadd.f32 0.0, %v1937
  %1939 = vdwg.mxu0
  %1940 = vmatpush.msra.mxu0 %v1917
  %1941 = vmatpush.msra.mxu0 %v1913
  %1942 = vmatpush.msra.mxu0 %v1909
  %1943 = vmatpush.msra.mxu0 %v1905
  %1944 = vmatpush.msra.mxu0 %v1901
  %1945 = vmatpush.msra.mxu0 %v1897
  %1946 = vmatpush.msra.mxu0 %v1893
  %1947 = vmatpush.msra.mxu0 %v1889
  %1948 = vmatpush.msra.mxu0 %v1885
  %1949 = vmatpush.msra.mxu0 %v1881
  %1950 = vmatpush.msra.mxu0 %v1877
  %1951 = vmatpush.msra.mxu0 %v1873
  %1952 = vmatpush.msra.mxu0 %v1869
  %1953 = vmatpush.msra.mxu0 %v1865
  %1954 = vmatpush.msra.mxu0 %v1861
  %1955 = vmatpush.msra.mxu0 %v1857
  %1956 = vmatmul.f32.gmra.mxu0 %v1846
  %v1957 = vpop.f32.mrf.mxu0
  %v1958 = vadd.f32 0.0, %v1957
  %1959 = vdwg.mxu0
  %1960 = vmatpush.msra.mxu0 %v1918
  %1961 = vmatpush.msra.mxu0 %v1914
  %1962 = vmatpush.msra.mxu0 %v1910
  %1963 = vmatpush.msra.mxu0 %v1906
  %1964 = vmatpush.msra.mxu0 %v1902
  %1965 = vmatpush.msra.mxu0 %v1898
  %1966 = vmatpush.msra.mxu0 %v1894
  %1967 = vmatpush.msra.mxu0 %v1890
  %1968 = vmatpush.msra.mxu0 %v1886
  %1969 = vmatpush.msra.mxu0 %v1882
  %1970 = vmatpush.msra.mxu0 %v1878
  %1971 = vmatpush.msra.mxu0 %v1874
  %1972 = vmatpush.msra.mxu0 %v1870
  %1973 = vmatpush.msra.mxu0 %v1866
  %1974 = vmatpush.msra.mxu0 %v1862
  %1975 = vmatpush.msra.mxu0 %v1858
  %1976 = vmatmul.f32.gmra.mxu0 %v1846
  %v1977 = vpop.f32.mrf.mxu0
  %v1978 = vadd.f32 0.0, %v1977
  %1979 = vdwg.mxu0
  %1980 = vmatpush.msra.mxu0 %v1919
  %1981 = vmatpush.msra.mxu0 %v1915
  %1982 = vmatpush.msra.mxu0 %v1911
  %1983 = vmatpush.msra.mxu0 %v1907
  %1984 = vmatpush.msra.mxu0 %v1903
  %1985 = vmatpush.msra.mxu0 %v1899
  %1986 = vmatpush.msra.mxu0 %v1895
  %1987 = vmatpush.msra.mxu0 %v1891
  %1988 = vmatpush.msra.mxu0 %v1887
  %1989 = vmatpush.msra.mxu0 %v1883
  %1990 = vmatpush.msra.mxu0 %v1879
  %1991 = vmatpush.msra.mxu0 %v1875
  %1992 = vmatpush.msra.mxu0 %v1871
  %1993 = vmatpush.msra.mxu0 %v1867
  %1994 = vmatpush.msra.mxu0 %v1863
  %1995 = vmatpush.msra.mxu0 %v1859
  %1996 = vmatmul.f32.gmra.mxu0 %v1846
  %v1997 = vpop.f32.mrf.mxu0
  %v1998 = vadd.f32 0.0, %v1997
  %1999 = vdwg.mxu0
  %v2000 = vadd.f32 %v1852, %v1938
  %v2001 = vadd.f32 %v1853, %v1958
  %v2002 = vadd.f32 %v1854, %v1978
  %v2003 = vadd.f32 %v1855, %v1998
  %v2004 = vxor.u32 %v2000, 2147483648
  %v2005 = vmul.f32 %v2004, 1.442695
  %v2006 = vpow.pop %v2005
  %v2007 = vadd.f32 %v2006, 1.0
  %v2008 = vrcp.pop %v2007
  %v2009 = vmul.f32 %v2007, %v2008
  %v2010 = vsub.f32 1.0, %v2009
  %v2011 = vmul.f32 %v2008, %v2010
  %v2012 = vadd.f32 %v2008, %v2011
  %vm2013 = vweird.f32 %v2007
  %vm2014 = vweird.f32 %v2008
  %vm2015 = vmor %vm2013, %vm2014
  %v2016 = vsel %vm2015, %v2008, %v2012
  %v2017 = vand.u32 2147483647, %v2007
  %vm2018 = vcmp.eq.f32.partialorder %v2017, 8.507059e+37
  %v2019 = vand.u32 %v2007, 2147483648
  %v2020 = vor.u32 1.1754944e-38, %v2019
  %v2021 = vsel %vm2018, %v2020, %v2016
  %v2022 = vmul.f32 1.0, %v2021
  %v2023 = vxor.u32 %v2001, 2147483648
  %v2024 = vmul.f32 %v2023, 1.442695
  %v2025 = vpow.pop %v2024
  %v2026 = vadd.f32 %v2025, 1.0
  %v2027 = vrcp.pop %v2026
  %v2028 = vmul.f32 %v2026, %v2027
  %v2029 = vsub.f32 1.0, %v2028
  %v2030 = vmul.f32 %v2027, %v2029
  %v2031 = vadd.f32 %v2027, %v2030
  %vm2032 = vweird.f32 %v2026
  %vm2033 = vweird.f32 %v2027
  %vm2034 = vmor %vm2032, %vm2033
  %v2035 = vsel %vm2034, %v2027, %v2031
  %v2036 = vand.u32 2147483647, %v2026
  %vm2037 = vcmp.eq.f32.partialorder %v2036, 8.507059e+37
  %v2038 = vand.u32 %v2026, 2147483648
  %v2039 = vor.u32 1.1754944e-38, %v2038
  %v2040 = vsel %vm2037, %v2039, %v2035
  %v2041 = vmul.f32 1.0, %v2040
  %v2042 = vtanh.pop %v2002
  %v2043 = vxor.u32 %v2003, 2147483648
  %v2044 = vmul.f32 %v2043, 1.442695
  %v2045 = vpow.pop %v2044
  %v2046 = vadd.f32 %v2045, 1.0
  %v2047 = vrcp.pop %v2046
  %v2048 = vmul.f32 %v2046, %v2047
  %v2049 = vsub.f32 1.0, %v2048
  %v2050 = vmul.f32 %v2047, %v2049
  %v2051 = vadd.f32 %v2047, %v2050
  %vm2052 = vweird.f32 %v2046
  %vm2053 = vweird.f32 %v2047
  %vm2054 = vmor %vm2052, %vm2053
  %v2055 = vsel %vm2054, %v2047, %v2051
  %v2056 = vand.u32 2147483647, %v2046
  %vm2057 = vcmp.eq.f32.partialorder %v2056, 8.507059e+37
  %v2058 = vand.u32 %v2046, 2147483648
  %v2059 = vor.u32 1.1754944e-38, %v2058
  %v2060 = vsel %vm2057, %v2059, %v2055
  %v2061 = vmul.f32 1.0, %v2060
  %v2062 = vmul.f32 %v2041, %v1844
  %v2063 = vmul.f32 %v2022, %v2042
  %v2064 = vadd.f32 %v2062, %v2063
  %v2065 = vtanh.pop %v2064
  %v2066 = vmul.f32 %v2061, %v2065
  %s2067 = scalar_lea.vmem [#allocation3], 56
  %2068 = vst [vmem:[%s2067] sm:$0xff] %v2066
  %v2069 = vld [vmem:[#allocation3] sm:$0xff]
  %v2070 = vld [vmem:[#allocation3 + $0x8] sm:$0xff]
  %v2071 = vld [vmem:[#allocation3 + $0x10] sm:$0xff]
  %v2072 = vld [vmem:[#allocation3 + $0x18] sm:$0xff]
  %v2073 = vld [vmem:[#allocation3 + $0x20] sm:$0xff]
  %v2074 = vld [vmem:[#allocation3 + $0x28] sm:$0xff]
  %v2075 = vld [vmem:[#allocation3 + $0x30] sm:$0xff]
  %v2076 = vld [vmem:[#allocation3 + $0x38] sm:$0xff]
  %v2077 = vld [vmem:[%s4] sm:$0xff]
  %v2078 = vld [vmem:[%s4 + $0x8] sm:$0xff]
  %v2079 = vld [vmem:[%s4 + $0x10] sm:$0xff]
  %v2080 = vld [vmem:[%s4 + $0x18] sm:$0xff]
  %v2081 = vld [vmem:[%s4 + $0x20] sm:$0xff]
  %v2082 = vld [vmem:[%s4 + $0x28] sm:$0xff]
  %v2083 = vld [vmem:[%s4 + $0x30] sm:$0xff]
  %v2084 = vld [vmem:[%s4 + $0x38] sm:$0xff]
  %v2085 = vld [vmem:[%s4 + $0x40] sm:$0xff]
  %v2086 = vld [vmem:[%s4 + $0x48] sm:$0xff]
  %v2087 = vld [vmem:[%s4 + $0x50] sm:$0xff]
  %v2088 = vld [vmem:[%s4 + $0x58] sm:$0xff]
  %v2089 = vld [vmem:[%s4 + $0x60] sm:$0xff]
  %v2090 = vld [vmem:[%s4 + $0x68] sm:$0xff]
  %v2091 = vld [vmem:[%s4 + $0x70] sm:$0xff]
  %v2092 = vld [vmem:[%s4 + $0x78] sm:$0xff]
  %v2093 = vld [vmem:[%s4 + $0x80] sm:$0xff]
  %v2094 = vld [vmem:[%s4 + $0x88] sm:$0xff]
  %v2095 = vld [vmem:[%s4 + $0x90] sm:$0xff]
  %v2096 = vld [vmem:[%s4 + $0x98] sm:$0xff]
  %v2097 = vld [vmem:[%s4 + $0xa0] sm:$0xff]
  %v2098 = vld [vmem:[%s4 + $0xa8] sm:$0xff]
  %v2099 = vld [vmem:[%s4 + $0xb0] sm:$0xff]
  %v2100 = vld [vmem:[%s4 + $0xb8] sm:$0xff]
  %v2101 = vld [vmem:[%s4 + $0xc0] sm:$0xff]
  %v2102 = vld [vmem:[%s4 + $0xc8] sm:$0xff]
  %v2103 = vld [vmem:[%s4 + $0xd0] sm:$0xff]
  %v2104 = vld [vmem:[%s4 + $0xd8] sm:$0xff]
  %v2105 = vld [vmem:[%s4 + $0xe0] sm:$0xff]
  %v2106 = vld [vmem:[%s4 + $0xe8] sm:$0xff]
  %v2107 = vld [vmem:[%s4 + $0xf0] sm:$0xff]
  %v2108 = vld [vmem:[%s4 + $0xf8] sm:$0xff]
  %v2109 = vld [vmem:[%s4 + $0x100] sm:$0xff]
  %v2110 = vld [vmem:[%s4 + $0x108] sm:$0xff]
  %v2111 = vld [vmem:[%s4 + $0x110] sm:$0xff]
  %v2112 = vld [vmem:[%s4 + $0x118] sm:$0xff]
  %v2113 = vld [vmem:[%s4 + $0x120] sm:$0xff]
  %v2114 = vld [vmem:[%s4 + $0x128] sm:$0xff]
  %v2115 = vld [vmem:[%s4 + $0x130] sm:$0xff]
  %v2116 = vld [vmem:[%s4 + $0x138] sm:$0xff]
  %v2117 = vld [vmem:[%s4 + $0x140] sm:$0xff]
  %v2118 = vld [vmem:[%s4 + $0x148] sm:$0xff]
  %v2119 = vld [vmem:[%s4 + $0x150] sm:$0xff]
  %v2120 = vld [vmem:[%s4 + $0x158] sm:$0xff]
  %v2121 = vld [vmem:[%s4 + $0x160] sm:$0xff]
  %v2122 = vld [vmem:[%s4 + $0x168] sm:$0xff]
  %v2123 = vld [vmem:[%s4 + $0x170] sm:$0xff]
  %v2124 = vld [vmem:[%s4 + $0x178] sm:$0xff]
  %v2125 = vld [vmem:[%s4 + $0x180] sm:$0xff]
  %v2126 = vld [vmem:[%s4 + $0x188] sm:$0xff]
  %v2127 = vld [vmem:[%s4 + $0x190] sm:$0xff]
  %v2128 = vld [vmem:[%s4 + $0x198] sm:$0xff]
  %v2129 = vld [vmem:[%s4 + $0x1a0] sm:$0xff]
  %v2130 = vld [vmem:[%s4 + $0x1a8] sm:$0xff]
  %v2131 = vld [vmem:[%s4 + $0x1b0] sm:$0xff]
  %v2132 = vld [vmem:[%s4 + $0x1b8] sm:$0xff]
  %v2133 = vld [vmem:[%s4 + $0x1c0] sm:$0xff]
  %v2134 = vld [vmem:[%s4 + $0x1c8] sm:$0xff]
  %v2135 = vld [vmem:[%s4 + $0x1d0] sm:$0xff]
  %v2136 = vld [vmem:[%s4 + $0x1d8] sm:$0xff]
  %v2137 = vld [vmem:[%s4 + $0x1e0] sm:$0xff]
  %v2138 = vld [vmem:[%s4 + $0x1e8] sm:$0xff]
  %v2139 = vld [vmem:[%s4 + $0x1f0] sm:$0xff]
  %v2140 = vld [vmem:[%s4 + $0x1f8] sm:$0xff]
  %v2141 = vld [vmem:[%s6] sm:$0xf]
  %v2143 = vperm.slane %v2141, 0
  %v2144 = vperm.slane %v2141, 1
  %v2145 = vperm.slane %v2141, 2
  %v2146 = vperm.slane %v2141, 3
  %2151 = vmatpush.msra.mxu0 %v2137
  %2152 = vmatpush.msra.mxu0 %v2133
  %2153 = vmatpush.msra.mxu0 %v2129
  %2154 = vmatpush.msra.mxu0 %v2125
  %2155 = vmatpush.msra.mxu0 %v2121
  %2156 = vmatpush.msra.mxu0 %v2117
  %2157 = vmatpush.msra.mxu0 %v2113
  %2158 = vmatpush.msra.mxu0 %v2109
  %2159 = vmatpush.msra.mxu0 %v2105
  %2160 = vmatpush.msra.mxu0 %v2101
  %2161 = vmatpush.msra.mxu0 %v2097
  %2162 = vmatpush.msra.mxu0 %v2093
  %2163 = vmatpush.msra.mxu0 %v2089
  %2164 = vmatpush.msra.mxu0 %v2085
  %2165 = vmatpush.msra.mxu0 %v2081
  %2166 = vmatpush.msra.mxu0 %v2077
  %2167 = vmatmul.f32.gmra.mxu0 %v2069
  %v2168 = vpop.f32.mrf.mxu0
  %v2169 = vadd.f32 %v2143, %v2168
  %2170 = vmatmul.f32.gmra.mxu0 %v2070
  %v2171 = vpop.f32.mrf.mxu0
  %v2172 = vadd.f32 %v2143, %v2171
  %2173 = vmatmul.f32.gmra.mxu0 %v2071
  %v2174 = vpop.f32.mrf.mxu0
  %v2175 = vadd.f32 %v2143, %v2174
  %2176 = vmatmul.f32.gmra.mxu0 %v2072
  %v2177 = vpop.f32.mrf.mxu0
  %v2178 = vadd.f32 %v2143, %v2177
  %2179 = vmatmul.f32.gmra.mxu0 %v2073
  %v2180 = vpop.f32.mrf.mxu0
  %v2181 = vadd.f32 %v2143, %v2180
  %2182 = vmatmul.f32.gmra.mxu0 %v2074
  %v2183 = vpop.f32.mrf.mxu0
  %v2184 = vadd.f32 %v2143, %v2183
  %2185 = vmatmul.f32.gmra.mxu0 %v2075
  %v2186 = vpop.f32.mrf.mxu0
  %v2187 = vadd.f32 %v2143, %v2186
  %2188 = vmatmul.f32.gmra.mxu0 %v2076
  %v2189 = vpop.f32.mrf.mxu0
  %v2190 = vadd.f32 %v2143, %v2189
  %2191 = vdwg.mxu0
  %2192 = vmatpush.msra.mxu0 %v2138
  %2193 = vmatpush.msra.mxu0 %v2134
  %2194 = vmatpush.msra.mxu0 %v2130
  %2195 = vmatpush.msra.mxu0 %v2126
  %2196 = vmatpush.msra.mxu0 %v2122
  %2197 = vmatpush.msra.mxu0 %v2118
  %2198 = vmatpush.msra.mxu0 %v2114
  %2199 = vmatpush.msra.mxu0 %v2110
  %2200 = vmatpush.msra.mxu0 %v2106
  %2201 = vmatpush.msra.mxu0 %v2102
  %2202 = vmatpush.msra.mxu0 %v2098
  %2203 = vmatpush.msra.mxu0 %v2094
  %2204 = vmatpush.msra.mxu0 %v2090
  %2205 = vmatpush.msra.mxu0 %v2086
  %2206 = vmatpush.msra.mxu0 %v2082
  %2207 = vmatpush.msra.mxu0 %v2078
  %2208 = vmatmul.f32.gmra.mxu0 %v2069
  %v2209 = vpop.f32.mrf.mxu0
  %v2210 = vadd.f32 %v2144, %v2209
  %2211 = vmatmul.f32.gmra.mxu0 %v2070
  %v2212 = vpop.f32.mrf.mxu0
  %v2213 = vadd.f32 %v2144, %v2212
  %2214 = vmatmul.f32.gmra.mxu0 %v2071
  %v2215 = vpop.f32.mrf.mxu0
  %v2216 = vadd.f32 %v2144, %v2215
  %2217 = vmatmul.f32.gmra.mxu0 %v2072
  %v2218 = vpop.f32.mrf.mxu0
  %v2219 = vadd.f32 %v2144, %v2218
  %2220 = vmatmul.f32.gmra.mxu0 %v2073
  %v2221 = vpop.f32.mrf.mxu0
  %v2222 = vadd.f32 %v2144, %v2221
  %2223 = vmatmul.f32.gmra.mxu0 %v2074
  %v2224 = vpop.f32.mrf.mxu0
  %v2225 = vadd.f32 %v2144, %v2224
  %2226 = vmatmul.f32.gmra.mxu0 %v2075
  %v2227 = vpop.f32.mrf.mxu0
  %v2228 = vadd.f32 %v2144, %v2227
  %2229 = vmatmul.f32.gmra.mxu0 %v2076
  %v2230 = vpop.f32.mrf.mxu0
  %v2231 = vadd.f32 %v2144, %v2230
  %2232 = vdwg.mxu0
  %2233 = vmatpush.msra.mxu0 %v2139
  %2234 = vmatpush.msra.mxu0 %v2135
  %2235 = vmatpush.msra.mxu0 %v2131
  %2236 = vmatpush.msra.mxu0 %v2127
  %2237 = vmatpush.msra.mxu0 %v2123
  %2238 = vmatpush.msra.mxu0 %v2119
  %2239 = vmatpush.msra.mxu0 %v2115
  %2240 = vmatpush.msra.mxu0 %v2111
  %2241 = vmatpush.msra.mxu0 %v2107
  %2242 = vmatpush.msra.mxu0 %v2103
  %2243 = vmatpush.msra.mxu0 %v2099
  %2244 = vmatpush.msra.mxu0 %v2095
  %2245 = vmatpush.msra.mxu0 %v2091
  %2246 = vmatpush.msra.mxu0 %v2087
  %2247 = vmatpush.msra.mxu0 %v2083
  %2248 = vmatpush.msra.mxu0 %v2079
  %2249 = vmatmul.f32.gmra.mxu0 %v2069
  %v2250 = vpop.f32.mrf.mxu0
  %v2251 = vadd.f32 %v2145, %v2250
  %2252 = vmatmul.f32.gmra.mxu0 %v2070
  %v2253 = vpop.f32.mrf.mxu0
  %v2254 = vadd.f32 %v2145, %v2253
  %2255 = vmatmul.f32.gmra.mxu0 %v2071
  %v2256 = vpop.f32.mrf.mxu0
  %v2257 = vadd.f32 %v2145, %v2256
  %2258 = vmatmul.f32.gmra.mxu0 %v2072
  %v2259 = vpop.f32.mrf.mxu0
  %v2260 = vadd.f32 %v2145, %v2259
  %2261 = vmatmul.f32.gmra.mxu0 %v2073
  %v2262 = vpop.f32.mrf.mxu0
  %v2263 = vadd.f32 %v2145, %v2262
  %2264 = vmatmul.f32.gmra.mxu0 %v2074
  %v2265 = vpop.f32.mrf.mxu0
  %v2266 = vadd.f32 %v2145, %v2265
  %2267 = vmatmul.f32.gmra.mxu0 %v2075
  %v2268 = vpop.f32.mrf.mxu0
  %v2269 = vadd.f32 %v2145, %v2268
  %2270 = vmatmul.f32.gmra.mxu0 %v2076
  %v2271 = vpop.f32.mrf.mxu0
  %v2272 = vadd.f32 %v2145, %v2271
  %2273 = vdwg.mxu0
  %2274 = vmatpush.msra.mxu0 %v2140
  %2275 = vmatpush.msra.mxu0 %v2136
  %2276 = vmatpush.msra.mxu0 %v2132
  %2277 = vmatpush.msra.mxu0 %v2128
  %2278 = vmatpush.msra.mxu0 %v2124
  %2279 = vmatpush.msra.mxu0 %v2120
  %2280 = vmatpush.msra.mxu0 %v2116
  %2281 = vmatpush.msra.mxu0 %v2112
  %2282 = vmatpush.msra.mxu0 %v2108
  %2283 = vmatpush.msra.mxu0 %v2104
  %2284 = vmatpush.msra.mxu0 %v2100
  %2285 = vmatpush.msra.mxu0 %v2096
  %2286 = vmatpush.msra.mxu0 %v2092
  %2287 = vmatpush.msra.mxu0 %v2088
  %2288 = vmatpush.msra.mxu0 %v2084
  %2289 = vmatpush.msra.mxu0 %v2080
  %2290 = vmatmul.f32.gmra.mxu0 %v2069
  %v2291 = vpop.f32.mrf.mxu0
  %v2292 = vadd.f32 %v2146, %v2291
  %2293 = vmatmul.f32.gmra.mxu0 %v2070
  %v2294 = vpop.f32.mrf.mxu0
  %v2295 = vadd.f32 %v2146, %v2294
  %2296 = vmatmul.f32.gmra.mxu0 %v2071
  %v2297 = vpop.f32.mrf.mxu0
  %v2298 = vadd.f32 %v2146, %v2297
  %2299 = vmatmul.f32.gmra.mxu0 %v2072
  %v2300 = vpop.f32.mrf.mxu0
  %v2301 = vadd.f32 %v2146, %v2300
  %2302 = vmatmul.f32.gmra.mxu0 %v2073
  %v2303 = vpop.f32.mrf.mxu0
  %v2304 = vadd.f32 %v2146, %v2303
  %2305 = vmatmul.f32.gmra.mxu0 %v2074
  %v2306 = vpop.f32.mrf.mxu0
  %v2307 = vadd.f32 %v2146, %v2306
  %2308 = vmatmul.f32.gmra.mxu0 %v2075
  %v2309 = vpop.f32.mrf.mxu0
  %v2310 = vadd.f32 %v2146, %v2309
  %2311 = vmatmul.f32.gmra.mxu0 %v2076
  %v2312 = vpop.f32.mrf.mxu0
  %v2313 = vadd.f32 %v2146, %v2312
  %2314 = vdwg.mxu0
  %2315 = vst [vmem:[#allocation4] sm:$0xff] %v2169
  %2316 = vst [vmem:[#allocation4 + $0x8] sm:$0xff] %v2210
  %2317 = vst [vmem:[#allocation4 + $0x10] sm:$0xff] %v2251
  %2318 = vst [vmem:[#allocation4 + $0x18] sm:$0xff] %v2292
  %2319 = vst [vmem:[#allocation4 + $0x20] sm:$0xff] %v2172
  %2320 = vst [vmem:[#allocation4 + $0x28] sm:$0xff] %v2213
  %2321 = vst [vmem:[#allocation4 + $0x30] sm:$0xff] %v2254
  %2322 = vst [vmem:[#allocation4 + $0x38] sm:$0xff] %v2295
  %2323 = vst [vmem:[#allocation4 + $0x40] sm:$0xff] %v2175
  %2324 = vst [vmem:[#allocation4 + $0x48] sm:$0xff] %v2216
  %2325 = vst [vmem:[#allocation4 + $0x50] sm:$0xff] %v2257
  %2326 = vst [vmem:[#allocation4 + $0x58] sm:$0xff] %v2298
  %2327 = vst [vmem:[#allocation4 + $0x60] sm:$0xff] %v2178
  %2328 = vst [vmem:[#allocation4 + $0x68] sm:$0xff] %v2219
  %2329 = vst [vmem:[#allocation4 + $0x70] sm:$0xff] %v2260
  %2330 = vst [vmem:[#allocation4 + $0x78] sm:$0xff] %v2301
  %2331 = vst [vmem:[#allocation4 + $0x80] sm:$0xff] %v2181
  %2332 = vst [vmem:[#allocation4 + $0x88] sm:$0xff] %v2222
  %2333 = vst [vmem:[#allocation4 + $0x90] sm:$0xff] %v2263
  %2334 = vst [vmem:[#allocation4 + $0x98] sm:$0xff] %v2304
  %2335 = vst [vmem:[#allocation4 + $0xa0] sm:$0xff] %v2184
  %2336 = vst [vmem:[#allocation4 + $0xa8] sm:$0xff] %v2225
  %2337 = vst [vmem:[#allocation4 + $0xb0] sm:$0xff] %v2266
  %2338 = vst [vmem:[#allocation4 + $0xb8] sm:$0xff] %v2307
  %2339 = vst [vmem:[#allocation4 + $0xc0] sm:$0xff] %v2187
  %2340 = vst [vmem:[#allocation4 + $0xc8] sm:$0xff] %v2228
  %2341 = vst [vmem:[#allocation4 + $0xd0] sm:$0xff] %v2269
  %2342 = vst [vmem:[#allocation4 + $0xd8] sm:$0xff] %v2310
  %2343 = vst [vmem:[#allocation4 + $0xe0] sm:$0xff] %v2190
  %2344 = vst [vmem:[#allocation4 + $0xe8] sm:$0xff] %v2231
  %2345 = vst [vmem:[#allocation4 + $0xf0] sm:$0xff] %v2272
  %2346 = vst [vmem:[#allocation4 + $0xf8] sm:$0xff] %v2313
  %s2347 = smul.addr %s310, 8
  %s2348 = scalar_lea.vmem [#allocation4], %s2347
  %v2349 = vld [vmem:[%s2348] sm:$0xff]
  %v2350 = vld [vmem:[%s2348 + $0x8] sm:$0xff]
  %v2351 = vld [vmem:[%s2348 + $0x10] sm:$0xff]
  %v2352 = vld [vmem:[%s2348 + $0x18] sm:$0xff]
  %v2353 = vld [vmem:[%s5] sm:$0xff]
  %v2354 = vld [vmem:[%s5 + $0x8] sm:$0xff]
  %v2355 = vld [vmem:[%s5 + $0x10] sm:$0xff]
  %v2356 = vld [vmem:[%s5 + $0x18] sm:$0xff]
  %v2357 = vld [vmem:[%s5 + $0x20] sm:$0xff]
  %v2358 = vld [vmem:[%s5 + $0x28] sm:$0xff]
  %v2359 = vld [vmem:[%s5 + $0x30] sm:$0xff]
  %v2360 = vld [vmem:[%s5 + $0x38] sm:$0xff]
  %v2361 = vld [vmem:[%s5 + $0x40] sm:$0xff]
  %v2362 = vld [vmem:[%s5 + $0x48] sm:$0xff]
  %v2363 = vld [vmem:[%s5 + $0x50] sm:$0xff]
  %v2364 = vld [vmem:[%s5 + $0x58] sm:$0xff]
  %v2365 = vld [vmem:[%s5 + $0x60] sm:$0xff]
  %v2366 = vld [vmem:[%s5 + $0x68] sm:$0xff]
  %v2367 = vld [vmem:[%s5 + $0x70] sm:$0xff]
  %v2368 = vld [vmem:[%s5 + $0x78] sm:$0xff]
  %v2369 = vld [vmem:[%s5 + $0x80] sm:$0xff]
  %v2370 = vld [vmem:[%s5 + $0x88] sm:$0xff]
  %v2371 = vld [vmem:[%s5 + $0x90] sm:$0xff]
  %v2372 = vld [vmem:[%s5 + $0x98] sm:$0xff]
  %v2373 = vld [vmem:[%s5 + $0xa0] sm:$0xff]
  %v2374 = vld [vmem:[%s5 + $0xa8] sm:$0xff]
  %v2375 = vld [vmem:[%s5 + $0xb0] sm:$0xff]
  %v2376 = vld [vmem:[%s5 + $0xb8] sm:$0xff]
  %v2377 = vld [vmem:[%s5 + $0xc0] sm:$0xff]
  %v2378 = vld [vmem:[%s5 + $0xc8] sm:$0xff]
  %v2379 = vld [vmem:[%s5 + $0xd0] sm:$0xff]
  %v2380 = vld [vmem:[%s5 + $0xd8] sm:$0xff]
  %v2381 = vld [vmem:[%s5 + $0xe0] sm:$0xff]
  %v2382 = vld [vmem:[%s5 + $0xe8] sm:$0xff]
  %v2383 = vld [vmem:[%s5 + $0xf0] sm:$0xff]
  %v2384 = vld [vmem:[%s5 + $0xf8] sm:$0xff]
  %v2385 = vld [vmem:[%s5 + $0x100] sm:$0xff]
  %v2386 = vld [vmem:[%s5 + $0x108] sm:$0xff]
  %v2387 = vld [vmem:[%s5 + $0x110] sm:$0xff]
  %v2388 = vld [vmem:[%s5 + $0x118] sm:$0xff]
  %v2389 = vld [vmem:[%s5 + $0x120] sm:$0xff]
  %v2390 = vld [vmem:[%s5 + $0x128] sm:$0xff]
  %v2391 = vld [vmem:[%s5 + $0x130] sm:$0xff]
  %v2392 = vld [vmem:[%s5 + $0x138] sm:$0xff]
  %v2393 = vld [vmem:[%s5 + $0x140] sm:$0xff]
  %v2394 = vld [vmem:[%s5 + $0x148] sm:$0xff]
  %v2395 = vld [vmem:[%s5 + $0x150] sm:$0xff]
  %v2396 = vld [vmem:[%s5 + $0x158] sm:$0xff]
  %v2397 = vld [vmem:[%s5 + $0x160] sm:$0xff]
  %v2398 = vld [vmem:[%s5 + $0x168] sm:$0xff]
  %v2399 = vld [vmem:[%s5 + $0x170] sm:$0xff]
  %v2400 = vld [vmem:[%s5 + $0x178] sm:$0xff]
  %v2401 = vld [vmem:[%s5 + $0x180] sm:$0xff]
  %v2402 = vld [vmem:[%s5 + $0x188] sm:$0xff]
  %v2403 = vld [vmem:[%s5 + $0x190] sm:$0xff]
  %v2404 = vld [vmem:[%s5 + $0x198] sm:$0xff]
  %v2405 = vld [vmem:[%s5 + $0x1a0] sm:$0xff]
  %v2406 = vld [vmem:[%s5 + $0x1a8] sm:$0xff]
  %v2407 = vld [vmem:[%s5 + $0x1b0] sm:$0xff]
  %v2408 = vld [vmem:[%s5 + $0x1b8] sm:$0xff]
  %v2409 = vld [vmem:[%s5 + $0x1c0] sm:$0xff]
  %v2410 = vld [vmem:[%s5 + $0x1c8] sm:$0xff]
  %v2411 = vld [vmem:[%s5 + $0x1d0] sm:$0xff]
  %v2412 = vld [vmem:[%s5 + $0x1d8] sm:$0xff]
  %v2413 = vld [vmem:[%s5 + $0x1e0] sm:$0xff]
  %v2414 = vld [vmem:[%s5 + $0x1e8] sm:$0xff]
  %v2415 = vld [vmem:[%s5 + $0x1f0] sm:$0xff]
  %v2416 = vld [vmem:[%s5 + $0x1f8] sm:$0xff]
  %2417 = vmatpush.msra.mxu0 %v2413
  %2418 = vmatpush.msra.mxu0 %v2409
  %2419 = vmatpush.msra.mxu0 %v2405
  %2420 = vmatpush.msra.mxu0 %v2401
  %2421 = vmatpush.msra.mxu0 %v2397
  %2422 = vmatpush.msra.mxu0 %v2393
  %2423 = vmatpush.msra.mxu0 %v2389
  %2424 = vmatpush.msra.mxu0 %v2385
  %2425 = vmatpush.msra.mxu0 %v2381
  %2426 = vmatpush.msra.mxu0 %v2377
  %2427 = vmatpush.msra.mxu0 %v2373
  %2428 = vmatpush.msra.mxu0 %v2369
  %2429 = vmatpush.msra.mxu0 %v2365
  %2430 = vmatpush.msra.mxu0 %v2361
  %2431 = vmatpush.msra.mxu0 %v2357
  %2432 = vmatpush.msra.mxu0 %v2353
  %2433 = vmatmul.f32.gmra.mxu0 0.0
  %v2434 = vpop.f32.mrf.mxu0
  %v2435 = vadd.f32 0.0, %v2434
  %2436 = vdwg.mxu0
  %2437 = vmatpush.msra.mxu0 %v2414
  %2438 = vmatpush.msra.mxu0 %v2410
  %2439 = vmatpush.msra.mxu0 %v2406
  %2440 = vmatpush.msra.mxu0 %v2402
  %2441 = vmatpush.msra.mxu0 %v2398
  %2442 = vmatpush.msra.mxu0 %v2394
  %2443 = vmatpush.msra.mxu0 %v2390
  %2444 = vmatpush.msra.mxu0 %v2386
  %2445 = vmatpush.msra.mxu0 %v2382
  %2446 = vmatpush.msra.mxu0 %v2378
  %2447 = vmatpush.msra.mxu0 %v2374
  %2448 = vmatpush.msra.mxu0 %v2370
  %2449 = vmatpush.msra.mxu0 %v2366
  %2450 = vmatpush.msra.mxu0 %v2362
  %2451 = vmatpush.msra.mxu0 %v2358
  %2452 = vmatpush.msra.mxu0 %v2354
  %2453 = vmatmul.f32.gmra.mxu0 0.0
  %v2454 = vpop.f32.mrf.mxu0
  %v2455 = vadd.f32 0.0, %v2454
  %2456 = vdwg.mxu0
  %2457 = vmatpush.msra.mxu0 %v2415
  %2458 = vmatpush.msra.mxu0 %v2411
  %2459 = vmatpush.msra.mxu0 %v2407
  %2460 = vmatpush.msra.mxu0 %v2403
  %2461 = vmatpush.msra.mxu0 %v2399
  %2462 = vmatpush.msra.mxu0 %v2395
  %2463 = vmatpush.msra.mxu0 %v2391
  %2464 = vmatpush.msra.mxu0 %v2387
  %2465 = vmatpush.msra.mxu0 %v2383
  %2466 = vmatpush.msra.mxu0 %v2379
  %2467 = vmatpush.msra.mxu0 %v2375
  %2468 = vmatpush.msra.mxu0 %v2371
  %2469 = vmatpush.msra.mxu0 %v2367
  %2470 = vmatpush.msra.mxu0 %v2363
  %2471 = vmatpush.msra.mxu0 %v2359
  %2472 = vmatpush.msra.mxu0 %v2355
  %2473 = vmatmul.f32.gmra.mxu0 0.0
  %v2474 = vpop.f32.mrf.mxu0
  %v2475 = vadd.f32 0.0, %v2474
  %2476 = vdwg.mxu0
  %2477 = vmatpush.msra.mxu0 %v2416
  %2478 = vmatpush.msra.mxu0 %v2412
  %2479 = vmatpush.msra.mxu0 %v2408
  %2480 = vmatpush.msra.mxu0 %v2404
  %2481 = vmatpush.msra.mxu0 %v2400
  %2482 = vmatpush.msra.mxu0 %v2396
  %2483 = vmatpush.msra.mxu0 %v2392
  %2484 = vmatpush.msra.mxu0 %v2388
  %2485 = vmatpush.msra.mxu0 %v2384
  %2486 = vmatpush.msra.mxu0 %v2380
  %2487 = vmatpush.msra.mxu0 %v2376
  %2488 = vmatpush.msra.mxu0 %v2372
  %2489 = vmatpush.msra.mxu0 %v2368
  %2490 = vmatpush.msra.mxu0 %v2364
  %2491 = vmatpush.msra.mxu0 %v2360
  %2492 = vmatpush.msra.mxu0 %v2356
  %2493 = vmatmul.f32.gmra.mxu0 0.0
  %v2494 = vpop.f32.mrf.mxu0
  %v2495 = vadd.f32 0.0, %v2494
  %2496 = vdwg.mxu0
  %v2497 = vadd.f32 %v2349, %v2435
  %v2498 = vadd.f32 %v2350, %v2455
  %v2499 = vadd.f32 %v2351, %v2475
  %v2500 = vadd.f32 %v2352, %v2495
  %v2501 = vxor.u32 %v2497, 2147483648
  %v2502 = vmul.f32 %v2501, 1.442695
  %v2503 = vpow.pop %v2502
  %v2504 = vadd.f32 %v2503, 1.0
  %v2505 = vrcp.pop %v2504
  %v2506 = vmul.f32 %v2504, %v2505
  %v2507 = vsub.f32 1.0, %v2506
  %v2508 = vmul.f32 %v2505, %v2507
  %v2509 = vadd.f32 %v2505, %v2508
  %vm2510 = vweird.f32 %v2504
  %vm2511 = vweird.f32 %v2505
  %vm2512 = vmor %vm2510, %vm2511
  %v2513 = vsel %vm2512, %v2505, %v2509
  %v2514 = vand.u32 2147483647, %v2504
  %vm2515 = vcmp.eq.f32.partialorder %v2514, 8.507059e+37
  %v2516 = vand.u32 %v2504, 2147483648
  %v2517 = vor.u32 1.1754944e-38, %v2516
  %v2518 = vsel %vm2515, %v2517, %v2513
  %v2519 = vmul.f32 1.0, %v2518
  %v2520 = vxor.u32 %v2498, 2147483648
  %v2521 = vmul.f32 %v2520, 1.442695
  %v2522 = vpow.pop %v2521
  %v2523 = vadd.f32 %v2522, 1.0
  %v2524 = vrcp.pop %v2523
  %v2525 = vmul.f32 %v2523, %v2524
  %v2526 = vsub.f32 1.0, %v2525
  %v2527 = vmul.f32 %v2524, %v2526
  %v2528 = vadd.f32 %v2524, %v2527
  %vm2529 = vweird.f32 %v2523
  %vm2530 = vweird.f32 %v2524
  %vm2531 = vmor %vm2529, %vm2530
  %v2532 = vsel %vm2531, %v2524, %v2528
  %v2533 = vand.u32 2147483647, %v2523
  %vm2534 = vcmp.eq.f32.partialorder %v2533, 8.507059e+37
  %v2535 = vand.u32 %v2523, 2147483648
  %v2536 = vor.u32 1.1754944e-38, %v2535
  %v2537 = vsel %vm2534, %v2536, %v2532
  %v2538 = vmul.f32 1.0, %v2537
  %v2539 = vtanh.pop %v2499
  %v2540 = vxor.u32 %v2500, 2147483648
  %v2541 = vmul.f32 %v2540, 1.442695
  %v2542 = vpow.pop %v2541
  %v2543 = vadd.f32 %v2542, 1.0
  %v2544 = vrcp.pop %v2543
  %v2545 = vmul.f32 %v2543, %v2544
  %v2546 = vsub.f32 1.0, %v2545
  %v2547 = vmul.f32 %v2544, %v2546
  %v2548 = vadd.f32 %v2544, %v2547
  %vm2549 = vweird.f32 %v2543
  %vm2550 = vweird.f32 %v2544
  %vm2551 = vmor %vm2549, %vm2550
  %v2552 = vsel %vm2551, %v2544, %v2548
  %v2553 = vand.u32 2147483647, %v2543
  %vm2554 = vcmp.eq.f32.partialorder %v2553, 8.507059e+37
  %v2555 = vand.u32 %v2543, 2147483648
  %v2556 = vor.u32 1.1754944e-38, %v2555
  %v2557 = vsel %vm2554, %v2556, %v2552
  %v2558 = vmul.f32 1.0, %v2557
  %v2559 = vmul.f32 %v2538, 0.0
  %v2560 = vmul.f32 %v2519, %v2539
  %v2561 = vadd.f32 %v2559, %v2560
  %v2562 = vtanh.pop %v2561
  %v2563 = vmul.f32 %v2558, %v2562
  %2564 = vst [vmem:[#allocation5] sm:$0xff] %v2563
  %s2565 = smul.addr %s529, 8
  %s2566 = scalar_lea.vmem [#allocation4], %s2565
  %v2567 = vld [vmem:[%s2566] sm:$0xff]
  %v2568 = vld [vmem:[%s2566 + $0x8] sm:$0xff]
  %v2569 = vld [vmem:[%s2566 + $0x10] sm:$0xff]
  %v2570 = vld [vmem:[%s2566 + $0x18] sm:$0xff]
  %v2571 = vld [vmem:[%s5] sm:$0xff]
  %v2572 = vld [vmem:[%s5 + $0x8] sm:$0xff]
  %v2573 = vld [vmem:[%s5 + $0x10] sm:$0xff]
  %v2574 = vld [vmem:[%s5 + $0x18] sm:$0xff]
  %v2575 = vld [vmem:[%s5 + $0x20] sm:$0xff]
  %v2576 = vld [vmem:[%s5 + $0x28] sm:$0xff]
  %v2577 = vld [vmem:[%s5 + $0x30] sm:$0xff]
  %v2578 = vld [vmem:[%s5 + $0x38] sm:$0xff]
  %v2579 = vld [vmem:[%s5 + $0x40] sm:$0xff]
  %v2580 = vld [vmem:[%s5 + $0x48] sm:$0xff]
  %v2581 = vld [vmem:[%s5 + $0x50] sm:$0xff]
  %v2582 = vld [vmem:[%s5 + $0x58] sm:$0xff]
  %v2583 = vld [vmem:[%s5 + $0x60] sm:$0xff]
  %v2584 = vld [vmem:[%s5 + $0x68] sm:$0xff]
  %v2585 = vld [vmem:[%s5 + $0x70] sm:$0xff]
  %v2586 = vld [vmem:[%s5 + $0x78] sm:$0xff]
  %v2587 = vld [vmem:[%s5 + $0x80] sm:$0xff]
  %v2588 = vld [vmem:[%s5 + $0x88] sm:$0xff]
  %v2589 = vld [vmem:[%s5 + $0x90] sm:$0xff]
  %v2590 = vld [vmem:[%s5 + $0x98] sm:$0xff]
  %v2591 = vld [vmem:[%s5 + $0xa0] sm:$0xff]
  %v2592 = vld [vmem:[%s5 + $0xa8] sm:$0xff]
  %v2593 = vld [vmem:[%s5 + $0xb0] sm:$0xff]
  %v2594 = vld [vmem:[%s5 + $0xb8] sm:$0xff]
  %v2595 = vld [vmem:[%s5 + $0xc0] sm:$0xff]
  %v2596 = vld [vmem:[%s5 + $0xc8] sm:$0xff]
  %v2597 = vld [vmem:[%s5 + $0xd0] sm:$0xff]
  %v2598 = vld [vmem:[%s5 + $0xd8] sm:$0xff]
  %v2599 = vld [vmem:[%s5 + $0xe0] sm:$0xff]
  %v2600 = vld [vmem:[%s5 + $0xe8] sm:$0xff]
  %v2601 = vld [vmem:[%s5 + $0xf0] sm:$0xff]
  %v2602 = vld [vmem:[%s5 + $0xf8] sm:$0xff]
  %v2603 = vld [vmem:[%s5 + $0x100] sm:$0xff]
  %v2604 = vld [vmem:[%s5 + $0x108] sm:$0xff]
  %v2605 = vld [vmem:[%s5 + $0x110] sm:$0xff]
  %v2606 = vld [vmem:[%s5 + $0x118] sm:$0xff]
  %v2607 = vld [vmem:[%s5 + $0x120] sm:$0xff]
  %v2608 = vld [vmem:[%s5 + $0x128] sm:$0xff]
  %v2609 = vld [vmem:[%s5 + $0x130] sm:$0xff]
  %v2610 = vld [vmem:[%s5 + $0x138] sm:$0xff]
  %v2611 = vld [vmem:[%s5 + $0x140] sm:$0xff]
  %v2612 = vld [vmem:[%s5 + $0x148] sm:$0xff]
  %v2613 = vld [vmem:[%s5 + $0x150] sm:$0xff]
  %v2614 = vld [vmem:[%s5 + $0x158] sm:$0xff]
  %v2615 = vld [vmem:[%s5 + $0x160] sm:$0xff]
  %v2616 = vld [vmem:[%s5 + $0x168] sm:$0xff]
  %v2617 = vld [vmem:[%s5 + $0x170] sm:$0xff]
  %v2618 = vld [vmem:[%s5 + $0x178] sm:$0xff]
  %v2619 = vld [vmem:[%s5 + $0x180] sm:$0xff]
  %v2620 = vld [vmem:[%s5 + $0x188] sm:$0xff]
  %v2621 = vld [vmem:[%s5 + $0x190] sm:$0xff]
  %v2622 = vld [vmem:[%s5 + $0x198] sm:$0xff]
  %v2623 = vld [vmem:[%s5 + $0x1a0] sm:$0xff]
  %v2624 = vld [vmem:[%s5 + $0x1a8] sm:$0xff]
  %v2625 = vld [vmem:[%s5 + $0x1b0] sm:$0xff]
  %v2626 = vld [vmem:[%s5 + $0x1b8] sm:$0xff]
  %v2627 = vld [vmem:[%s5 + $0x1c0] sm:$0xff]
  %v2628 = vld [vmem:[%s5 + $0x1c8] sm:$0xff]
  %v2629 = vld [vmem:[%s5 + $0x1d0] sm:$0xff]
  %v2630 = vld [vmem:[%s5 + $0x1d8] sm:$0xff]
  %v2631 = vld [vmem:[%s5 + $0x1e0] sm:$0xff]
  %v2632 = vld [vmem:[%s5 + $0x1e8] sm:$0xff]
  %v2633 = vld [vmem:[%s5 + $0x1f0] sm:$0xff]
  %v2634 = vld [vmem:[%s5 + $0x1f8] sm:$0xff]
  %2635 = vmatpush.msra.mxu0 %v2631
  %2636 = vmatpush.msra.mxu0 %v2627
  %2637 = vmatpush.msra.mxu0 %v2623
  %2638 = vmatpush.msra.mxu0 %v2619
  %2639 = vmatpush.msra.mxu0 %v2615
  %2640 = vmatpush.msra.mxu0 %v2611
  %2641 = vmatpush.msra.mxu0 %v2607
  %2642 = vmatpush.msra.mxu0 %v2603
  %2643 = vmatpush.msra.mxu0 %v2599
  %2644 = vmatpush.msra.mxu0 %v2595
  %2645 = vmatpush.msra.mxu0 %v2591
  %2646 = vmatpush.msra.mxu0 %v2587
  %2647 = vmatpush.msra.mxu0 %v2583
  %2648 = vmatpush.msra.mxu0 %v2579
  %2649 = vmatpush.msra.mxu0 %v2575
  %2650 = vmatpush.msra.mxu0 %v2571
  %2651 = vmatmul.f32.gmra.mxu0 %v2563
  %v2652 = vpop.f32.mrf.mxu0
  %v2653 = vadd.f32 0.0, %v2652
  %2654 = vdwg.mxu0
  %2655 = vmatpush.msra.mxu0 %v2632
  %2656 = vmatpush.msra.mxu0 %v2628
  %2657 = vmatpush.msra.mxu0 %v2624
  %2658 = vmatpush.msra.mxu0 %v2620
  %2659 = vmatpush.msra.mxu0 %v2616
  %2660 = vmatpush.msra.mxu0 %v2612
  %2661 = vmatpush.msra.mxu0 %v2608
  %2662 = vmatpush.msra.mxu0 %v2604
  %2663 = vmatpush.msra.mxu0 %v2600
  %2664 = vmatpush.msra.mxu0 %v2596
  %2665 = vmatpush.msra.mxu0 %v2592
  %2666 = vmatpush.msra.mxu0 %v2588
  %2667 = vmatpush.msra.mxu0 %v2584
  %2668 = vmatpush.msra.mxu0 %v2580
  %2669 = vmatpush.msra.mxu0 %v2576
  %2670 = vmatpush.msra.mxu0 %v2572
  %2671 = vmatmul.f32.gmra.mxu0 %v2563
  %v2672 = vpop.f32.mrf.mxu0
  %v2673 = vadd.f32 0.0, %v2672
  %2674 = vdwg.mxu0
  %2675 = vmatpush.msra.mxu0 %v2633
  %2676 = vmatpush.msra.mxu0 %v2629
  %2677 = vmatpush.msra.mxu0 %v2625
  %2678 = vmatpush.msra.mxu0 %v2621
  %2679 = vmatpush.msra.mxu0 %v2617
  %2680 = vmatpush.msra.mxu0 %v2613
  %2681 = vmatpush.msra.mxu0 %v2609
  %2682 = vmatpush.msra.mxu0 %v2605
  %2683 = vmatpush.msra.mxu0 %v2601
  %2684 = vmatpush.msra.mxu0 %v2597
  %2685 = vmatpush.msra.mxu0 %v2593
  %2686 = vmatpush.msra.mxu0 %v2589
  %2687 = vmatpush.msra.mxu0 %v2585
  %2688 = vmatpush.msra.mxu0 %v2581
  %2689 = vmatpush.msra.mxu0 %v2577
  %2690 = vmatpush.msra.mxu0 %v2573
  %2691 = vmatmul.f32.gmra.mxu0 %v2563
  %v2692 = vpop.f32.mrf.mxu0
  %v2693 = vadd.f32 0.0, %v2692
  %2694 = vdwg.mxu0
  %2695 = vmatpush.msra.mxu0 %v2634
  %2696 = vmatpush.msra.mxu0 %v2630
  %2697 = vmatpush.msra.mxu0 %v2626
  %2698 = vmatpush.msra.mxu0 %v2622
  %2699 = vmatpush.msra.mxu0 %v2618
  %2700 = vmatpush.msra.mxu0 %v2614
  %2701 = vmatpush.msra.mxu0 %v2610
  %2702 = vmatpush.msra.mxu0 %v2606
  %2703 = vmatpush.msra.mxu0 %v2602
  %2704 = vmatpush.msra.mxu0 %v2598
  %2705 = vmatpush.msra.mxu0 %v2594
  %2706 = vmatpush.msra.mxu0 %v2590
  %2707 = vmatpush.msra.mxu0 %v2586
  %2708 = vmatpush.msra.mxu0 %v2582
  %2709 = vmatpush.msra.mxu0 %v2578
  %2710 = vmatpush.msra.mxu0 %v2574
  %2711 = vmatmul.f32.gmra.mxu0 %v2563
  %v2712 = vpop.f32.mrf.mxu0
  %v2713 = vadd.f32 0.0, %v2712
  %2714 = vdwg.mxu0
  %v2715 = vadd.f32 %v2567, %v2653
  %v2716 = vadd.f32 %v2568, %v2673
  %v2717 = vadd.f32 %v2569, %v2693
  %v2718 = vadd.f32 %v2570, %v2713
  %v2719 = vxor.u32 %v2715, 2147483648
  %v2720 = vmul.f32 %v2719, 1.442695
  %v2721 = vpow.pop %v2720
  %v2722 = vadd.f32 %v2721, 1.0
  %v2723 = vrcp.pop %v2722
  %v2724 = vmul.f32 %v2722, %v2723
  %v2725 = vsub.f32 1.0, %v2724
  %v2726 = vmul.f32 %v2723, %v2725
  %v2727 = vadd.f32 %v2723, %v2726
  %vm2728 = vweird.f32 %v2722
  %vm2729 = vweird.f32 %v2723
  %vm2730 = vmor %vm2728, %vm2729
  %v2731 = vsel %vm2730, %v2723, %v2727
  %v2732 = vand.u32 2147483647, %v2722
  %vm2733 = vcmp.eq.f32.partialorder %v2732, 8.507059e+37
  %v2734 = vand.u32 %v2722, 2147483648
  %v2735 = vor.u32 1.1754944e-38, %v2734
  %v2736 = vsel %vm2733, %v2735, %v2731
  %v2737 = vmul.f32 1.0, %v2736
  %v2738 = vxor.u32 %v2716, 2147483648
  %v2739 = vmul.f32 %v2738, 1.442695
  %v2740 = vpow.pop %v2739
  %v2741 = vadd.f32 %v2740, 1.0
  %v2742 = vrcp.pop %v2741
  %v2743 = vmul.f32 %v2741, %v2742
  %v2744 = vsub.f32 1.0, %v2743
  %v2745 = vmul.f32 %v2742, %v2744
  %v2746 = vadd.f32 %v2742, %v2745
  %vm2747 = vweird.f32 %v2741
  %vm2748 = vweird.f32 %v2742
  %vm2749 = vmor %vm2747, %vm2748
  %v2750 = vsel %vm2749, %v2742, %v2746
  %v2751 = vand.u32 2147483647, %v2741
  %vm2752 = vcmp.eq.f32.partialorder %v2751, 8.507059e+37
  %v2753 = vand.u32 %v2741, 2147483648
  %v2754 = vor.u32 1.1754944e-38, %v2753
  %v2755 = vsel %vm2752, %v2754, %v2750
  %v2756 = vmul.f32 1.0, %v2755
  %v2757 = vtanh.pop %v2717
  %v2758 = vxor.u32 %v2718, 2147483648
  %v2759 = vmul.f32 %v2758, 1.442695
  %v2760 = vpow.pop %v2759
  %v2761 = vadd.f32 %v2760, 1.0
  %v2762 = vrcp.pop %v2761
  %v2763 = vmul.f32 %v2761, %v2762
  %v2764 = vsub.f32 1.0, %v2763
  %v2765 = vmul.f32 %v2762, %v2764
  %v2766 = vadd.f32 %v2762, %v2765
  %vm2767 = vweird.f32 %v2761
  %vm2768 = vweird.f32 %v2762
  %vm2769 = vmor %vm2767, %vm2768
  %v2770 = vsel %vm2769, %v2762, %v2766
  %v2771 = vand.u32 2147483647, %v2761
  %vm2772 = vcmp.eq.f32.partialorder %v2771, 8.507059e+37
  %v2773 = vand.u32 %v2761, 2147483648
  %v2774 = vor.u32 1.1754944e-38, %v2773
  %v2775 = vsel %vm2772, %v2774, %v2770
  %v2776 = vmul.f32 1.0, %v2775
  %v2777 = vmul.f32 %v2756, %v2561
  %v2778 = vmul.f32 %v2737, %v2757
  %v2779 = vadd.f32 %v2777, %v2778
  %v2780 = vtanh.pop %v2779
  %v2781 = vmul.f32 %v2776, %v2780
  %s2782 = scalar_lea.vmem [#allocation5], 8
  %2783 = vst [vmem:[%s2782] sm:$0xff] %v2781
  %s2784 = smul.addr %s749, 8
  %s2785 = scalar_lea.vmem [#allocation4], %s2784
  %v2786 = vld [vmem:[%s2785] sm:$0xff]
  %v2787 = vld [vmem:[%s2785 + $0x8] sm:$0xff]
  %v2788 = vld [vmem:[%s2785 + $0x10] sm:$0xff]
  %v2789 = vld [vmem:[%s2785 + $0x18] sm:$0xff]
  %v2790 = vld [vmem:[%s5] sm:$0xff]
  %v2791 = vld [vmem:[%s5 + $0x8] sm:$0xff]
  %v2792 = vld [vmem:[%s5 + $0x10] sm:$0xff]
  %v2793 = vld [vmem:[%s5 + $0x18] sm:$0xff]
  %v2794 = vld [vmem:[%s5 + $0x20] sm:$0xff]
  %v2795 = vld [vmem:[%s5 + $0x28] sm:$0xff]
  %v2796 = vld [vmem:[%s5 + $0x30] sm:$0xff]
  %v2797 = vld [vmem:[%s5 + $0x38] sm:$0xff]
  %v2798 = vld [vmem:[%s5 + $0x40] sm:$0xff]
  %v2799 = vld [vmem:[%s5 + $0x48] sm:$0xff]
  %v2800 = vld [vmem:[%s5 + $0x50] sm:$0xff]
  %v2801 = vld [vmem:[%s5 + $0x58] sm:$0xff]
  %v2802 = vld [vmem:[%s5 + $0x60] sm:$0xff]
  %v2803 = vld [vmem:[%s5 + $0x68] sm:$0xff]
  %v2804 = vld [vmem:[%s5 + $0x70] sm:$0xff]
  %v2805 = vld [vmem:[%s5 + $0x78] sm:$0xff]
  %v2806 = vld [vmem:[%s5 + $0x80] sm:$0xff]
  %v2807 = vld [vmem:[%s5 + $0x88] sm:$0xff]
  %v2808 = vld [vmem:[%s5 + $0x90] sm:$0xff]
  %v2809 = vld [vmem:[%s5 + $0x98] sm:$0xff]
  %v2810 = vld [vmem:[%s5 + $0xa0] sm:$0xff]
  %v2811 = vld [vmem:[%s5 + $0xa8] sm:$0xff]
  %v2812 = vld [vmem:[%s5 + $0xb0] sm:$0xff]
  %v2813 = vld [vmem:[%s5 + $0xb8] sm:$0xff]
  %v2814 = vld [vmem:[%s5 + $0xc0] sm:$0xff]
  %v2815 = vld [vmem:[%s5 + $0xc8] sm:$0xff]
  %v2816 = vld [vmem:[%s5 + $0xd0] sm:$0xff]
  %v2817 = vld [vmem:[%s5 + $0xd8] sm:$0xff]
  %v2818 = vld [vmem:[%s5 + $0xe0] sm:$0xff]
  %v2819 = vld [vmem:[%s5 + $0xe8] sm:$0xff]
  %v2820 = vld [vmem:[%s5 + $0xf0] sm:$0xff]
  %v2821 = vld [vmem:[%s5 + $0xf8] sm:$0xff]
  %v2822 = vld [vmem:[%s5 + $0x100] sm:$0xff]
  %v2823 = vld [vmem:[%s5 + $0x108] sm:$0xff]
  %v2824 = vld [vmem:[%s5 + $0x110] sm:$0xff]
  %v2825 = vld [vmem:[%s5 + $0x118] sm:$0xff]
  %v2826 = vld [vmem:[%s5 + $0x120] sm:$0xff]
  %v2827 = vld [vmem:[%s5 + $0x128] sm:$0xff]
  %v2828 = vld [vmem:[%s5 + $0x130] sm:$0xff]
  %v2829 = vld [vmem:[%s5 + $0x138] sm:$0xff]
  %v2830 = vld [vmem:[%s5 + $0x140] sm:$0xff]
  %v2831 = vld [vmem:[%s5 + $0x148] sm:$0xff]
  %v2832 = vld [vmem:[%s5 + $0x150] sm:$0xff]
  %v2833 = vld [vmem:[%s5 + $0x158] sm:$0xff]
  %v2834 = vld [vmem:[%s5 + $0x160] sm:$0xff]
  %v2835 = vld [vmem:[%s5 + $0x168] sm:$0xff]
  %v2836 = vld [vmem:[%s5 + $0x170] sm:$0xff]
  %v2837 = vld [vmem:[%s5 + $0x178] sm:$0xff]
  %v2838 = vld [vmem:[%s5 + $0x180] sm:$0xff]
  %v2839 = vld [vmem:[%s5 + $0x188] sm:$0xff]
  %v2840 = vld [vmem:[%s5 + $0x190] sm:$0xff]
  %v2841 = vld [vmem:[%s5 + $0x198] sm:$0xff]
  %v2842 = vld [vmem:[%s5 + $0x1a0] sm:$0xff]
  %v2843 = vld [vmem:[%s5 + $0x1a8] sm:$0xff]
  %v2844 = vld [vmem:[%s5 + $0x1b0] sm:$0xff]
  %v2845 = vld [vmem:[%s5 + $0x1b8] sm:$0xff]
  %v2846 = vld [vmem:[%s5 + $0x1c0] sm:$0xff]
  %v2847 = vld [vmem:[%s5 + $0x1c8] sm:$0xff]
  %v2848 = vld [vmem:[%s5 + $0x1d0] sm:$0xff]
  %v2849 = vld [vmem:[%s5 + $0x1d8] sm:$0xff]
  %v2850 = vld [vmem:[%s5 + $0x1e0] sm:$0xff]
  %v2851 = vld [vmem:[%s5 + $0x1e8] sm:$0xff]
  %v2852 = vld [vmem:[%s5 + $0x1f0] sm:$0xff]
  %v2853 = vld [vmem:[%s5 + $0x1f8] sm:$0xff]
  %2854 = vmatpush.msra.mxu0 %v2850
  %2855 = vmatpush.msra.mxu0 %v2846
  %2856 = vmatpush.msra.mxu0 %v2842
  %2857 = vmatpush.msra.mxu0 %v2838
  %2858 = vmatpush.msra.mxu0 %v2834
  %2859 = vmatpush.msra.mxu0 %v2830
  %2860 = vmatpush.msra.mxu0 %v2826
  %2861 = vmatpush.msra.mxu0 %v2822
  %2862 = vmatpush.msra.mxu0 %v2818
  %2863 = vmatpush.msra.mxu0 %v2814
  %2864 = vmatpush.msra.mxu0 %v2810
  %2865 = vmatpush.msra.mxu0 %v2806
  %2866 = vmatpush.msra.mxu0 %v2802
  %2867 = vmatpush.msra.mxu0 %v2798
  %2868 = vmatpush.msra.mxu0 %v2794
  %2869 = vmatpush.msra.mxu0 %v2790
  %2870 = vmatmul.f32.gmra.mxu0 %v2781
  %v2871 = vpop.f32.mrf.mxu0
  %v2872 = vadd.f32 0.0, %v2871
  %2873 = vdwg.mxu0
  %2874 = vmatpush.msra.mxu0 %v2851
  %2875 = vmatpush.msra.mxu0 %v2847
  %2876 = vmatpush.msra.mxu0 %v2843
  %2877 = vmatpush.msra.mxu0 %v2839
  %2878 = vmatpush.msra.mxu0 %v2835
  %2879 = vmatpush.msra.mxu0 %v2831
  %2880 = vmatpush.msra.mxu0 %v2827
  %2881 = vmatpush.msra.mxu0 %v2823
  %2882 = vmatpush.msra.mxu0 %v2819
  %2883 = vmatpush.msra.mxu0 %v2815
  %2884 = vmatpush.msra.mxu0 %v2811
  %2885 = vmatpush.msra.mxu0 %v2807
  %2886 = vmatpush.msra.mxu0 %v2803
  %2887 = vmatpush.msra.mxu0 %v2799
  %2888 = vmatpush.msra.mxu0 %v2795
  %2889 = vmatpush.msra.mxu0 %v2791
  %2890 = vmatmul.f32.gmra.mxu0 %v2781
  %v2891 = vpop.f32.mrf.mxu0
  %v2892 = vadd.f32 0.0, %v2891
  %2893 = vdwg.mxu0
  %2894 = vmatpush.msra.mxu0 %v2852
  %2895 = vmatpush.msra.mxu0 %v2848
  %2896 = vmatpush.msra.mxu0 %v2844
  %2897 = vmatpush.msra.mxu0 %v2840
  %2898 = vmatpush.msra.mxu0 %v2836
  %2899 = vmatpush.msra.mxu0 %v2832
  %2900 = vmatpush.msra.mxu0 %v2828
  %2901 = vmatpush.msra.mxu0 %v2824
  %2902 = vmatpush.msra.mxu0 %v2820
  %2903 = vmatpush.msra.mxu0 %v2816
  %2904 = vmatpush.msra.mxu0 %v2812
  %2905 = vmatpush.msra.mxu0 %v2808
  %2906 = vmatpush.msra.mxu0 %v2804
  %2907 = vmatpush.msra.mxu0 %v2800
  %2908 = vmatpush.msra.mxu0 %v2796
  %2909 = vmatpush.msra.mxu0 %v2792
  %2910 = vmatmul.f32.gmra.mxu0 %v2781
  %v2911 = vpop.f32.mrf.mxu0
  %v2912 = vadd.f32 0.0, %v2911
  %2913 = vdwg.mxu0
  %2914 = vmatpush.msra.mxu0 %v2853
  %2915 = vmatpush.msra.mxu0 %v2849
  %2916 = vmatpush.msra.mxu0 %v2845
  %2917 = vmatpush.msra.mxu0 %v2841
  %2918 = vmatpush.msra.mxu0 %v2837
  %2919 = vmatpush.msra.mxu0 %v2833
  %2920 = vmatpush.msra.mxu0 %v2829
  %2921 = vmatpush.msra.mxu0 %v2825
  %2922 = vmatpush.msra.mxu0 %v2821
  %2923 = vmatpush.msra.mxu0 %v2817
  %2924 = vmatpush.msra.mxu0 %v2813
  %2925 = vmatpush.msra.mxu0 %v2809
  %2926 = vmatpush.msra.mxu0 %v2805
  %2927 = vmatpush.msra.mxu0 %v2801
  %2928 = vmatpush.msra.mxu0 %v2797
  %2929 = vmatpush.msra.mxu0 %v2793
  %2930 = vmatmul.f32.gmra.mxu0 %v2781
  %v2931 = vpop.f32.mrf.mxu0
  %v2932 = vadd.f32 0.0, %v2931
  %2933 = vdwg.mxu0
  %v2934 = vadd.f32 %v2786, %v2872
  %v2935 = vadd.f32 %v2787, %v2892
  %v2936 = vadd.f32 %v2788, %v2912
  %v2937 = vadd.f32 %v2789, %v2932
  %v2938 = vxor.u32 %v2934, 2147483648
  %v2939 = vmul.f32 %v2938, 1.442695
  %v2940 = vpow.pop %v2939
  %v2941 = vadd.f32 %v2940, 1.0
  %v2942 = vrcp.pop %v2941
  %v2943 = vmul.f32 %v2941, %v2942
  %v2944 = vsub.f32 1.0, %v2943
  %v2945 = vmul.f32 %v2942, %v2944
  %v2946 = vadd.f32 %v2942, %v2945
  %vm2947 = vweird.f32 %v2941
  %vm2948 = vweird.f32 %v2942
  %vm2949 = vmor %vm2947, %vm2948
  %v2950 = vsel %vm2949, %v2942, %v2946
  %v2951 = vand.u32 2147483647, %v2941
  %vm2952 = vcmp.eq.f32.partialorder %v2951, 8.507059e+37
  %v2953 = vand.u32 %v2941, 2147483648
  %v2954 = vor.u32 1.1754944e-38, %v2953
  %v2955 = vsel %vm2952, %v2954, %v2950
  %v2956 = vmul.f32 1.0, %v2955
  %v2957 = vxor.u32 %v2935, 2147483648
  %v2958 = vmul.f32 %v2957, 1.442695
  %v2959 = vpow.pop %v2958
  %v2960 = vadd.f32 %v2959, 1.0
  %v2961 = vrcp.pop %v2960
  %v2962 = vmul.f32 %v2960, %v2961
  %v2963 = vsub.f32 1.0, %v2962
  %v2964 = vmul.f32 %v2961, %v2963
  %v2965 = vadd.f32 %v2961, %v2964
  %vm2966 = vweird.f32 %v2960
  %vm2967 = vweird.f32 %v2961
  %vm2968 = vmor %vm2966, %vm2967
  %v2969 = vsel %vm2968, %v2961, %v2965
  %v2970 = vand.u32 2147483647, %v2960
  %vm2971 = vcmp.eq.f32.partialorder %v2970, 8.507059e+37
  %v2972 = vand.u32 %v2960, 2147483648
  %v2973 = vor.u32 1.1754944e-38, %v2972
  %v2974 = vsel %vm2971, %v2973, %v2969
  %v2975 = vmul.f32 1.0, %v2974
  %v2976 = vtanh.pop %v2936
  %v2977 = vxor.u32 %v2937, 2147483648
  %v2978 = vmul.f32 %v2977, 1.442695
  %v2979 = vpow.pop %v2978
  %v2980 = vadd.f32 %v2979, 1.0
  %v2981 = vrcp.pop %v2980
  %v2982 = vmul.f32 %v2980, %v2981
  %v2983 = vsub.f32 1.0, %v2982
  %v2984 = vmul.f32 %v2981, %v2983
  %v2985 = vadd.f32 %v2981, %v2984
  %vm2986 = vweird.f32 %v2980
  %vm2987 = vweird.f32 %v2981
  %vm2988 = vmor %vm2986, %vm2987
  %v2989 = vsel %vm2988, %v2981, %v2985
  %v2990 = vand.u32 2147483647, %v2980
  %vm2991 = vcmp.eq.f32.partialorder %v2990, 8.507059e+37
  %v2992 = vand.u32 %v2980, 2147483648
  %v2993 = vor.u32 1.1754944e-38, %v2992
  %v2994 = vsel %vm2991, %v2993, %v2989
  %v2995 = vmul.f32 1.0, %v2994
  %v2996 = vmul.f32 %v2975, %v2779
  %v2997 = vmul.f32 %v2956, %v2976
  %v2998 = vadd.f32 %v2996, %v2997
  %v2999 = vtanh.pop %v2998
  %v3000 = vmul.f32 %v2995, %v2999
  %s3001 = scalar_lea.vmem [#allocation5], 16
  %3002 = vst [vmem:[%s3001] sm:$0xff] %v3000
  %s3003 = smul.addr %s969, 8
  %s3004 = scalar_lea.vmem [#allocation4], %s3003
  %v3005 = vld [vmem:[%s3004] sm:$0xff]
  %v3006 = vld [vmem:[%s3004 + $0x8] sm:$0xff]
  %v3007 = vld [vmem:[%s3004 + $0x10] sm:$0xff]
  %v3008 = vld [vmem:[%s3004 + $0x18] sm:$0xff]
  %v3009 = vld [vmem:[%s5] sm:$0xff]
  %v3010 = vld [vmem:[%s5 + $0x8] sm:$0xff]
  %v3011 = vld [vmem:[%s5 + $0x10] sm:$0xff]
  %v3012 = vld [vmem:[%s5 + $0x18] sm:$0xff]
  %v3013 = vld [vmem:[%s5 + $0x20] sm:$0xff]
  %v3014 = vld [vmem:[%s5 + $0x28] sm:$0xff]
  %v3015 = vld [vmem:[%s5 + $0x30] sm:$0xff]
  %v3016 = vld [vmem:[%s5 + $0x38] sm:$0xff]
  %v3017 = vld [vmem:[%s5 + $0x40] sm:$0xff]
  %v3018 = vld [vmem:[%s5 + $0x48] sm:$0xff]
  %v3019 = vld [vmem:[%s5 + $0x50] sm:$0xff]
  %v3020 = vld [vmem:[%s5 + $0x58] sm:$0xff]
  %v3021 = vld [vmem:[%s5 + $0x60] sm:$0xff]
  %v3022 = vld [vmem:[%s5 + $0x68] sm:$0xff]
  %v3023 = vld [vmem:[%s5 + $0x70] sm:$0xff]
  %v3024 = vld [vmem:[%s5 + $0x78] sm:$0xff]
  %v3025 = vld [vmem:[%s5 + $0x80] sm:$0xff]
  %v3026 = vld [vmem:[%s5 + $0x88] sm:$0xff]
  %v3027 = vld [vmem:[%s5 + $0x90] sm:$0xff]
  %v3028 = vld [vmem:[%s5 + $0x98] sm:$0xff]
  %v3029 = vld [vmem:[%s5 + $0xa0] sm:$0xff]
  %v3030 = vld [vmem:[%s5 + $0xa8] sm:$0xff]
  %v3031 = vld [vmem:[%s5 + $0xb0] sm:$0xff]
  %v3032 = vld [vmem:[%s5 + $0xb8] sm:$0xff]
  %v3033 = vld [vmem:[%s5 + $0xc0] sm:$0xff]
  %v3034 = vld [vmem:[%s5 + $0xc8] sm:$0xff]
  %v3035 = vld [vmem:[%s5 + $0xd0] sm:$0xff]
  %v3036 = vld [vmem:[%s5 + $0xd8] sm:$0xff]
  %v3037 = vld [vmem:[%s5 + $0xe0] sm:$0xff]
  %v3038 = vld [vmem:[%s5 + $0xe8] sm:$0xff]
  %v3039 = vld [vmem:[%s5 + $0xf0] sm:$0xff]
  %v3040 = vld [vmem:[%s5 + $0xf8] sm:$0xff]
  %v3041 = vld [vmem:[%s5 + $0x100] sm:$0xff]
  %v3042 = vld [vmem:[%s5 + $0x108] sm:$0xff]
  %v3043 = vld [vmem:[%s5 + $0x110] sm:$0xff]
  %v3044 = vld [vmem:[%s5 + $0x118] sm:$0xff]
  %v3045 = vld [vmem:[%s5 + $0x120] sm:$0xff]
  %v3046 = vld [vmem:[%s5 + $0x128] sm:$0xff]
  %v3047 = vld [vmem:[%s5 + $0x130] sm:$0xff]
  %v3048 = vld [vmem:[%s5 + $0x138] sm:$0xff]
  %v3049 = vld [vmem:[%s5 + $0x140] sm:$0xff]
  %v3050 = vld [vmem:[%s5 + $0x148] sm:$0xff]
  %v3051 = vld [vmem:[%s5 + $0x150] sm:$0xff]
  %v3052 = vld [vmem:[%s5 + $0x158] sm:$0xff]
  %v3053 = vld [vmem:[%s5 + $0x160] sm:$0xff]
  %v3054 = vld [vmem:[%s5 + $0x168] sm:$0xff]
  %v3055 = vld [vmem:[%s5 + $0x170] sm:$0xff]
  %v3056 = vld [vmem:[%s5 + $0x178] sm:$0xff]
  %v3057 = vld [vmem:[%s5 + $0x180] sm:$0xff]
  %v3058 = vld [vmem:[%s5 + $0x188] sm:$0xff]
  %v3059 = vld [vmem:[%s5 + $0x190] sm:$0xff]
  %v3060 = vld [vmem:[%s5 + $0x198] sm:$0xff]
  %v3061 = vld [vmem:[%s5 + $0x1a0] sm:$0xff]
  %v3062 = vld [vmem:[%s5 + $0x1a8] sm:$0xff]
  %v3063 = vld [vmem:[%s5 + $0x1b0] sm:$0xff]
  %v3064 = vld [vmem:[%s5 + $0x1b8] sm:$0xff]
  %v3065 = vld [vmem:[%s5 + $0x1c0] sm:$0xff]
  %v3066 = vld [vmem:[%s5 + $0x1c8] sm:$0xff]
  %v3067 = vld [vmem:[%s5 + $0x1d0] sm:$0xff]
  %v3068 = vld [vmem:[%s5 + $0x1d8] sm:$0xff]
  %v3069 = vld [vmem:[%s5 + $0x1e0] sm:$0xff]
  %v3070 = vld [vmem:[%s5 + $0x1e8] sm:$0xff]
  %v3071 = vld [vmem:[%s5 + $0x1f0] sm:$0xff]
  %v3072 = vld [vmem:[%s5 + $0x1f8] sm:$0xff]
  %3073 = vmatpush.msra.mxu0 %v3069
  %3074 = vmatpush.msra.mxu0 %v3065
  %3075 = vmatpush.msra.mxu0 %v3061
  %3076 = vmatpush.msra.mxu0 %v3057
  %3077 = vmatpush.msra.mxu0 %v3053
  %3078 = vmatpush.msra.mxu0 %v3049
  %3079 = vmatpush.msra.mxu0 %v3045
  %3080 = vmatpush.msra.mxu0 %v3041
  %3081 = vmatpush.msra.mxu0 %v3037
  %3082 = vmatpush.msra.mxu0 %v3033
  %3083 = vmatpush.msra.mxu0 %v3029
  %3084 = vmatpush.msra.mxu0 %v3025
  %3085 = vmatpush.msra.mxu0 %v3021
  %3086 = vmatpush.msra.mxu0 %v3017
  %3087 = vmatpush.msra.mxu0 %v3013
  %3088 = vmatpush.msra.mxu0 %v3009
  %3089 = vmatmul.f32.gmra.mxu0 %v3000
  %v3090 = vpop.f32.mrf.mxu0
  %v3091 = vadd.f32 0.0, %v3090
  %3092 = vdwg.mxu0
  %3093 = vmatpush.msra.mxu0 %v3070
  %3094 = vmatpush.msra.mxu0 %v3066
  %3095 = vmatpush.msra.mxu0 %v3062
  %3096 = vmatpush.msra.mxu0 %v3058
  %3097 = vmatpush.msra.mxu0 %v3054
  %3098 = vmatpush.msra.mxu0 %v3050
  %3099 = vmatpush.msra.mxu0 %v3046
  %3100 = vmatpush.msra.mxu0 %v3042
  %3101 = vmatpush.msra.mxu0 %v3038
  %3102 = vmatpush.msra.mxu0 %v3034
  %3103 = vmatpush.msra.mxu0 %v3030
  %3104 = vmatpush.msra.mxu0 %v3026
  %3105 = vmatpush.msra.mxu0 %v3022
  %3106 = vmatpush.msra.mxu0 %v3018
  %3107 = vmatpush.msra.mxu0 %v3014
  %3108 = vmatpush.msra.mxu0 %v3010
  %3109 = vmatmul.f32.gmra.mxu0 %v3000
  %v3110 = vpop.f32.mrf.mxu0
  %v3111 = vadd.f32 0.0, %v3110
  %3112 = vdwg.mxu0
  %3113 = vmatpush.msra.mxu0 %v3071
  %3114 = vmatpush.msra.mxu0 %v3067
  %3115 = vmatpush.msra.mxu0 %v3063
  %3116 = vmatpush.msra.mxu0 %v3059
  %3117 = vmatpush.msra.mxu0 %v3055
  %3118 = vmatpush.msra.mxu0 %v3051
  %3119 = vmatpush.msra.mxu0 %v3047
  %3120 = vmatpush.msra.mxu0 %v3043
  %3121 = vmatpush.msra.mxu0 %v3039
  %3122 = vmatpush.msra.mxu0 %v3035
  %3123 = vmatpush.msra.mxu0 %v3031
  %3124 = vmatpush.msra.mxu0 %v3027
  %3125 = vmatpush.msra.mxu0 %v3023
  %3126 = vmatpush.msra.mxu0 %v3019
  %3127 = vmatpush.msra.mxu0 %v3015
  %3128 = vmatpush.msra.mxu0 %v3011
  %3129 = vmatmul.f32.gmra.mxu0 %v3000
  %v3130 = vpop.f32.mrf.mxu0
  %v3131 = vadd.f32 0.0, %v3130
  %3132 = vdwg.mxu0
  %3133 = vmatpush.msra.mxu0 %v3072
  %3134 = vmatpush.msra.mxu0 %v3068
  %3135 = vmatpush.msra.mxu0 %v3064
  %3136 = vmatpush.msra.mxu0 %v3060
  %3137 = vmatpush.msra.mxu0 %v3056
  %3138 = vmatpush.msra.mxu0 %v3052
  %3139 = vmatpush.msra.mxu0 %v3048
  %3140 = vmatpush.msra.mxu0 %v3044
  %3141 = vmatpush.msra.mxu0 %v3040
  %3142 = vmatpush.msra.mxu0 %v3036
  %3143 = vmatpush.msra.mxu0 %v3032
  %3144 = vmatpush.msra.mxu0 %v3028
  %3145 = vmatpush.msra.mxu0 %v3024
  %3146 = vmatpush.msra.mxu0 %v3020
  %3147 = vmatpush.msra.mxu0 %v3016
  %3148 = vmatpush.msra.mxu0 %v3012
  %3149 = vmatmul.f32.gmra.mxu0 %v3000
  %v3150 = vpop.f32.mrf.mxu0
  %v3151 = vadd.f32 0.0, %v3150
  %3152 = vdwg.mxu0
  %v3153 = vadd.f32 %v3005, %v3091
  %v3154 = vadd.f32 %v3006, %v3111
  %v3155 = vadd.f32 %v3007, %v3131
  %v3156 = vadd.f32 %v3008, %v3151
  %v3157 = vxor.u32 %v3153, 2147483648
  %v3158 = vmul.f32 %v3157, 1.442695
  %v3159 = vpow.pop %v3158
  %v3160 = vadd.f32 %v3159, 1.0
  %v3161 = vrcp.pop %v3160
  %v3162 = vmul.f32 %v3160, %v3161
  %v3163 = vsub.f32 1.0, %v3162
  %v3164 = vmul.f32 %v3161, %v3163
  %v3165 = vadd.f32 %v3161, %v3164
  %vm3166 = vweird.f32 %v3160
  %vm3167 = vweird.f32 %v3161
  %vm3168 = vmor %vm3166, %vm3167
  %v3169 = vsel %vm3168, %v3161, %v3165
  %v3170 = vand.u32 2147483647, %v3160
  %vm3171 = vcmp.eq.f32.partialorder %v3170, 8.507059e+37
  %v3172 = vand.u32 %v3160, 2147483648
  %v3173 = vor.u32 1.1754944e-38, %v3172
  %v3174 = vsel %vm3171, %v3173, %v3169
  %v3175 = vmul.f32 1.0, %v3174
  %v3176 = vxor.u32 %v3154, 2147483648
  %v3177 = vmul.f32 %v3176, 1.442695
  %v3178 = vpow.pop %v3177
  %v3179 = vadd.f32 %v3178, 1.0
  %v3180 = vrcp.pop %v3179
  %v3181 = vmul.f32 %v3179, %v3180
  %v3182 = vsub.f32 1.0, %v3181
  %v3183 = vmul.f32 %v3180, %v3182
  %v3184 = vadd.f32 %v3180, %v3183
  %vm3185 = vweird.f32 %v3179
  %vm3186 = vweird.f32 %v3180
  %vm3187 = vmor %vm3185, %vm3186
  %v3188 = vsel %vm3187, %v3180, %v3184
  %v3189 = vand.u32 2147483647, %v3179
  %vm3190 = vcmp.eq.f32.partialorder %v3189, 8.507059e+37
  %v3191 = vand.u32 %v3179, 2147483648
  %v3192 = vor.u32 1.1754944e-38, %v3191
  %v3193 = vsel %vm3190, %v3192, %v3188
  %v3194 = vmul.f32 1.0, %v3193
  %v3195 = vtanh.pop %v3155
  %v3196 = vxor.u32 %v3156, 2147483648
  %v3197 = vmul.f32 %v3196, 1.442695
  %v3198 = vpow.pop %v3197
  %v3199 = vadd.f32 %v3198, 1.0
  %v3200 = vrcp.pop %v3199
  %v3201 = vmul.f32 %v3199, %v3200
  %v3202 = vsub.f32 1.0, %v3201
  %v3203 = vmul.f32 %v3200, %v3202
  %v3204 = vadd.f32 %v3200, %v3203
  %vm3205 = vweird.f32 %v3199
  %vm3206 = vweird.f32 %v3200
  %vm3207 = vmor %vm3205, %vm3206
  %v3208 = vsel %vm3207, %v3200, %v3204
  %v3209 = vand.u32 2147483647, %v3199
  %vm3210 = vcmp.eq.f32.partialorder %v3209, 8.507059e+37
  %v3211 = vand.u32 %v3199, 2147483648
  %v3212 = vor.u32 1.1754944e-38, %v3211
  %v3213 = vsel %vm3210, %v3212, %v3208
  %v3214 = vmul.f32 1.0, %v3213
  %v3215 = vmul.f32 %v3194, %v2998
  %v3216 = vmul.f32 %v3175, %v3195
  %v3217 = vadd.f32 %v3215, %v3216
  %v3218 = vtanh.pop %v3217
  %v3219 = vmul.f32 %v3214, %v3218
  %s3220 = scalar_lea.vmem [#allocation5], 24
  %3221 = vst [vmem:[%s3220] sm:$0xff] %v3219
  %s3222 = smul.addr %s1189, 8
  %s3223 = scalar_lea.vmem [#allocation4], %s3222
  %v3224 = vld [vmem:[%s3223] sm:$0xff]
  %v3225 = vld [vmem:[%s3223 + $0x8] sm:$0xff]
  %v3226 = vld [vmem:[%s3223 + $0x10] sm:$0xff]
  %v3227 = vld [vmem:[%s3223 + $0x18] sm:$0xff]
  %v3228 = vld [vmem:[%s5] sm:$0xff]
  %v3229 = vld [vmem:[%s5 + $0x8] sm:$0xff]
  %v3230 = vld [vmem:[%s5 + $0x10] sm:$0xff]
  %v3231 = vld [vmem:[%s5 + $0x18] sm:$0xff]
  %v3232 = vld [vmem:[%s5 + $0x20] sm:$0xff]
  %v3233 = vld [vmem:[%s5 + $0x28] sm:$0xff]
  %v3234 = vld [vmem:[%s5 + $0x30] sm:$0xff]
  %v3235 = vld [vmem:[%s5 + $0x38] sm:$0xff]
  %v3236 = vld [vmem:[%s5 + $0x40] sm:$0xff]
  %v3237 = vld [vmem:[%s5 + $0x48] sm:$0xff]
  %v3238 = vld [vmem:[%s5 + $0x50] sm:$0xff]
  %v3239 = vld [vmem:[%s5 + $0x58] sm:$0xff]
  %v3240 = vld [vmem:[%s5 + $0x60] sm:$0xff]
  %v3241 = vld [vmem:[%s5 + $0x68] sm:$0xff]
  %v3242 = vld [vmem:[%s5 + $0x70] sm:$0xff]
  %v3243 = vld [vmem:[%s5 + $0x78] sm:$0xff]
  %v3244 = vld [vmem:[%s5 + $0x80] sm:$0xff]
  %v3245 = vld [vmem:[%s5 + $0x88] sm:$0xff]
  %v3246 = vld [vmem:[%s5 + $0x90] sm:$0xff]
  %v3247 = vld [vmem:[%s5 + $0x98] sm:$0xff]
  %v3248 = vld [vmem:[%s5 + $0xa0] sm:$0xff]
  %v3249 = vld [vmem:[%s5 + $0xa8] sm:$0xff]
  %v3250 = vld [vmem:[%s5 + $0xb0] sm:$0xff]
  %v3251 = vld [vmem:[%s5 + $0xb8] sm:$0xff]
  %v3252 = vld [vmem:[%s5 + $0xc0] sm:$0xff]
  %v3253 = vld [vmem:[%s5 + $0xc8] sm:$0xff]
  %v3254 = vld [vmem:[%s5 + $0xd0] sm:$0xff]
  %v3255 = vld [vmem:[%s5 + $0xd8] sm:$0xff]
  %v3256 = vld [vmem:[%s5 + $0xe0] sm:$0xff]
  %v3257 = vld [vmem:[%s5 + $0xe8] sm:$0xff]
  %v3258 = vld [vmem:[%s5 + $0xf0] sm:$0xff]
  %v3259 = vld [vmem:[%s5 + $0xf8] sm:$0xff]
  %v3260 = vld [vmem:[%s5 + $0x100] sm:$0xff]
  %v3261 = vld [vmem:[%s5 + $0x108] sm:$0xff]
  %v3262 = vld [vmem:[%s5 + $0x110] sm:$0xff]
  %v3263 = vld [vmem:[%s5 + $0x118] sm:$0xff]
  %v3264 = vld [vmem:[%s5 + $0x120] sm:$0xff]
  %v3265 = vld [vmem:[%s5 + $0x128] sm:$0xff]
  %v3266 = vld [vmem:[%s5 + $0x130] sm:$0xff]
  %v3267 = vld [vmem:[%s5 + $0x138] sm:$0xff]
  %v3268 = vld [vmem:[%s5 + $0x140] sm:$0xff]
  %v3269 = vld [vmem:[%s5 + $0x148] sm:$0xff]
  %v3270 = vld [vmem:[%s5 + $0x150] sm:$0xff]
  %v3271 = vld [vmem:[%s5 + $0x158] sm:$0xff]
  %v3272 = vld [vmem:[%s5 + $0x160] sm:$0xff]
  %v3273 = vld [vmem:[%s5 + $0x168] sm:$0xff]
  %v3274 = vld [vmem:[%s5 + $0x170] sm:$0xff]
  %v3275 = vld [vmem:[%s5 + $0x178] sm:$0xff]
  %v3276 = vld [vmem:[%s5 + $0x180] sm:$0xff]
  %v3277 = vld [vmem:[%s5 + $0x188] sm:$0xff]
  %v3278 = vld [vmem:[%s5 + $0x190] sm:$0xff]
  %v3279 = vld [vmem:[%s5 + $0x198] sm:$0xff]
  %v3280 = vld [vmem:[%s5 + $0x1a0] sm:$0xff]
  %v3281 = vld [vmem:[%s5 + $0x1a8] sm:$0xff]
  %v3282 = vld [vmem:[%s5 + $0x1b0] sm:$0xff]
  %v3283 = vld [vmem:[%s5 + $0x1b8] sm:$0xff]
  %v3284 = vld [vmem:[%s5 + $0x1c0] sm:$0xff]
  %v3285 = vld [vmem:[%s5 + $0x1c8] sm:$0xff]
  %v3286 = vld [vmem:[%s5 + $0x1d0] sm:$0xff]
  %v3287 = vld [vmem:[%s5 + $0x1d8] sm:$0xff]
  %v3288 = vld [vmem:[%s5 + $0x1e0] sm:$0xff]
  %v3289 = vld [vmem:[%s5 + $0x1e8] sm:$0xff]
  %v3290 = vld [vmem:[%s5 + $0x1f0] sm:$0xff]
  %v3291 = vld [vmem:[%s5 + $0x1f8] sm:$0xff]
  %3292 = vmatpush.msra.mxu0 %v3288
  %3293 = vmatpush.msra.mxu0 %v3284
  %3294 = vmatpush.msra.mxu0 %v3280
  %3295 = vmatpush.msra.mxu0 %v3276
  %3296 = vmatpush.msra.mxu0 %v3272
  %3297 = vmatpush.msra.mxu0 %v3268
  %3298 = vmatpush.msra.mxu0 %v3264
  %3299 = vmatpush.msra.mxu0 %v3260
  %3300 = vmatpush.msra.mxu0 %v3256
  %3301 = vmatpush.msra.mxu0 %v3252
  %3302 = vmatpush.msra.mxu0 %v3248
  %3303 = vmatpush.msra.mxu0 %v3244
  %3304 = vmatpush.msra.mxu0 %v3240
  %3305 = vmatpush.msra.mxu0 %v3236
  %3306 = vmatpush.msra.mxu0 %v3232
  %3307 = vmatpush.msra.mxu0 %v3228
  %3308 = vmatmul.f32.gmra.mxu0 %v3219
  %v3309 = vpop.f32.mrf.mxu0
  %v3310 = vadd.f32 0.0, %v3309
  %3311 = vdwg.mxu0
  %3312 = vmatpush.msra.mxu0 %v3289
  %3313 = vmatpush.msra.mxu0 %v3285
  %3314 = vmatpush.msra.mxu0 %v3281
  %3315 = vmatpush.msra.mxu0 %v3277
  %3316 = vmatpush.msra.mxu0 %v3273
  %3317 = vmatpush.msra.mxu0 %v3269
  %3318 = vmatpush.msra.mxu0 %v3265
  %3319 = vmatpush.msra.mxu0 %v3261
  %3320 = vmatpush.msra.mxu0 %v3257
  %3321 = vmatpush.msra.mxu0 %v3253
  %3322 = vmatpush.msra.mxu0 %v3249
  %3323 = vmatpush.msra.mxu0 %v3245
  %3324 = vmatpush.msra.mxu0 %v3241
  %3325 = vmatpush.msra.mxu0 %v3237
  %3326 = vmatpush.msra.mxu0 %v3233
  %3327 = vmatpush.msra.mxu0 %v3229
  %3328 = vmatmul.f32.gmra.mxu0 %v3219
  %v3329 = vpop.f32.mrf.mxu0
  %v3330 = vadd.f32 0.0, %v3329
  %3331 = vdwg.mxu0
  %3332 = vmatpush.msra.mxu0 %v3290
  %3333 = vmatpush.msra.mxu0 %v3286
  %3334 = vmatpush.msra.mxu0 %v3282
  %3335 = vmatpush.msra.mxu0 %v3278
  %3336 = vmatpush.msra.mxu0 %v3274
  %3337 = vmatpush.msra.mxu0 %v3270
  %3338 = vmatpush.msra.mxu0 %v3266
  %3339 = vmatpush.msra.mxu0 %v3262
  %3340 = vmatpush.msra.mxu0 %v3258
  %3341 = vmatpush.msra.mxu0 %v3254
  %3342 = vmatpush.msra.mxu0 %v3250
  %3343 = vmatpush.msra.mxu0 %v3246
  %3344 = vmatpush.msra.mxu0 %v3242
  %3345 = vmatpush.msra.mxu0 %v3238
  %3346 = vmatpush.msra.mxu0 %v3234
  %3347 = vmatpush.msra.mxu0 %v3230
  %3348 = vmatmul.f32.gmra.mxu0 %v3219
  %v3349 = vpop.f32.mrf.mxu0
  %v3350 = vadd.f32 0.0, %v3349
  %3351 = vdwg.mxu0
  %3352 = vmatpush.msra.mxu0 %v3291
  %3353 = vmatpush.msra.mxu0 %v3287
  %3354 = vmatpush.msra.mxu0 %v3283
  %3355 = vmatpush.msra.mxu0 %v3279
  %3356 = vmatpush.msra.mxu0 %v3275
  %3357 = vmatpush.msra.mxu0 %v3271
  %3358 = vmatpush.msra.mxu0 %v3267
  %3359 = vmatpush.msra.mxu0 %v3263
  %3360 = vmatpush.msra.mxu0 %v3259
  %3361 = vmatpush.msra.mxu0 %v3255
  %3362 = vmatpush.msra.mxu0 %v3251
  %3363 = vmatpush.msra.mxu0 %v3247
  %3364 = vmatpush.msra.mxu0 %v3243
  %3365 = vmatpush.msra.mxu0 %v3239
  %3366 = vmatpush.msra.mxu0 %v3235
  %3367 = vmatpush.msra.mxu0 %v3231
  %3368 = vmatmul.f32.gmra.mxu0 %v3219
  %v3369 = vpop.f32.mrf.mxu0
  %v3370 = vadd.f32 0.0, %v3369
  %3371 = vdwg.mxu0
  %v3372 = vadd.f32 %v3224, %v3310
  %v3373 = vadd.f32 %v3225, %v3330
  %v3374 = vadd.f32 %v3226, %v3350
  %v3375 = vadd.f32 %v3227, %v3370
  %v3376 = vxor.u32 %v3372, 2147483648
  %v3377 = vmul.f32 %v3376, 1.442695
  %v3378 = vpow.pop %v3377
  %v3379 = vadd.f32 %v3378, 1.0
  %v3380 = vrcp.pop %v3379
  %v3381 = vmul.f32 %v3379, %v3380
  %v3382 = vsub.f32 1.0, %v3381
  %v3383 = vmul.f32 %v3380, %v3382
  %v3384 = vadd.f32 %v3380, %v3383
  %vm3385 = vweird.f32 %v3379
  %vm3386 = vweird.f32 %v3380
  %vm3387 = vmor %vm3385, %vm3386
  %v3388 = vsel %vm3387, %v3380, %v3384
  %v3389 = vand.u32 2147483647, %v3379
  %vm3390 = vcmp.eq.f32.partialorder %v3389, 8.507059e+37
  %v3391 = vand.u32 %v3379, 2147483648
  %v3392 = vor.u32 1.1754944e-38, %v3391
  %v3393 = vsel %vm3390, %v3392, %v3388
  %v3394 = vmul.f32 1.0, %v3393
  %v3395 = vxor.u32 %v3373, 2147483648
  %v3396 = vmul.f32 %v3395, 1.442695
  %v3397 = vpow.pop %v3396
  %v3398 = vadd.f32 %v3397, 1.0
  %v3399 = vrcp.pop %v3398
  %v3400 = vmul.f32 %v3398, %v3399
  %v3401 = vsub.f32 1.0, %v3400
  %v3402 = vmul.f32 %v3399, %v3401
  %v3403 = vadd.f32 %v3399, %v3402
  %vm3404 = vweird.f32 %v3398
  %vm3405 = vweird.f32 %v3399
  %vm3406 = vmor %vm3404, %vm3405
  %v3407 = vsel %vm3406, %v3399, %v3403
  %v3408 = vand.u32 2147483647, %v3398
  %vm3409 = vcmp.eq.f32.partialorder %v3408, 8.507059e+37
  %v3410 = vand.u32 %v3398, 2147483648
  %v3411 = vor.u32 1.1754944e-38, %v3410
  %v3412 = vsel %vm3409, %v3411, %v3407
  %v3413 = vmul.f32 1.0, %v3412
  %v3414 = vtanh.pop %v3374
  %v3415 = vxor.u32 %v3375, 2147483648
  %v3416 = vmul.f32 %v3415, 1.442695
  %v3417 = vpow.pop %v3416
  %v3418 = vadd.f32 %v3417, 1.0
  %v3419 = vrcp.pop %v3418
  %v3420 = vmul.f32 %v3418, %v3419
  %v3421 = vsub.f32 1.0, %v3420
  %v3422 = vmul.f32 %v3419, %v3421
  %v3423 = vadd.f32 %v3419, %v3422
  %vm3424 = vweird.f32 %v3418
  %vm3425 = vweird.f32 %v3419
  %vm3426 = vmor %vm3424, %vm3425
  %v3427 = vsel %vm3426, %v3419, %v3423
  %v3428 = vand.u32 2147483647, %v3418
  %vm3429 = vcmp.eq.f32.partialorder %v3428, 8.507059e+37
  %v3430 = vand.u32 %v3418, 2147483648
  %v3431 = vor.u32 1.1754944e-38, %v3430
  %v3432 = vsel %vm3429, %v3431, %v3427
  %v3433 = vmul.f32 1.0, %v3432
  %v3434 = vmul.f32 %v3413, %v3217
  %v3435 = vmul.f32 %v3394, %v3414
  %v3436 = vadd.f32 %v3434, %v3435
  %v3437 = vtanh.pop %v3436
  %v3438 = vmul.f32 %v3433, %v3437
  %s3439 = scalar_lea.vmem [#allocation5], 32
  %3440 = vst [vmem:[%s3439] sm:$0xff] %v3438
  %s3441 = smul.addr %s1409, 8
  %s3442 = scalar_lea.vmem [#allocation4], %s3441
  %v3443 = vld [vmem:[%s3442] sm:$0xff]
  %v3444 = vld [vmem:[%s3442 + $0x8] sm:$0xff]
  %v3445 = vld [vmem:[%s3442 + $0x10] sm:$0xff]
  %v3446 = vld [vmem:[%s3442 + $0x18] sm:$0xff]
  %v3447 = vld [vmem:[%s5] sm:$0xff]
  %v3448 = vld [vmem:[%s5 + $0x8] sm:$0xff]
  %v3449 = vld [vmem:[%s5 + $0x10] sm:$0xff]
  %v3450 = vld [vmem:[%s5 + $0x18] sm:$0xff]
  %v3451 = vld [vmem:[%s5 + $0x20] sm:$0xff]
  %v3452 = vld [vmem:[%s5 + $0x28] sm:$0xff]
  %v3453 = vld [vmem:[%s5 + $0x30] sm:$0xff]
  %v3454 = vld [vmem:[%s5 + $0x38] sm:$0xff]
  %v3455 = vld [vmem:[%s5 + $0x40] sm:$0xff]
  %v3456 = vld [vmem:[%s5 + $0x48] sm:$0xff]
  %v3457 = vld [vmem:[%s5 + $0x50] sm:$0xff]
  %v3458 = vld [vmem:[%s5 + $0x58] sm:$0xff]
  %v3459 = vld [vmem:[%s5 + $0x60] sm:$0xff]
  %v3460 = vld [vmem:[%s5 + $0x68] sm:$0xff]
  %v3461 = vld [vmem:[%s5 + $0x70] sm:$0xff]
  %v3462 = vld [vmem:[%s5 + $0x78] sm:$0xff]
  %v3463 = vld [vmem:[%s5 + $0x80] sm:$0xff]
  %v3464 = vld [vmem:[%s5 + $0x88] sm:$0xff]
  %v3465 = vld [vmem:[%s5 + $0x90] sm:$0xff]
  %v3466 = vld [vmem:[%s5 + $0x98] sm:$0xff]
  %v3467 = vld [vmem:[%s5 + $0xa0] sm:$0xff]
  %v3468 = vld [vmem:[%s5 + $0xa8] sm:$0xff]
  %v3469 = vld [vmem:[%s5 + $0xb0] sm:$0xff]
  %v3470 = vld [vmem:[%s5 + $0xb8] sm:$0xff]
  %v3471 = vld [vmem:[%s5 + $0xc0] sm:$0xff]
  %v3472 = vld [vmem:[%s5 + $0xc8] sm:$0xff]
  %v3473 = vld [vmem:[%s5 + $0xd0] sm:$0xff]
  %v3474 = vld [vmem:[%s5 + $0xd8] sm:$0xff]
  %v3475 = vld [vmem:[%s5 + $0xe0] sm:$0xff]
  %v3476 = vld [vmem:[%s5 + $0xe8] sm:$0xff]
  %v3477 = vld [vmem:[%s5 + $0xf0] sm:$0xff]
  %v3478 = vld [vmem:[%s5 + $0xf8] sm:$0xff]
  %v3479 = vld [vmem:[%s5 + $0x100] sm:$0xff]
  %v3480 = vld [vmem:[%s5 + $0x108] sm:$0xff]
  %v3481 = vld [vmem:[%s5 + $0x110] sm:$0xff]
  %v3482 = vld [vmem:[%s5 + $0x118] sm:$0xff]
  %v3483 = vld [vmem:[%s5 + $0x120] sm:$0xff]
  %v3484 = vld [vmem:[%s5 + $0x128] sm:$0xff]
  %v3485 = vld [vmem:[%s5 + $0x130] sm:$0xff]
  %v3486 = vld [vmem:[%s5 + $0x138] sm:$0xff]
  %v3487 = vld [vmem:[%s5 + $0x140] sm:$0xff]
  %v3488 = vld [vmem:[%s5 + $0x148] sm:$0xff]
  %v3489 = vld [vmem:[%s5 + $0x150] sm:$0xff]
  %v3490 = vld [vmem:[%s5 + $0x158] sm:$0xff]
  %v3491 = vld [vmem:[%s5 + $0x160] sm:$0xff]
  %v3492 = vld [vmem:[%s5 + $0x168] sm:$0xff]
  %v3493 = vld [vmem:[%s5 + $0x170] sm:$0xff]
  %v3494 = vld [vmem:[%s5 + $0x178] sm:$0xff]
  %v3495 = vld [vmem:[%s5 + $0x180] sm:$0xff]
  %v3496 = vld [vmem:[%s5 + $0x188] sm:$0xff]
  %v3497 = vld [vmem:[%s5 + $0x190] sm:$0xff]
  %v3498 = vld [vmem:[%s5 + $0x198] sm:$0xff]
  %v3499 = vld [vmem:[%s5 + $0x1a0] sm:$0xff]
  %v3500 = vld [vmem:[%s5 + $0x1a8] sm:$0xff]
  %v3501 = vld [vmem:[%s5 + $0x1b0] sm:$0xff]
  %v3502 = vld [vmem:[%s5 + $0x1b8] sm:$0xff]
  %v3503 = vld [vmem:[%s5 + $0x1c0] sm:$0xff]
  %v3504 = vld [vmem:[%s5 + $0x1c8] sm:$0xff]
  %v3505 = vld [vmem:[%s5 + $0x1d0] sm:$0xff]
  %v3506 = vld [vmem:[%s5 + $0x1d8] sm:$0xff]
  %v3507 = vld [vmem:[%s5 + $0x1e0] sm:$0xff]
  %v3508 = vld [vmem:[%s5 + $0x1e8] sm:$0xff]
  %v3509 = vld [vmem:[%s5 + $0x1f0] sm:$0xff]
  %v3510 = vld [vmem:[%s5 + $0x1f8] sm:$0xff]
  %3511 = vmatpush.msra.mxu0 %v3507
  %3512 = vmatpush.msra.mxu0 %v3503
  %3513 = vmatpush.msra.mxu0 %v3499
  %3514 = vmatpush.msra.mxu0 %v3495
  %3515 = vmatpush.msra.mxu0 %v3491
  %3516 = vmatpush.msra.mxu0 %v3487
  %3517 = vmatpush.msra.mxu0 %v3483
  %3518 = vmatpush.msra.mxu0 %v3479
  %3519 = vmatpush.msra.mxu0 %v3475
  %3520 = vmatpush.msra.mxu0 %v3471
  %3521 = vmatpush.msra.mxu0 %v3467
  %3522 = vmatpush.msra.mxu0 %v3463
  %3523 = vmatpush.msra.mxu0 %v3459
  %3524 = vmatpush.msra.mxu0 %v3455
  %3525 = vmatpush.msra.mxu0 %v3451
  %3526 = vmatpush.msra.mxu0 %v3447
  %3527 = vmatmul.f32.gmra.mxu0 %v3438
  %v3528 = vpop.f32.mrf.mxu0
  %v3529 = vadd.f32 0.0, %v3528
  %3530 = vdwg.mxu0
  %3531 = vmatpush.msra.mxu0 %v3508
  %3532 = vmatpush.msra.mxu0 %v3504
  %3533 = vmatpush.msra.mxu0 %v3500
  %3534 = vmatpush.msra.mxu0 %v3496
  %3535 = vmatpush.msra.mxu0 %v3492
  %3536 = vmatpush.msra.mxu0 %v3488
  %3537 = vmatpush.msra.mxu0 %v3484
  %3538 = vmatpush.msra.mxu0 %v3480
  %3539 = vmatpush.msra.mxu0 %v3476
  %3540 = vmatpush.msra.mxu0 %v3472
  %3541 = vmatpush.msra.mxu0 %v3468
  %3542 = vmatpush.msra.mxu0 %v3464
  %3543 = vmatpush.msra.mxu0 %v3460
  %3544 = vmatpush.msra.mxu0 %v3456
  %3545 = vmatpush.msra.mxu0 %v3452
  %3546 = vmatpush.msra.mxu0 %v3448
  %3547 = vmatmul.f32.gmra.mxu0 %v3438
  %v3548 = vpop.f32.mrf.mxu0
  %v3549 = vadd.f32 0.0, %v3548
  %3550 = vdwg.mxu0
  %3551 = vmatpush.msra.mxu0 %v3509
  %3552 = vmatpush.msra.mxu0 %v3505
  %3553 = vmatpush.msra.mxu0 %v3501
  %3554 = vmatpush.msra.mxu0 %v3497
  %3555 = vmatpush.msra.mxu0 %v3493
  %3556 = vmatpush.msra.mxu0 %v3489
  %3557 = vmatpush.msra.mxu0 %v3485
  %3558 = vmatpush.msra.mxu0 %v3481
  %3559 = vmatpush.msra.mxu0 %v3477
  %3560 = vmatpush.msra.mxu0 %v3473
  %3561 = vmatpush.msra.mxu0 %v3469
  %3562 = vmatpush.msra.mxu0 %v3465
  %3563 = vmatpush.msra.mxu0 %v3461
  %3564 = vmatpush.msra.mxu0 %v3457
  %3565 = vmatpush.msra.mxu0 %v3453
  %3566 = vmatpush.msra.mxu0 %v3449
  %3567 = vmatmul.f32.gmra.mxu0 %v3438
  %v3568 = vpop.f32.mrf.mxu0
  %v3569 = vadd.f32 0.0, %v3568
  %3570 = vdwg.mxu0
  %3571 = vmatpush.msra.mxu0 %v3510
  %3572 = vmatpush.msra.mxu0 %v3506
  %3573 = vmatpush.msra.mxu0 %v3502
  %3574 = vmatpush.msra.mxu0 %v3498
  %3575 = vmatpush.msra.mxu0 %v3494
  %3576 = vmatpush.msra.mxu0 %v3490
  %3577 = vmatpush.msra.mxu0 %v3486
  %3578 = vmatpush.msra.mxu0 %v3482
  %3579 = vmatpush.msra.mxu0 %v3478
  %3580 = vmatpush.msra.mxu0 %v3474
  %3581 = vmatpush.msra.mxu0 %v3470
  %3582 = vmatpush.msra.mxu0 %v3466
  %3583 = vmatpush.msra.mxu0 %v3462
  %3584 = vmatpush.msra.mxu0 %v3458
  %3585 = vmatpush.msra.mxu0 %v3454
  %3586 = vmatpush.msra.mxu0 %v3450
  %3587 = vmatmul.f32.gmra.mxu0 %v3438
  %v3588 = vpop.f32.mrf.mxu0
  %v3589 = vadd.f32 0.0, %v3588
  %3590 = vdwg.mxu0
  %v3591 = vadd.f32 %v3443, %v3529
  %v3592 = vadd.f32 %v3444, %v3549
  %v3593 = vadd.f32 %v3445, %v3569
  %v3594 = vadd.f32 %v3446, %v3589
  %v3595 = vxor.u32 %v3591, 2147483648
  %v3596 = vmul.f32 %v3595, 1.442695
  %v3597 = vpow.pop %v3596
  %v3598 = vadd.f32 %v3597, 1.0
  %v3599 = vrcp.pop %v3598
  %v3600 = vmul.f32 %v3598, %v3599
  %v3601 = vsub.f32 1.0, %v3600
  %v3602 = vmul.f32 %v3599, %v3601
  %v3603 = vadd.f32 %v3599, %v3602
  %vm3604 = vweird.f32 %v3598
  %vm3605 = vweird.f32 %v3599
  %vm3606 = vmor %vm3604, %vm3605
  %v3607 = vsel %vm3606, %v3599, %v3603
  %v3608 = vand.u32 2147483647, %v3598
  %vm3609 = vcmp.eq.f32.partialorder %v3608, 8.507059e+37
  %v3610 = vand.u32 %v3598, 2147483648
  %v3611 = vor.u32 1.1754944e-38, %v3610
  %v3612 = vsel %vm3609, %v3611, %v3607
  %v3613 = vmul.f32 1.0, %v3612
  %v3614 = vxor.u32 %v3592, 2147483648
  %v3615 = vmul.f32 %v3614, 1.442695
  %v3616 = vpow.pop %v3615
  %v3617 = vadd.f32 %v3616, 1.0
  %v3618 = vrcp.pop %v3617
  %v3619 = vmul.f32 %v3617, %v3618
  %v3620 = vsub.f32 1.0, %v3619
  %v3621 = vmul.f32 %v3618, %v3620
  %v3622 = vadd.f32 %v3618, %v3621
  %vm3623 = vweird.f32 %v3617
  %vm3624 = vweird.f32 %v3618
  %vm3625 = vmor %vm3623, %vm3624
  %v3626 = vsel %vm3625, %v3618, %v3622
  %v3627 = vand.u32 2147483647, %v3617
  %vm3628 = vcmp.eq.f32.partialorder %v3627, 8.507059e+37
  %v3629 = vand.u32 %v3617, 2147483648
  %v3630 = vor.u32 1.1754944e-38, %v3629
  %v3631 = vsel %vm3628, %v3630, %v3626
  %v3632 = vmul.f32 1.0, %v3631
  %v3633 = vtanh.pop %v3593
  %v3634 = vxor.u32 %v3594, 2147483648
  %v3635 = vmul.f32 %v3634, 1.442695
  %v3636 = vpow.pop %v3635
  %v3637 = vadd.f32 %v3636, 1.0
  %v3638 = vrcp.pop %v3637
  %v3639 = vmul.f32 %v3637, %v3638
  %v3640 = vsub.f32 1.0, %v3639
  %v3641 = vmul.f32 %v3638, %v3640
  %v3642 = vadd.f32 %v3638, %v3641
  %vm3643 = vweird.f32 %v3637
  %vm3644 = vweird.f32 %v3638
  %vm3645 = vmor %vm3643, %vm3644
  %v3646 = vsel %vm3645, %v3638, %v3642
  %v3647 = vand.u32 2147483647, %v3637
  %vm3648 = vcmp.eq.f32.partialorder %v3647, 8.507059e+37
  %v3649 = vand.u32 %v3637, 2147483648
  %v3650 = vor.u32 1.1754944e-38, %v3649
  %v3651 = vsel %vm3648, %v3650, %v3646
  %v3652 = vmul.f32 1.0, %v3651
  %v3653 = vmul.f32 %v3632, %v3436
  %v3654 = vmul.f32 %v3613, %v3633
  %v3655 = vadd.f32 %v3653, %v3654
  %v3656 = vtanh.pop %v3655
  %v3657 = vmul.f32 %v3652, %v3656
  %s3658 = scalar_lea.vmem [#allocation5], 40
  %3659 = vst [vmem:[%s3658] sm:$0xff] %v3657
  %s3660 = smul.addr %s1629, 8
  %s3661 = scalar_lea.vmem [#allocation4], %s3660
  %v3662 = vld [vmem:[%s3661] sm:$0xff]
  %v3663 = vld [vmem:[%s3661 + $0x8] sm:$0xff]
  %v3664 = vld [vmem:[%s3661 + $0x10] sm:$0xff]
  %v3665 = vld [vmem:[%s3661 + $0x18] sm:$0xff]
  %v3666 = vld [vmem:[%s5] sm:$0xff]
  %v3667 = vld [vmem:[%s5 + $0x8] sm:$0xff]
  %v3668 = vld [vmem:[%s5 + $0x10] sm:$0xff]
  %v3669 = vld [vmem:[%s5 + $0x18] sm:$0xff]
  %v3670 = vld [vmem:[%s5 + $0x20] sm:$0xff]
  %v3671 = vld [vmem:[%s5 + $0x28] sm:$0xff]
  %v3672 = vld [vmem:[%s5 + $0x30] sm:$0xff]
  %v3673 = vld [vmem:[%s5 + $0x38] sm:$0xff]
  %v3674 = vld [vmem:[%s5 + $0x40] sm:$0xff]
  %v3675 = vld [vmem:[%s5 + $0x48] sm:$0xff]
  %v3676 = vld [vmem:[%s5 + $0x50] sm:$0xff]
  %v3677 = vld [vmem:[%s5 + $0x58] sm:$0xff]
  %v3678 = vld [vmem:[%s5 + $0x60] sm:$0xff]
  %v3679 = vld [vmem:[%s5 + $0x68] sm:$0xff]
  %v3680 = vld [vmem:[%s5 + $0x70] sm:$0xff]
  %v3681 = vld [vmem:[%s5 + $0x78] sm:$0xff]
  %v3682 = vld [vmem:[%s5 + $0x80] sm:$0xff]
  %v3683 = vld [vmem:[%s5 + $0x88] sm:$0xff]
  %v3684 = vld [vmem:[%s5 + $0x90] sm:$0xff]
  %v3685 = vld [vmem:[%s5 + $0x98] sm:$0xff]
  %v3686 = vld [vmem:[%s5 + $0xa0] sm:$0xff]
  %v3687 = vld [vmem:[%s5 + $0xa8] sm:$0xff]
  %v3688 = vld [vmem:[%s5 + $0xb0] sm:$0xff]
  %v3689 = vld [vmem:[%s5 + $0xb8] sm:$0xff]
  %v3690 = vld [vmem:[%s5 + $0xc0] sm:$0xff]
  %v3691 = vld [vmem:[%s5 + $0xc8] sm:$0xff]
  %v3692 = vld [vmem:[%s5 + $0xd0] sm:$0xff]
  %v3693 = vld [vmem:[%s5 + $0xd8] sm:$0xff]
  %v3694 = vld [vmem:[%s5 + $0xe0] sm:$0xff]
  %v3695 = vld [vmem:[%s5 + $0xe8] sm:$0xff]
  %v3696 = vld [vmem:[%s5 + $0xf0] sm:$0xff]
  %v3697 = vld [vmem:[%s5 + $0xf8] sm:$0xff]
  %v3698 = vld [vmem:[%s5 + $0x100] sm:$0xff]
  %v3699 = vld [vmem:[%s5 + $0x108] sm:$0xff]
  %v3700 = vld [vmem:[%s5 + $0x110] sm:$0xff]
  %v3701 = vld [vmem:[%s5 + $0x118] sm:$0xff]
  %v3702 = vld [vmem:[%s5 + $0x120] sm:$0xff]
  %v3703 = vld [vmem:[%s5 + $0x128] sm:$0xff]
  %v3704 = vld [vmem:[%s5 + $0x130] sm:$0xff]
  %v3705 = vld [vmem:[%s5 + $0x138] sm:$0xff]
  %v3706 = vld [vmem:[%s5 + $0x140] sm:$0xff]
  %v3707 = vld [vmem:[%s5 + $0x148] sm:$0xff]
  %v3708 = vld [vmem:[%s5 + $0x150] sm:$0xff]
  %v3709 = vld [vmem:[%s5 + $0x158] sm:$0xff]
  %v3710 = vld [vmem:[%s5 + $0x160] sm:$0xff]
  %v3711 = vld [vmem:[%s5 + $0x168] sm:$0xff]
  %v3712 = vld [vmem:[%s5 + $0x170] sm:$0xff]
  %v3713 = vld [vmem:[%s5 + $0x178] sm:$0xff]
  %v3714 = vld [vmem:[%s5 + $0x180] sm:$0xff]
  %v3715 = vld [vmem:[%s5 + $0x188] sm:$0xff]
  %v3716 = vld [vmem:[%s5 + $0x190] sm:$0xff]
  %v3717 = vld [vmem:[%s5 + $0x198] sm:$0xff]
  %v3718 = vld [vmem:[%s5 + $0x1a0] sm:$0xff]
  %v3719 = vld [vmem:[%s5 + $0x1a8] sm:$0xff]
  %v3720 = vld [vmem:[%s5 + $0x1b0] sm:$0xff]
  %v3721 = vld [vmem:[%s5 + $0x1b8] sm:$0xff]
  %v3722 = vld [vmem:[%s5 + $0x1c0] sm:$0xff]
  %v3723 = vld [vmem:[%s5 + $0x1c8] sm:$0xff]
  %v3724 = vld [vmem:[%s5 + $0x1d0] sm:$0xff]
  %v3725 = vld [vmem:[%s5 + $0x1d8] sm:$0xff]
  %v3726 = vld [vmem:[%s5 + $0x1e0] sm:$0xff]
  %v3727 = vld [vmem:[%s5 + $0x1e8] sm:$0xff]
  %v3728 = vld [vmem:[%s5 + $0x1f0] sm:$0xff]
  %v3729 = vld [vmem:[%s5 + $0x1f8] sm:$0xff]
  %3730 = vmatpush.msra.mxu0 %v3726
  %3731 = vmatpush.msra.mxu0 %v3722
  %3732 = vmatpush.msra.mxu0 %v3718
  %3733 = vmatpush.msra.mxu0 %v3714
  %3734 = vmatpush.msra.mxu0 %v3710
  %3735 = vmatpush.msra.mxu0 %v3706
  %3736 = vmatpush.msra.mxu0 %v3702
  %3737 = vmatpush.msra.mxu0 %v3698
  %3738 = vmatpush.msra.mxu0 %v3694
  %3739 = vmatpush.msra.mxu0 %v3690
  %3740 = vmatpush.msra.mxu0 %v3686
  %3741 = vmatpush.msra.mxu0 %v3682
  %3742 = vmatpush.msra.mxu0 %v3678
  %3743 = vmatpush.msra.mxu0 %v3674
  %3744 = vmatpush.msra.mxu0 %v3670
  %3745 = vmatpush.msra.mxu0 %v3666
  %3746 = vmatmul.f32.gmra.mxu0 %v3657
  %v3747 = vpop.f32.mrf.mxu0
  %v3748 = vadd.f32 0.0, %v3747
  %3749 = vdwg.mxu0
  %3750 = vmatpush.msra.mxu0 %v3727
  %3751 = vmatpush.msra.mxu0 %v3723
  %3752 = vmatpush.msra.mxu0 %v3719
  %3753 = vmatpush.msra.mxu0 %v3715
  %3754 = vmatpush.msra.mxu0 %v3711
  %3755 = vmatpush.msra.mxu0 %v3707
  %3756 = vmatpush.msra.mxu0 %v3703
  %3757 = vmatpush.msra.mxu0 %v3699
  %3758 = vmatpush.msra.mxu0 %v3695
  %3759 = vmatpush.msra.mxu0 %v3691
  %3760 = vmatpush.msra.mxu0 %v3687
  %3761 = vmatpush.msra.mxu0 %v3683
  %3762 = vmatpush.msra.mxu0 %v3679
  %3763 = vmatpush.msra.mxu0 %v3675
  %3764 = vmatpush.msra.mxu0 %v3671
  %3765 = vmatpush.msra.mxu0 %v3667
  %3766 = vmatmul.f32.gmra.mxu0 %v3657
  %v3767 = vpop.f32.mrf.mxu0
  %v3768 = vadd.f32 0.0, %v3767
  %3769 = vdwg.mxu0
  %3770 = vmatpush.msra.mxu0 %v3728
  %3771 = vmatpush.msra.mxu0 %v3724
  %3772 = vmatpush.msra.mxu0 %v3720
  %3773 = vmatpush.msra.mxu0 %v3716
  %3774 = vmatpush.msra.mxu0 %v3712
  %3775 = vmatpush.msra.mxu0 %v3708
  %3776 = vmatpush.msra.mxu0 %v3704
  %3777 = vmatpush.msra.mxu0 %v3700
  %3778 = vmatpush.msra.mxu0 %v3696
  %3779 = vmatpush.msra.mxu0 %v3692
  %3780 = vmatpush.msra.mxu0 %v3688
  %3781 = vmatpush.msra.mxu0 %v3684
  %3782 = vmatpush.msra.mxu0 %v3680
  %3783 = vmatpush.msra.mxu0 %v3676
  %3784 = vmatpush.msra.mxu0 %v3672
  %3785 = vmatpush.msra.mxu0 %v3668
  %3786 = vmatmul.f32.gmra.mxu0 %v3657
  %v3787 = vpop.f32.mrf.mxu0
  %v3788 = vadd.f32 0.0, %v3787
  %3789 = vdwg.mxu0
  %3790 = vmatpush.msra.mxu0 %v3729
  %3791 = vmatpush.msra.mxu0 %v3725
  %3792 = vmatpush.msra.mxu0 %v3721
  %3793 = vmatpush.msra.mxu0 %v3717
  %3794 = vmatpush.msra.mxu0 %v3713
  %3795 = vmatpush.msra.mxu0 %v3709
  %3796 = vmatpush.msra.mxu0 %v3705
  %3797 = vmatpush.msra.mxu0 %v3701
  %3798 = vmatpush.msra.mxu0 %v3697
  %3799 = vmatpush.msra.mxu0 %v3693
  %3800 = vmatpush.msra.mxu0 %v3689
  %3801 = vmatpush.msra.mxu0 %v3685
  %3802 = vmatpush.msra.mxu0 %v3681
  %3803 = vmatpush.msra.mxu0 %v3677
  %3804 = vmatpush.msra.mxu0 %v3673
  %3805 = vmatpush.msra.mxu0 %v3669
  %3806 = vmatmul.f32.gmra.mxu0 %v3657
  %v3807 = vpop.f32.mrf.mxu0
  %v3808 = vadd.f32 0.0, %v3807
  %3809 = vdwg.mxu0
  %v3810 = vadd.f32 %v3662, %v3748
  %v3811 = vadd.f32 %v3663, %v3768
  %v3812 = vadd.f32 %v3664, %v3788
  %v3813 = vadd.f32 %v3665, %v3808
  %v3814 = vxor.u32 %v3810, 2147483648
  %v3815 = vmul.f32 %v3814, 1.442695
  %v3816 = vpow.pop %v3815
  %v3817 = vadd.f32 %v3816, 1.0
  %v3818 = vrcp.pop %v3817
  %v3819 = vmul.f32 %v3817, %v3818
  %v3820 = vsub.f32 1.0, %v3819
  %v3821 = vmul.f32 %v3818, %v3820
  %v3822 = vadd.f32 %v3818, %v3821
  %vm3823 = vweird.f32 %v3817
  %vm3824 = vweird.f32 %v3818
  %vm3825 = vmor %vm3823, %vm3824
  %v3826 = vsel %vm3825, %v3818, %v3822
  %v3827 = vand.u32 2147483647, %v3817
  %vm3828 = vcmp.eq.f32.partialorder %v3827, 8.507059e+37
  %v3829 = vand.u32 %v3817, 2147483648
  %v3830 = vor.u32 1.1754944e-38, %v3829
  %v3831 = vsel %vm3828, %v3830, %v3826
  %v3832 = vmul.f32 1.0, %v3831
  %v3833 = vxor.u32 %v3811, 2147483648
  %v3834 = vmul.f32 %v3833, 1.442695
  %v3835 = vpow.pop %v3834
  %v3836 = vadd.f32 %v3835, 1.0
  %v3837 = vrcp.pop %v3836
  %v3838 = vmul.f32 %v3836, %v3837
  %v3839 = vsub.f32 1.0, %v3838
  %v3840 = vmul.f32 %v3837, %v3839
  %v3841 = vadd.f32 %v3837, %v3840
  %vm3842 = vweird.f32 %v3836
  %vm3843 = vweird.f32 %v3837
  %vm3844 = vmor %vm3842, %vm3843
  %v3845 = vsel %vm3844, %v3837, %v3841
  %v3846 = vand.u32 2147483647, %v3836
  %vm3847 = vcmp.eq.f32.partialorder %v3846, 8.507059e+37
  %v3848 = vand.u32 %v3836, 2147483648
  %v3849 = vor.u32 1.1754944e-38, %v3848
  %v3850 = vsel %vm3847, %v3849, %v3845
  %v3851 = vmul.f32 1.0, %v3850
  %v3852 = vtanh.pop %v3812
  %v3853 = vxor.u32 %v3813, 2147483648
  %v3854 = vmul.f32 %v3853, 1.442695
  %v3855 = vpow.pop %v3854
  %v3856 = vadd.f32 %v3855, 1.0
  %v3857 = vrcp.pop %v3856
  %v3858 = vmul.f32 %v3856, %v3857
  %v3859 = vsub.f32 1.0, %v3858
  %v3860 = vmul.f32 %v3857, %v3859
  %v3861 = vadd.f32 %v3857, %v3860
  %vm3862 = vweird.f32 %v3856
  %vm3863 = vweird.f32 %v3857
  %vm3864 = vmor %vm3862, %vm3863
  %v3865 = vsel %vm3864, %v3857, %v3861
  %v3866 = vand.u32 2147483647, %v3856
  %vm3867 = vcmp.eq.f32.partialorder %v3866, 8.507059e+37
  %v3868 = vand.u32 %v3856, 2147483648
  %v3869 = vor.u32 1.1754944e-38, %v3868
  %v3870 = vsel %vm3867, %v3869, %v3865
  %v3871 = vmul.f32 1.0, %v3870
  %v3872 = vmul.f32 %v3851, %v3655
  %v3873 = vmul.f32 %v3832, %v3852
  %v3874 = vadd.f32 %v3872, %v3873
  %v3875 = vtanh.pop %v3874
  %v3876 = vmul.f32 %v3871, %v3875
  %s3877 = scalar_lea.vmem [#allocation5], 48
  %3878 = vst [vmem:[%s3877] sm:$0xff] %v3876
  %s3879 = smul.addr %s1849, 8
  %s3880 = scalar_lea.vmem [#allocation4], %s3879
  %v3881 = vld [vmem:[%s3880] sm:$0xff]
  %v3882 = vld [vmem:[%s3880 + $0x8] sm:$0xff]
  %v3883 = vld [vmem:[%s3880 + $0x10] sm:$0xff]
  %v3884 = vld [vmem:[%s3880 + $0x18] sm:$0xff]
  %v3885 = vld [vmem:[%s5] sm:$0xff]
  %v3886 = vld [vmem:[%s5 + $0x8] sm:$0xff]
  %v3887 = vld [vmem:[%s5 + $0x10] sm:$0xff]
  %v3888 = vld [vmem:[%s5 + $0x18] sm:$0xff]
  %v3889 = vld [vmem:[%s5 + $0x20] sm:$0xff]
  %v3890 = vld [vmem:[%s5 + $0x28] sm:$0xff]
  %v3891 = vld [vmem:[%s5 + $0x30] sm:$0xff]
  %v3892 = vld [vmem:[%s5 + $0x38] sm:$0xff]
  %v3893 = vld [vmem:[%s5 + $0x40] sm:$0xff]
  %v3894 = vld [vmem:[%s5 + $0x48] sm:$0xff]
  %v3895 = vld [vmem:[%s5 + $0x50] sm:$0xff]
  %v3896 = vld [vmem:[%s5 + $0x58] sm:$0xff]
  %v3897 = vld [vmem:[%s5 + $0x60] sm:$0xff]
  %v3898 = vld [vmem:[%s5 + $0x68] sm:$0xff]
  %v3899 = vld [vmem:[%s5 + $0x70] sm:$0xff]
  %v3900 = vld [vmem:[%s5 + $0x78] sm:$0xff]
  %v3901 = vld [vmem:[%s5 + $0x80] sm:$0xff]
  %v3902 = vld [vmem:[%s5 + $0x88] sm:$0xff]
  %v3903 = vld [vmem:[%s5 + $0x90] sm:$0xff]
  %v3904 = vld [vmem:[%s5 + $0x98] sm:$0xff]
  %v3905 = vld [vmem:[%s5 + $0xa0] sm:$0xff]
  %v3906 = vld [vmem:[%s5 + $0xa8] sm:$0xff]
  %v3907 = vld [vmem:[%s5 + $0xb0] sm:$0xff]
  %v3908 = vld [vmem:[%s5 + $0xb8] sm:$0xff]
  %v3909 = vld [vmem:[%s5 + $0xc0] sm:$0xff]
  %v3910 = vld [vmem:[%s5 + $0xc8] sm:$0xff]
  %v3911 = vld [vmem:[%s5 + $0xd0] sm:$0xff]
  %v3912 = vld [vmem:[%s5 + $0xd8] sm:$0xff]
  %v3913 = vld [vmem:[%s5 + $0xe0] sm:$0xff]
  %v3914 = vld [vmem:[%s5 + $0xe8] sm:$0xff]
  %v3915 = vld [vmem:[%s5 + $0xf0] sm:$0xff]
  %v3916 = vld [vmem:[%s5 + $0xf8] sm:$0xff]
  %v3917 = vld [vmem:[%s5 + $0x100] sm:$0xff]
  %v3918 = vld [vmem:[%s5 + $0x108] sm:$0xff]
  %v3919 = vld [vmem:[%s5 + $0x110] sm:$0xff]
  %v3920 = vld [vmem:[%s5 + $0x118] sm:$0xff]
  %v3921 = vld [vmem:[%s5 + $0x120] sm:$0xff]
  %v3922 = vld [vmem:[%s5 + $0x128] sm:$0xff]
  %v3923 = vld [vmem:[%s5 + $0x130] sm:$0xff]
  %v3924 = vld [vmem:[%s5 + $0x138] sm:$0xff]
  %v3925 = vld [vmem:[%s5 + $0x140] sm:$0xff]
  %v3926 = vld [vmem:[%s5 + $0x148] sm:$0xff]
  %v3927 = vld [vmem:[%s5 + $0x150] sm:$0xff]
  %v3928 = vld [vmem:[%s5 + $0x158] sm:$0xff]
  %v3929 = vld [vmem:[%s5 + $0x160] sm:$0xff]
  %v3930 = vld [vmem:[%s5 + $0x168] sm:$0xff]
  %v3931 = vld [vmem:[%s5 + $0x170] sm:$0xff]
  %v3932 = vld [vmem:[%s5 + $0x178] sm:$0xff]
  %v3933 = vld [vmem:[%s5 + $0x180] sm:$0xff]
  %v3934 = vld [vmem:[%s5 + $0x188] sm:$0xff]
  %v3935 = vld [vmem:[%s5 + $0x190] sm:$0xff]
  %v3936 = vld [vmem:[%s5 + $0x198] sm:$0xff]
  %v3937 = vld [vmem:[%s5 + $0x1a0] sm:$0xff]
  %v3938 = vld [vmem:[%s5 + $0x1a8] sm:$0xff]
  %v3939 = vld [vmem:[%s5 + $0x1b0] sm:$0xff]
  %v3940 = vld [vmem:[%s5 + $0x1b8] sm:$0xff]
  %v3941 = vld [vmem:[%s5 + $0x1c0] sm:$0xff]
  %v3942 = vld [vmem:[%s5 + $0x1c8] sm:$0xff]
  %v3943 = vld [vmem:[%s5 + $0x1d0] sm:$0xff]
  %v3944 = vld [vmem:[%s5 + $0x1d8] sm:$0xff]
  %v3945 = vld [vmem:[%s5 + $0x1e0] sm:$0xff]
  %v3946 = vld [vmem:[%s5 + $0x1e8] sm:$0xff]
  %v3947 = vld [vmem:[%s5 + $0x1f0] sm:$0xff]
  %v3948 = vld [vmem:[%s5 + $0x1f8] sm:$0xff]
  %3949 = vmatpush.msra.mxu0 %v3945
  %3950 = vmatpush.msra.mxu0 %v3941
  %3951 = vmatpush.msra.mxu0 %v3937
  %3952 = vmatpush.msra.mxu0 %v3933
  %3953 = vmatpush.msra.mxu0 %v3929
  %3954 = vmatpush.msra.mxu0 %v3925
  %3955 = vmatpush.msra.mxu0 %v3921
  %3956 = vmatpush.msra.mxu0 %v3917
  %3957 = vmatpush.msra.mxu0 %v3913
  %3958 = vmatpush.msra.mxu0 %v3909
  %3959 = vmatpush.msra.mxu0 %v3905
  %3960 = vmatpush.msra.mxu0 %v3901
  %3961 = vmatpush.msra.mxu0 %v3897
  %3962 = vmatpush.msra.mxu0 %v3893
  %3963 = vmatpush.msra.mxu0 %v3889
  %3964 = vmatpush.msra.mxu0 %v3885
  %3965 = vmatmul.f32.gmra.mxu0 %v3876
  %v3966 = vpop.f32.mrf.mxu0
  %v3967 = vadd.f32 0.0, %v3966
  %3968 = vdwg.mxu0
  %3969 = vmatpush.msra.mxu0 %v3946
  %3970 = vmatpush.msra.mxu0 %v3942
  %3971 = vmatpush.msra.mxu0 %v3938
  %3972 = vmatpush.msra.mxu0 %v3934
  %3973 = vmatpush.msra.mxu0 %v3930
  %3974 = vmatpush.msra.mxu0 %v3926
  %3975 = vmatpush.msra.mxu0 %v3922
  %3976 = vmatpush.msra.mxu0 %v3918
  %3977 = vmatpush.msra.mxu0 %v3914
  %3978 = vmatpush.msra.mxu0 %v3910
  %3979 = vmatpush.msra.mxu0 %v3906
  %3980 = vmatpush.msra.mxu0 %v3902
  %3981 = vmatpush.msra.mxu0 %v3898
  %3982 = vmatpush.msra.mxu0 %v3894
  %3983 = vmatpush.msra.mxu0 %v3890
  %3984 = vmatpush.msra.mxu0 %v3886
  %3985 = vmatmul.f32.gmra.mxu0 %v3876
  %v3986 = vpop.f32.mrf.mxu0
  %v3987 = vadd.f32 0.0, %v3986
  %3988 = vdwg.mxu0
  %3989 = vmatpush.msra.mxu0 %v3947
  %3990 = vmatpush.msra.mxu0 %v3943
  %3991 = vmatpush.msra.mxu0 %v3939
  %3992 = vmatpush.msra.mxu0 %v3935
  %3993 = vmatpush.msra.mxu0 %v3931
  %3994 = vmatpush.msra.mxu0 %v3927
  %3995 = vmatpush.msra.mxu0 %v3923
  %3996 = vmatpush.msra.mxu0 %v3919
  %3997 = vmatpush.msra.mxu0 %v3915
  %3998 = vmatpush.msra.mxu0 %v3911
  %3999 = vmatpush.msra.mxu0 %v3907
  %4000 = vmatpush.msra.mxu0 %v3903
  %4001 = vmatpush.msra.mxu0 %v3899
  %4002 = vmatpush.msra.mxu0 %v3895
  %4003 = vmatpush.msra.mxu0 %v3891
  %4004 = vmatpush.msra.mxu0 %v3887
  %4005 = vmatmul.f32.gmra.mxu0 %v3876
  %v4006 = vpop.f32.mrf.mxu0
  %v4007 = vadd.f32 0.0, %v4006
  %4008 = vdwg.mxu0
  %4009 = vmatpush.msra.mxu0 %v3948
  %4010 = vmatpush.msra.mxu0 %v3944
  %4011 = vmatpush.msra.mxu0 %v3940
  %4012 = vmatpush.msra.mxu0 %v3936
  %4013 = vmatpush.msra.mxu0 %v3932
  %4014 = vmatpush.msra.mxu0 %v3928
  %4015 = vmatpush.msra.mxu0 %v3924
  %4016 = vmatpush.msra.mxu0 %v3920
  %4017 = vmatpush.msra.mxu0 %v3916
  %4018 = vmatpush.msra.mxu0 %v3912
  %4019 = vmatpush.msra.mxu0 %v3908
  %4020 = vmatpush.msra.mxu0 %v3904
  %4021 = vmatpush.msra.mxu0 %v3900
  %4022 = vmatpush.msra.mxu0 %v3896
  %4023 = vmatpush.msra.mxu0 %v3892
  %4024 = vmatpush.msra.mxu0 %v3888
  %4025 = vmatmul.f32.gmra.mxu0 %v3876
  %v4026 = vpop.f32.mrf.mxu0
  %v4027 = vadd.f32 0.0, %v4026
  %4028 = vdwg.mxu0
  %v4029 = vadd.f32 %v3881, %v3967
  %v4030 = vadd.f32 %v3882, %v3987
  %v4031 = vadd.f32 %v3883, %v4007
  %v4032 = vadd.f32 %v3884, %v4027
  %v4033 = vxor.u32 %v4029, 2147483648
  %v4034 = vmul.f32 %v4033, 1.442695
  %v4035 = vpow.pop %v4034
  %v4036 = vadd.f32 %v4035, 1.0
  %v4037 = vrcp.pop %v4036
  %v4038 = vmul.f32 %v4036, %v4037
  %v4039 = vsub.f32 1.0, %v4038
  %v4040 = vmul.f32 %v4037, %v4039
  %v4041 = vadd.f32 %v4037, %v4040
  %vm4042 = vweird.f32 %v4036
  %vm4043 = vweird.f32 %v4037
  %vm4044 = vmor %vm4042, %vm4043
  %v4045 = vsel %vm4044, %v4037, %v4041
  %v4046 = vand.u32 2147483647, %v4036
  %vm4047 = vcmp.eq.f32.partialorder %v4046, 8.507059e+37
  %v4048 = vand.u32 %v4036, 2147483648
  %v4049 = vor.u32 1.1754944e-38, %v4048
  %v4050 = vsel %vm4047, %v4049, %v4045
  %v4051 = vmul.f32 1.0, %v4050
  %v4052 = vxor.u32 %v4030, 2147483648
  %v4053 = vmul.f32 %v4052, 1.442695
  %v4054 = vpow.pop %v4053
  %v4055 = vadd.f32 %v4054, 1.0
  %v4056 = vrcp.pop %v4055
  %v4057 = vmul.f32 %v4055, %v4056
  %v4058 = vsub.f32 1.0, %v4057
  %v4059 = vmul.f32 %v4056, %v4058
  %v4060 = vadd.f32 %v4056, %v4059
  %vm4061 = vweird.f32 %v4055
  %vm4062 = vweird.f32 %v4056
  %vm4063 = vmor %vm4061, %vm4062
  %v4064 = vsel %vm4063, %v4056, %v4060
  %v4065 = vand.u32 2147483647, %v4055
  %vm4066 = vcmp.eq.f32.partialorder %v4065, 8.507059e+37
  %v4067 = vand.u32 %v4055, 2147483648
  %v4068 = vor.u32 1.1754944e-38, %v4067
  %v4069 = vsel %vm4066, %v4068, %v4064
  %v4070 = vmul.f32 1.0, %v4069
  %v4071 = vtanh.pop %v4031
  %v4072 = vxor.u32 %v4032, 2147483648
  %v4073 = vmul.f32 %v4072, 1.442695
  %v4074 = vpow.pop %v4073
  %v4075 = vadd.f32 %v4074, 1.0
  %v4076 = vrcp.pop %v4075
  %v4077 = vmul.f32 %v4075, %v4076
  %v4078 = vsub.f32 1.0, %v4077
  %v4079 = vmul.f32 %v4076, %v4078
  %v4080 = vadd.f32 %v4076, %v4079
  %vm4081 = vweird.f32 %v4075
  %vm4082 = vweird.f32 %v4076
  %vm4083 = vmor %vm4081, %vm4082
  %v4084 = vsel %vm4083, %v4076, %v4080
  %v4085 = vand.u32 2147483647, %v4075
  %vm4086 = vcmp.eq.f32.partialorder %v4085, 8.507059e+37
  %v4087 = vand.u32 %v4075, 2147483648
  %v4088 = vor.u32 1.1754944e-38, %v4087
  %v4089 = vsel %vm4086, %v4088, %v4084
  %v4090 = vmul.f32 1.0, %v4089
  %v4091 = vmul.f32 %v4070, %v3874
  %v4092 = vmul.f32 %v4051, %v4071
  %v4093 = vadd.f32 %v4091, %v4092
  %v4094 = vtanh.pop %v4093
  %v4095 = vmul.f32 %v4090, %v4094
  %s4096 = scalar_lea.vmem [#allocation5], 56
  %4097 = vst [vmem:[%s4096] sm:$0xff] %v4095
  %v4098 = vld [vmem:[#allocation5] sm:$0xff]
  %v4099 = vld [vmem:[#allocation5 + $0x8] sm:$0xff]
  %v4100 = vld [vmem:[#allocation5 + $0x10] sm:$0xff]
  %v4101 = vld [vmem:[#allocation5 + $0x18] sm:$0xff]
  %v4102 = vld [vmem:[#allocation5 + $0x20] sm:$0xff]
  %v4103 = vld [vmem:[#allocation5 + $0x28] sm:$0xff]
  %v4104 = vld [vmem:[#allocation5 + $0x30] sm:$0xff]
  %v4105 = vld [vmem:[#allocation5 + $0x38] sm:$0xff]
  %v4106 = vld [vmem:[%s7] sm:$0xff]
  %v4107 = vld [vmem:[%s7 + $0x8] sm:$0xff]
  %v4108 = vld [vmem:[%s7 + $0x10] sm:$0xff]
  %v4109 = vld [vmem:[%s7 + $0x18] sm:$0xff]
  %v4110 = vld [vmem:[%s7 + $0x20] sm:$0xff]
  %v4111 = vld [vmem:[%s7 + $0x28] sm:$0xff]
  %v4112 = vld [vmem:[%s7 + $0x30] sm:$0xff]
  %v4113 = vld [vmem:[%s7 + $0x38] sm:$0xff]
  %v4114 = vld [vmem:[%s7 + $0x40] sm:$0xff]
  %v4115 = vld [vmem:[%s7 + $0x48] sm:$0xff]
  %v4116 = vld [vmem:[%s7 + $0x50] sm:$0xff]
  %v4117 = vld [vmem:[%s7 + $0x58] sm:$0xff]
  %v4118 = vld [vmem:[%s7 + $0x60] sm:$0xff]
  %v4119 = vld [vmem:[%s7 + $0x68] sm:$0xff]
  %v4120 = vld [vmem:[%s7 + $0x70] sm:$0xff]
  %v4121 = vld [vmem:[%s7 + $0x78] sm:$0xff]
  %v4122 = vld [vmem:[%s8] sm:$0x1]
  %v4124 = vperm.slane %v4122, 0
  %4126 = vmatpush.msra.mxu0 %v4121
  %4127 = vmatpush.msra.mxu0 %v4120
  %4128 = vmatpush.msra.mxu0 %v4119
  %4129 = vmatpush.msra.mxu0 %v4118
  %4130 = vmatpush.msra.mxu0 %v4117
  %4131 = vmatpush.msra.mxu0 %v4116
  %4132 = vmatpush.msra.mxu0 %v4115
  %4133 = vmatpush.msra.mxu0 %v4114
  %4134 = vmatpush.msra.mxu0 %v4113
  %4135 = vmatpush.msra.mxu0 %v4112
  %4136 = vmatpush.msra.mxu0 %v4111
  %4137 = vmatpush.msra.mxu0 %v4110
  %4138 = vmatpush.msra.mxu0 %v4109
  %4139 = vmatpush.msra.mxu0 %v4108
  %4140 = vmatpush.msra.mxu0 %v4107
  %4141 = vmatpush.msra.mxu0 %v4106
  %4142 = vmatmul.f32.gmra.mxu0 %v4098
  %v4143 = vpop.f32.mrf.mxu0
  %v4144 = vadd.f32 %v4124, %v4143
  %4145 = vmatmul.f32.gmra.mxu0 %v4099
  %v4146 = vpop.f32.mrf.mxu0
  %v4147 = vadd.f32 %v4124, %v4146
  %4148 = vmatmul.f32.gmra.mxu0 %v4100
  %v4149 = vpop.f32.mrf.mxu0
  %v4150 = vadd.f32 %v4124, %v4149
  %4151 = vmatmul.f32.gmra.mxu0 %v4101
  %v4152 = vpop.f32.mrf.mxu0
  %v4153 = vadd.f32 %v4124, %v4152
  %4154 = vmatmul.f32.gmra.mxu0 %v4102
  %v4155 = vpop.f32.mrf.mxu0
  %v4156 = vadd.f32 %v4124, %v4155
  %4157 = vmatmul.f32.gmra.mxu0 %v4103
  %v4158 = vpop.f32.mrf.mxu0
  %v4159 = vadd.f32 %v4124, %v4158
  %4160 = vmatmul.f32.gmra.mxu0 %v4104
  %v4161 = vpop.f32.mrf.mxu0
  %v4162 = vadd.f32 %v4124, %v4161
  %4163 = vmatmul.f32.gmra.mxu0 %v4105
  %v4164 = vpop.f32.mrf.mxu0
  %v4165 = vadd.f32 %v4124, %v4164
  %4166 = vdwg.mxu0
  %4167 = vmax.xlane.f32.xlu0 %v4144
  %v4168 = vpop.xlane.xlu0 %4167
  %4169 = vmax.xlane.f32.xlu0 %v4147
  %v4170 = vpop.xlane.xlu0 %4169
  %4171 = vmax.xlane.f32.xlu0 %v4150
  %v4172 = vpop.xlane.xlu0 %4171
  %4173 = vmax.xlane.f32.xlu0 %v4153
  %v4174 = vpop.xlane.xlu0 %4173
  %4175 = vmax.xlane.f32.xlu0 %v4156
  %v4176 = vpop.xlane.xlu0 %4175
  %4177 = vmax.xlane.f32.xlu0 %v4159
  %v4178 = vpop.xlane.xlu0 %4177
  %4179 = vmax.xlane.f32.xlu0 %v4162
  %v4180 = vpop.xlane.xlu0 %4179
  %4181 = vmax.xlane.f32.xlu0 %v4165
  %v4182 = vpop.xlane.xlu0 %4181
  %v4183 = vsub.f32 %v4144, %v4168
  %v4184 = vsub.f32 %v4147, %v4170
  %v4185 = vsub.f32 %v4150, %v4172
  %v4186 = vsub.f32 %v4153, %v4174
  %v4187 = vsub.f32 %v4156, %v4176
  %v4188 = vsub.f32 %v4159, %v4178
  %v4189 = vsub.f32 %v4162, %v4180
  %v4190 = vsub.f32 %v4165, %v4182
  %v4191 = vmul.f32 %v4183, 1.442695
  %v4192 = vpow.pop %v4191
  %v4193 = vmul.f32 %v4184, 1.442695
  %v4194 = vpow.pop %v4193
  %v4195 = vmul.f32 %v4185, 1.442695
  %v4196 = vpow.pop %v4195
  %v4197 = vmul.f32 %v4186, 1.442695
  %v4198 = vpow.pop %v4197
  %v4199 = vmul.f32 %v4187, 1.442695
  %v4200 = vpow.pop %v4199
  %v4201 = vmul.f32 %v4188, 1.442695
  %v4202 = vpow.pop %v4201
  %v4203 = vmul.f32 %v4189, 1.442695
  %v4204 = vpow.pop %v4203
  %v4205 = vmul.f32 %v4190, 1.442695
  %v4206 = vpow.pop %v4205
  %4207 = vadd.xlane.f32.xlu0 %v4192
  %v4208 = vpop.xlane.xlu0 %4207
  %4209 = vadd.xlane.f32.xlu0 %v4194
  %v4210 = vpop.xlane.xlu0 %4209
  %4211 = vadd.xlane.f32.xlu0 %v4196
  %v4212 = vpop.xlane.xlu0 %4211
  %4213 = vadd.xlane.f32.xlu0 %v4198
  %v4214 = vpop.xlane.xlu0 %4213
  %4215 = vadd.xlane.f32.xlu0 %v4200
  %v4216 = vpop.xlane.xlu0 %4215
  %4217 = vadd.xlane.f32.xlu0 %v4202
  %v4218 = vpop.xlane.xlu0 %4217
  %4219 = vadd.xlane.f32.xlu0 %v4204
  %v4220 = vpop.xlane.xlu0 %4219
  %4221 = vadd.xlane.f32.xlu0 %v4206
  %v4222 = vpop.xlane.xlu0 %4221
  %v4223 = vrcp.pop %v4208
  %v4224 = vrcp.pop %v4210
  %v4225 = vrcp.pop %v4212
  %v4226 = vrcp.pop %v4214
  %v4227 = vrcp.pop %v4216
  %v4228 = vrcp.pop %v4218
  %v4229 = vrcp.pop %v4220
  %v4230 = vrcp.pop %v4222
  %v4231 = vmul.f32 %v4192, %v4223
  %v4232 = vmul.f32 %v4194, %v4224
  %v4233 = vmul.f32 %v4196, %v4225
  %v4234 = vmul.f32 %v4198, %v4226
  %v4235 = vmul.f32 %v4200, %v4227
  %v4236 = vmul.f32 %v4202, %v4228
  %v4237 = vmul.f32 %v4204, %v4229
  %v4238 = vmul.f32 %v4206, %v4230
  %4239 = vst [vmem:[%s9] sm:$0xff] %v4231
  %4240 = vst [vmem:[%s9 + $0x8] sm:$0xff] %v4232
  %4241 = vst [vmem:[%s9 + $0x10] sm:$0xff] %v4233
  %4242 = vst [vmem:[%s9 + $0x18] sm:$0xff] %v4234
  %4243 = vst [vmem:[%s9 + $0x20] sm:$0xff] %v4235
  %4244 = vst [vmem:[%s9 + $0x28] sm:$0xff] %v4236
  %4245 = vst [vmem:[%s9 + $0x30] sm:$0xff] %v4237
  %4246 = vst [vmem:[%s9 + $0x38] sm:$0xff] %v4238
  // Predicated region
  $region38: #{lstm_model_forward.1} parent=0 // pred_check
    _
  $region39: #{lstm_model_forward.1} parent=0 // pred_check_branch
    %4248 = sbr.rel (0) target = $region41
  $region40: #{lstm_model_forward.1} parent=0 // pred_region
    _
  $region41: #{lstm_model_forward.1} parent=0 // pred_fallthru
    _
  // Predicated region
  $region42: #{lstm_model_forward.1} parent=0 // pred_check
    _
  $region43: #{lstm_model_forward.1} parent=0 // pred_check_branch
    %4250 = sbr.rel (0) target = $region45
  $region44: #{lstm_model_forward.1} parent=0 // pred_region
    _
  $region45: #{lstm_model_forward.1} parent=0 // pred_fallthru
    _

</llo_original>
